<compile_context>
chip_gen: v7x
topology: tpu7x:2x2x1
jax: 0.10.0
libtpu: 0.0.40
codegen_flags: <defaults>
</compile_context>

<pallas_src>
import functools

import jax
import jax.numpy as jnp
from jax import lax
from jax.experimental import pallas as pl
from jax.experimental.pallas import tpu as pltpu


def _round_up(a, m):
    return (a + m - 1) // m * m


def make_basic_block_kernel(H, W, Cin, Cout, HP, WP):
    """Kernel processing one NHWC image per grid step."""
    M = H * WP                                   # rows of the "wide" conv output
    offs = [dh * WP + dw for dh in range(3) for dw in range(3)]   # flat tap offsets

    def zero_halo(scr, C):
        # Zero only the border / padding region; the interior is overwritten
        # every step.  Done each step so "parallel" grid sharding stays correct.
        scr[0:1, :, :] = jnp.zeros((1, WP, C), scr.dtype)
        scr[H + 1:HP, :, :] = jnp.zeros((HP - H - 1, WP, C), scr.dtype)
        scr[1:H + 1, 0:1, :] = jnp.zeros((H, 1, C), scr.dtype)
        scr[1:H + 1, W + 1:WP, :] = jnp.zeros((H, WP - W - 1, C), scr.dtype)

    def conv3x3(scr, wf_ref, cin):
        # Flat view of the padded activation: tap (dh, dw) for every output
        # position is the contiguous row range [dh*WP+dw, dh*WP+dw + M).
        flat = scr[...].reshape(HP * WP, cin)
        col = jnp.concatenate([flat[o:o + M, :] for o in offs], axis=1)  # (M, 9*cin)
        return jnp.dot(col, wf_ref[...], preferred_element_type=jnp.float32)  # (M, Cout)

    def kernel(x_ref, w1_ref, b1_ref, w2_ref, b2_ref, out_ref, xpad, pad1):
        xv = x_ref[0]                                   # (H, W, Cin), native dtype

        zero_halo(xpad, Cin)
        zero_halo(pad1, Cout)
        xpad[1:H + 1, 1:W + 1, :] = xv                  # in-kernel padding

        # ---- conv1 (BN1 scale pre-folded into w1) + bias + ReLU
        acc1 = conv3x3(xpad, w1_ref, Cin)               # (M, Cout) f32
        out1 = jnp.maximum(acc1 + b1_ref[...], 0.0)
        out1v = out1.reshape(H, WP, Cout)[:, :W, :]     # drop wide/garbage columns
        pad1[1:H + 1, 1:W + 1, :] = out1v.astype(pad1.dtype)

        # ---- conv2 (BN2 scale pre-folded) + bias + residual + ReLU
        acc2 = conv3x3(pad1, w2_ref, Cout)              # (M, Cout) f32
        out2 = (acc2 + b2_ref[...]).reshape(H, WP, Cout)[:, :W, :]
        res = jnp.maximum(out2 + xv.astype(jnp.float32), 0.0)
        out_ref[0] = res.astype(out_ref.dtype)

    return kernel


@jax.jit
def basic_block_forward(x_nchw, w1, s1, b1, w2, s2, b2):
    """x_nchw: (N, C, H, W) -> (N, C, H, W). Weights HWIO; s/b are (1, C)."""
    N, C, H, W = x_nchw.shape
    Cout = w1.shape[-1]
    assert Cout == C, "downsample=None requires inplanes == planes, stride == 1"

    x = jnp.transpose(x_nchw, (0, 2, 3, 1))            # NHWC (lane axis = channels)

    # Fold BN scale into conv weights; reshape to (9*Cin, Cout) for the single
    # im2col matmul (row order = (dh, dw, ci), matching the in-kernel concat).
    w1f = (w1 * s1.reshape(1, 1, 1, Cout)).reshape(9 * C, Cout).astype(x.dtype)
    w2f = (w2 * s2.reshape(1, 1, 1, Cout)).reshape(9 * Cout, Cout).astype(x.dtype)
    b1r = b1.reshape(1, Cout).astype(jnp.float32)
    b2r = b2.reshape(1, Cout).astype(jnp.float32)

    WP = _round_up(W + 2, 8)        # padded width, sublane-aligned
    HP = H + 3                      # padded height (+1 spare row for flat taps)

    kernel = make_basic_block_kernel(H, W, C, Cout, HP, WP)

    out_nhwc = pl.pallas_call(
        kernel,
        out_shape=jax.ShapeDtypeStruct((N, H, W, Cout), x.dtype),
        grid_spec=pltpu.PrefetchScalarGridSpec(
            num_scalar_prefetch=0,
            grid=(N,),
            in_specs=[
                pl.BlockSpec((1, H, W, C), lambda b: (b, 0, 0, 0)),
                pl.BlockSpec((9 * C, Cout), lambda b: (0, 0)),
                pl.BlockSpec((1, Cout), lambda b: (0, 0)),
                pl.BlockSpec((9 * Cout, Cout), lambda b: (0, 0)),
                pl.BlockSpec((1, Cout), lambda b: (0, 0)),
            ],
            out_specs=pl.BlockSpec((1, H, W, Cout), lambda b: (b, 0, 0, 0)),
            scratch_shapes=[
                pltpu.VMEM((HP, WP, C), x.dtype),       # padded input
                pltpu.VMEM((HP, WP, Cout), x.dtype),    # padded conv1 output
            ],
        ),
        compiler_params=pltpu.CompilerParams(
            dimension_semantics=("parallel",),
            vmem_limit_bytes=32 * 1024 * 1024,
        ),
    )(x, w1f, b1r, w2f, b2r)

    return jnp.transpose(out_nhwc, (0, 3, 1, 2))        # back to NCHW


def reference_forward(x_nchw, w1, s1, b1, w2, s2, b2):
    """Pure-JAX reference of the same math (for correctness check)."""
    x = jnp.transpose(x_nchw, (0, 2, 3, 1))
    dn = ("NHWC", "HWIO", "NHWC")
    o = lax.conv_general_dilated(x, w1, (1, 1), "SAME", dimension_numbers=dn)
    o = jnp.maximum(o * s1.reshape(1, 1, 1, -1) + b1.reshape(1, 1, 1, -1), 0.0)
    o = lax.conv_general_dilated(o, w2, (1, 1), "SAME", dimension_numbers=dn)
    o = o * s2.reshape(1, 1, 1, -1) + b2.reshape(1, 1, 1, -1)
    o = jnp.maximum(o + x, 0.0)
    return jnp.transpose(o, (0, 3, 1, 2))


def init_params(key, inplanes, planes, eps=1e-5):
    """Deterministic parameter construction; BN folded to scale/bias."""
    keys = jax.random.split(key, 10)
    w1 = 0.1 * jax.random.normal(keys[0], (3, 3, inplanes, planes), jnp.float32)
    w2 = 0.1 * jax.random.normal(keys[1], (3, 3, planes, planes), jnp.float32)
    g1 = 1.0 + 0.1 * jax.random.normal(keys[2], (planes,), jnp.float32)
    be1 = 0.1 * jax.random.normal(keys[3], (planes,), jnp.float32)
    m1 = 0.05 * jax.random.normal(keys[4], (planes,), jnp.float32)
    v1 = 1.0 + 0.1 * jax.random.uniform(keys[5], (planes,), jnp.float32)
    g2 = 1.0 + 0.1 * jax.random.normal(keys[6], (planes,), jnp.float32)
    be2 = 0.1 * jax.random.normal(keys[7], (planes,), jnp.float32)
    m2 = 0.05 * jax.random.normal(keys[8], (planes,), jnp.float32)
    v2 = 1.0 + 0.1 * jax.random.uniform(keys[9], (planes,), jnp.float32)

    s1 = (g1 / jnp.sqrt(v1 + eps)).reshape(1, planes)
    b1 = (be1 - m1 * g1 / jnp.sqrt(v1 + eps)).reshape(1, planes)
    s2 = (g2 / jnp.sqrt(v2 + eps)).reshape(1, planes)
    b2 = (be2 - m2 * g2 / jnp.sqrt(v2 + eps)).reshape(1, planes)
    return w1, s1, b1, w2, s2, b2


if __name__ == "__main__":
    key = jax.random.PRNGKey(0)
    kx, kp = jax.random.split(key)

    N, C, H, W = 2, 4, 16, 16          # inplanes = planes = 4, stride = 1
    x = jax.random.normal(kx, (N, C, H, W), jnp.float32)
    w1, s1, b1, w2, s2, b2 = init_params(kp, inplanes=C, planes=C)

    out = basic_block_forward(x, w1, s1, b1, w2, s2, b2)
    out = jax.block_until_ready(out)

    ref = reference_forward(x, w1, s1, b1, w2, s2, b2)
    assert out.shape == (N, C, H, W)
    assert jnp.allclose(out, ref, atol=1e-2, rtol=1e-2), (
        float(jnp.max(jnp.abs(out - ref))))

    print("KERNEL_OK")
</pallas_src>

<mosaic_0001>
module attributes {stable_mosaic.version = 11 : i64} {
  func.func @kernel(%arg0: i32, %arg1: memref<1x16x16x4xf32, #tpu.memory_space<vmem>>, %arg2: memref<36x4xf32, #tpu.memory_space<vmem>>, %arg3: memref<1x4xf32, #tpu.memory_space<vmem>>, %arg4: memref<36x4xf32, #tpu.memory_space<vmem>>, %arg5: memref<1x4xf32, #tpu.memory_space<vmem>>, %arg6: memref<1x16x16x4xf32, #tpu.memory_space<vmem>>, %arg7: memref<19x24x4xf32, #tpu.memory_space<vmem>>, %arg8: memref<19x24x4xf32, #tpu.memory_space<vmem>>) attributes {dimension_semantics = [#tpu.dimension_semantics<parallel>], iteration_bounds = array<i64: 2>, scalar_prefetch = 0 : i64, scratch_operands = 2 : i64, tpu.core_type = #tpu.core_type<tc>, window_params = [{transform_indices = @transform_0, window_bounds = array<i64: 1, 16, 16, 4>}, {pipeline_mode = #tpu.pipeline_mode<synchronous>, transform_indices = @transform_1, window_bounds = array<i64: 36, 4>}, {pipeline_mode = #tpu.pipeline_mode<synchronous>, transform_indices = @transform_2, window_bounds = array<i64: 1, 4>}, {pipeline_mode = #tpu.pipeline_mode<synchronous>, transform_indices = @transform_3, window_bounds = array<i64: 36, 4>}, {pipeline_mode = #tpu.pipeline_mode<synchronous>, transform_indices = @transform_4, window_bounds = array<i64: 1, 4>}, {transform_indices = @transform_5, window_bounds = array<i64: 1, 16, 16, 4>}]} {
    %c0 = arith.constant 0 : index
    %c0_0 = arith.constant 0 : index
    %c0_1 = arith.constant 0 : index
    %c0_2 = arith.constant 0 : index
    %0 = vector.load %arg1[%c0, %c0_0, %c0_1, %c0_2] : memref<1x16x16x4xf32, #tpu.memory_space<vmem>>, vector<1x16x16x4xf32>
    %1 = vector.shape_cast %0 : vector<1x16x16x4xf32> to vector<16x16x4xf32>
    %cst = arith.constant 0.000000e+00 : f32
    %2 = vector.broadcast %cst : f32 to vector<1x24x4xf32>
    %c0_3 = arith.constant 0 : index
    %c0_4 = arith.constant 0 : index
    %c0_5 = arith.constant 0 : index
    %3 = vector.load %arg7[%c0_3, %c0_4, %c0_5] : memref<19x24x4xf32, #tpu.memory_space<vmem>>, vector<1x24x4xf32>
    tpu.vector_store %arg7[%c0_3, %c0_4, %c0_5], %2 {strides = array<i32>} : memref<19x24x4xf32, #tpu.memory_space<vmem>>, vector<1x24x4xf32>,
    %cst_6 = arith.constant 0.000000e+00 : f32
    %4 = vector.broadcast %cst_6 : f32 to vector<2x24x4xf32>
    %c17 = arith.constant 17 : index
    %c0_7 = arith.constant 0 : index
    %c0_8 = arith.constant 0 : index
    %5 = vector.load %arg7[%c17, %c0_7, %c0_8] : memref<19x24x4xf32, #tpu.memory_space<vmem>>, vector<2x24x4xf32>
    tpu.vector_store %arg7[%c17, %c0_7, %c0_8], %4 {strides = array<i32>} : memref<19x24x4xf32, #tpu.memory_space<vmem>>, vector<2x24x4xf32>,
    %cst_9 = arith.constant 0.000000e+00 : f32
    %6 = vector.broadcast %cst_9 : f32 to vector<16x1x4xf32>
    %c1 = arith.constant 1 : index
    %c0_10 = arith.constant 0 : index
    %c0_11 = arith.constant 0 : index
    %7 = vector.load %arg7[%c1, %c0_10, %c0_11] : memref<19x24x4xf32, #tpu.memory_space<vmem>>, vector<16x1x4xf32>
    tpu.vector_store %arg7[%c1, %c0_10, %c0_11], %6 {strides = array<i32>} : memref<19x24x4xf32, #tpu.memory_space<vmem>>, vector<16x1x4xf32>,
    %cst_12 = arith.constant 0.000000e+00 : f32
    %8 = vector.broadcast %cst_12 : f32 to vector<16x7x4xf32>
    %c1_13 = arith.constant 1 : index
    %c17_14 = arith.constant 17 : index
    %c0_15 = arith.constant 0 : index
    %9 = vector.load %arg7[%c1_13, %c17_14, %c0_15] : memref<19x24x4xf32, #tpu.memory_space<vmem>>, vector<16x7x4xf32>
    tpu.vector_store %arg7[%c1_13, %c17_14, %c0_15], %8 {strides = array<i32>} : memref<19x24x4xf32, #tpu.memory_space<vmem>>, vector<16x7x4xf32>,
    %cst_16 = arith.constant 0.000000e+00 : f32
    %10 = vector.broadcast %cst_16 : f32 to vector<1x24x4xf32>
    %c0_17 = arith.constant 0 : index
    %c0_18 = arith.constant 0 : index
    %c0_19 = arith.constant 0 : index
    %11 = vector.load %arg8[%c0_17, %c0_18, %c0_19] : memref<19x24x4xf32, #tpu.memory_space<vmem>>, vector<1x24x4xf32>
    tpu.vector_store %arg8[%c0_17, %c0_18, %c0_19], %10 {strides = array<i32>} : memref<19x24x4xf32, #tpu.memory_space<vmem>>, vector<1x24x4xf32>,
    %cst_20 = arith.constant 0.000000e+00 : f32
    %12 = vector.broadcast %cst_20 : f32 to vector<2x24x4xf32>
    %c17_21 = arith.constant 17 : index
    %c0_22 = arith.constant 0 : index
    %c0_23 = arith.constant 0 : index
    %13 = vector.load %arg8[%c17_21, %c0_22, %c0_23] : memref<19x24x4xf32, #tpu.memory_space<vmem>>, vector<2x24x4xf32>
    tpu.vector_store %arg8[%c17_21, %c0_22, %c0_23], %12 {strides = array<i32>} : memref<19x24x4xf32, #tpu.memory_space<vmem>>, vector<2x24x4xf32>,
    %cst_24 = arith.constant 0.000000e+00 : f32
    %14 = vector.broadcast %cst_24 : f32 to vector<16x1x4xf32>
    %c1_25 = arith.constant 1 : index
    %c0_26 = arith.constant 0 : index
    %c0_27 = arith.constant 0 : index
    %15 = vector.load %arg8[%c1_25, %c0_26, %c0_27] : memref<19x24x4xf32, #tpu.memory_space<vmem>>, vector<16x1x4xf32>
    tpu.vector_store %arg8[%c1_25, %c0_26, %c0_27], %14 {strides = array<i32>} : memref<19x24x4xf32, #tpu.memory_space<vmem>>, vector<16x1x4xf32>,
    %cst_28 = arith.constant 0.000000e+00 : f32
    %16 = vector.broadcast %cst_28 : f32 to vector<16x7x4xf32>
    %c1_29 = arith.constant 1 : index
    %c17_30 = arith.constant 17 : index
    %c0_31 = arith.constant 0 : index
    %17 = vector.load %arg8[%c1_29, %c17_30, %c0_31] : memref<19x24x4xf32, #tpu.memory_space<vmem>>, vector<16x7x4xf32>
    tpu.vector_store %arg8[%c1_29, %c17_30, %c0_31], %16 {strides = array<i32>} : memref<19x24x4xf32, #tpu.memory_space<vmem>>, vector<16x7x4xf32>,
    %c1_32 = arith.constant 1 : index
    %c1_33 = arith.constant 1 : index
    %c0_34 = arith.constant 0 : index
    %18 = vector.load %arg7[%c1_32, %c1_33, %c0_34] : memref<19x24x4xf32, #tpu.memory_space<vmem>>, vector<16x16x4xf32>
    tpu.vector_store %arg7[%c1_32, %c1_33, %c0_34], %1 {strides = array<i32>} : memref<19x24x4xf32, #tpu.memory_space<vmem>>, vector<16x16x4xf32>,
    %c0_35 = arith.constant 0 : index
    %c0_36 = arith.constant 0 : index
    %c0_37 = arith.constant 0 : index
    %19 = vector.load %arg7[%c0_35, %c0_36, %c0_37] : memref<19x24x4xf32, #tpu.memory_space<vmem>>, vector<19x24x4xf32>
    %20 = vector.shape_cast %19 : vector<19x24x4xf32> to vector<456x4xf32>
    %21 = vector.extract_strided_slice %20 {offsets = [0, 0], sizes = [384, 4], strides = [1, 1]} : vector<456x4xf32> to vector<384x4xf32>
    %22 = vector.extract_strided_slice %20 {offsets = [1, 0], sizes = [384, 4], strides = [1, 1]} : vector<456x4xf32> to vector<384x4xf32>
    %23 = vector.extract_strided_slice %20 {offsets = [2, 0], sizes = [384, 4], strides = [1, 1]} : vector<456x4xf32> to vector<384x4xf32>
    %24 = vector.extract_strided_slice %20 {offsets = [24, 0], sizes = [384, 4], strides = [1, 1]} : vector<456x4xf32> to vector<384x4xf32>
    %25 = vector.extract_strided_slice %20 {offsets = [25, 0], sizes = [384, 4], strides = [1, 1]} : vector<456x4xf32> to vector<384x4xf32>
    %26 = vector.extract_strided_slice %20 {offsets = [26, 0], sizes = [384, 4], strides = [1, 1]} : vector<456x4xf32> to vector<384x4xf32>
    %27 = vector.extract_strided_slice %20 {offsets = [48, 0], sizes = [384, 4], strides = [1, 1]} : vector<456x4xf32> to vector<384x4xf32>
    %28 = vector.extract_strided_slice %20 {offsets = [49, 0], sizes = [384, 4], strides = [1, 1]} : vector<456x4xf32> to vector<384x4xf32>
    %29 = vector.extract_strided_slice %20 {offsets = [50, 0], sizes = [384, 4], strides = [1, 1]} : vector<456x4xf32> to vector<384x4xf32>
    %30 = tpu.concatenate %21, %22, %23, %24, %25, %26, %27, %28, %29 in 1 : vector<384x4xf32>, vector<384x4xf32>, vector<384x4xf32>, vector<384x4xf32>, vector<384x4xf32>, vector<384x4xf32>, vector<384x4xf32>, vector<384x4xf32>, vector<384x4xf32> -> vector<384x36xf32>
    %c0_38 = arith.constant 0 : index
    %c0_39 = arith.constant 0 : index
    %31 = vector.load %arg2[%c0_38, %c0_39] : memref<36x4xf32, #tpu.memory_space<vmem>>, vector<36x4xf32>
    %cst_40 = arith.constant dense<0.000000e+00> : vector<384x4xf32>
    %32 = tpu.matmul %30, %31, %cst_40 {dimension_numbers = #tpu.dot_dimension_numbers<[1], [0], [0], [1], [0, 0, 1, 1], [], []>} : vector<384x36xf32>, vector<36x4xf32>, vector<384x4xf32> -> vector<384x4xf32>
    %c0_41 = arith.constant 0 : index
    %c0_42 = arith.constant 0 : index
    %33 = vector.load %arg3[%c0_41, %c0_42] : memref<1x4xf32, #tpu.memory_space<vmem>>, vector<1x4xf32>
    %34 = vector.broadcast %33 : vector<1x4xf32> to vector<384x4xf32>
    %35 = arith.addf %32, %34 : vector<384x4xf32>
    %cst_43 = arith.constant 0.000000e+00 : f32
    %36 = vector.broadcast %cst_43 : f32 to vector<384x4xf32>
    %37 = arith.maximumf %35, %36 : vector<384x4xf32>
    %38 = vector.shape_cast %37 : vector<384x4xf32> to vector<16x24x4xf32>
    %39 = vector.extract_strided_slice %38 {offsets = [0, 0, 0], sizes = [16, 16, 4], strides = [1, 1, 1]} : vector<16x24x4xf32> to vector<16x16x4xf32>
    %c1_44 = arith.constant 1 : index
    %c1_45 = arith.constant 1 : index
    %c0_46 = arith.constant 0 : index
    %40 = vector.load %arg8[%c1_44, %c1_45, %c0_46] : memref<19x24x4xf32, #tpu.memory_space<vmem>>, vector<16x16x4xf32>
    tpu.vector_store %arg8[%c1_44, %c1_45, %c0_46], %39 {strides = array<i32>} : memref<19x24x4xf32, #tpu.memory_space<vmem>>, vector<16x16x4xf32>,
    %c0_47 = arith.constant 0 : index
    %c0_48 = arith.constant 0 : index
    %c0_49 = arith.constant 0 : index
    %41 = vector.load %arg8[%c0_47, %c0_48, %c0_49] : memref<19x24x4xf32, #tpu.memory_space<vmem>>, vector<19x24x4xf32>
    %42 = vector.shape_cast %41 : vector<19x24x4xf32> to vector<456x4xf32>
    %43 = vector.extract_strided_slice %42 {offsets = [0, 0], sizes = [384, 4], strides = [1, 1]} : vector<456x4xf32> to vector<384x4xf32>
    %44 = vector.extract_strided_slice %42 {offsets = [1, 0], sizes = [384, 4], strides = [1, 1]} : vector<456x4xf32> to vector<384x4xf32>
    %45 = vector.extract_strided_slice %42 {offsets = [2, 0], sizes = [384, 4], strides = [1, 1]} : vector<456x4xf32> to vector<384x4xf32>
    %46 = vector.extract_strided_slice %42 {offsets = [24, 0], sizes = [384, 4], strides = [1, 1]} : vector<456x4xf32> to vector<384x4xf32>
    %47 = vector.extract_strided_slice %42 {offsets = [25, 0], sizes = [384, 4], strides = [1, 1]} : vector<456x4xf32> to vector<384x4xf32>
    %48 = vector.extract_strided_slice %42 {offsets = [26, 0], sizes = [384, 4], strides = [1, 1]} : vector<456x4xf32> to vector<384x4xf32>
    %49 = vector.extract_strided_slice %42 {offsets = [48, 0], sizes = [384, 4], strides = [1, 1]} : vector<456x4xf32> to vector<384x4xf32>
    %50 = vector.extract_strided_slice %42 {offsets = [49, 0], sizes = [384, 4], strides = [1, 1]} : vector<456x4xf32> to vector<384x4xf32>
    %51 = vector.extract_strided_slice %42 {offsets = [50, 0], sizes = [384, 4], strides = [1, 1]} : vector<456x4xf32> to vector<384x4xf32>
    %52 = tpu.concatenate %43, %44, %45, %46, %47, %48, %49, %50, %51 in 1 : vector<384x4xf32>, vector<384x4xf32>, vector<384x4xf32>, vector<384x4xf32>, vector<384x4xf32>, vector<384x4xf32>, vector<384x4xf32>, vector<384x4xf32>, vector<384x4xf32> -> vector<384x36xf32>
    %c0_50 = arith.constant 0 : index
    %c0_51 = arith.constant 0 : index
    %53 = vector.load %arg4[%c0_50, %c0_51] : memref<36x4xf32, #tpu.memory_space<vmem>>, vector<36x4xf32>
    %cst_52 = arith.constant dense<0.000000e+00> : vector<384x4xf32>
    %54 = tpu.matmul %52, %53, %cst_52 {dimension_numbers = #tpu.dot_dimension_numbers<[1], [0], [0], [1], [0, 0, 1, 1], [], []>} : vector<384x36xf32>, vector<36x4xf32>, vector<384x4xf32> -> vector<384x4xf32>
    %c0_53 = arith.constant 0 : index
    %c0_54 = arith.constant 0 : index
    %55 = vector.load %arg5[%c0_53, %c0_54] : memref<1x4xf32, #tpu.memory_space<vmem>>, vector<1x4xf32>
    %56 = vector.broadcast %55 : vector<1x4xf32> to vector<384x4xf32>
    %57 = arith.addf %54, %56 : vector<384x4xf32>
    %58 = vector.shape_cast %57 : vector<384x4xf32> to vector<16x24x4xf32>
    %59 = vector.extract_strided_slice %58 {offsets = [0, 0, 0], sizes = [16, 16, 4], strides = [1, 1, 1]} : vector<16x24x4xf32> to vector<16x16x4xf32>
    %60 = arith.addf %59, %1 : vector<16x16x4xf32>
    %cst_55 = arith.constant 0.000000e+00 : f32
    %61 = vector.broadcast %cst_55 : f32 to vector<16x16x4xf32>
    %62 = arith.maximumf %60, %61 : vector<16x16x4xf32>
    %c0_56 = arith.constant 0 : index
    %c0_57 = arith.constant 0 : index
    %c0_58 = arith.constant 0 : index
    %c0_59 = arith.constant 0 : index
    %63 = vector.load %arg6[%c0_56, %c0_57, %c0_58, %c0_59] : memref<1x16x16x4xf32, #tpu.memory_space<vmem>>, vector<1x16x16x4xf32>
    %64 = vector.shape_cast %63 : vector<1x16x16x4xf32> to vector<16x16x4xf32>
    %65 = vector.shape_cast %62 : vector<16x16x4xf32> to vector<1x16x16x4xf32>
    tpu.vector_store %arg6[%c0_56, %c0_57, %c0_58, %c0_59], %65 {strides = array<i32>} : memref<1x16x16x4xf32, #tpu.memory_space<vmem>>, vector<1x16x16x4xf32>,
    return
  }
  func.func @transform_0(%arg0: i32) -> (i32, i32, i32, i32) {
    %c0_i32 = arith.constant 0 : i32
    %c0_i32_0 = arith.constant 0 : i32
    %c0_i32_1 = arith.constant 0 : i32
    %c0_i32_2 = arith.constant 0 : i32
    return %arg0, %c0_i32, %c0_i32_0, %c0_i32_1 : i32, i32, i32, i32
  }
  func.func @transform_1(%arg0: i32) -> (i32, i32) {
    %c0_i32 = arith.constant 0 : i32
    %c0_i32_0 = arith.constant 0 : i32
    %c0_i32_1 = arith.constant 0 : i32
    return %c0_i32, %c0_i32_0 : i32, i32
  }
  func.func @transform_2(%arg0: i32) -> (i32, i32) {
    %c0_i32 = arith.constant 0 : i32
    %c0_i32_0 = arith.constant 0 : i32
    %c0_i32_1 = arith.constant 0 : i32
    return %c0_i32, %c0_i32_0 : i32, i32
  }
  func.func @transform_3(%arg0: i32) -> (i32, i32) {
    %c0_i32 = arith.constant 0 : i32
    %c0_i32_0 = arith.constant 0 : i32
    %c0_i32_1 = arith.constant 0 : i32
    return %c0_i32, %c0_i32_0 : i32, i32
  }
  func.func @transform_4(%arg0: i32) -> (i32, i32) {
    %c0_i32 = arith.constant 0 : i32
    %c0_i32_0 = arith.constant 0 : i32
    %c0_i32_1 = arith.constant 0 : i32
    return %c0_i32, %c0_i32_0 : i32, i32
  }
  func.func @transform_5(%arg0: i32) -> (i32, i32, i32, i32) {
    %c0_i32 = arith.constant 0 : i32
    %c0_i32_0 = arith.constant 0 : i32
    %c0_i32_1 = arith.constant 0 : i32
    %c0_i32_2 = arith.constant 0 : i32
    return %arg0, %c0_i32, %c0_i32_0, %c0_i32_1 : i32, i32, i32, i32
  }
}

</mosaic_0001>

<llo_original>
// kernel: basic_block_forward.1
$region0: #{basic_block_forward.1}
  #allocation0 [shape = 'u32[]', space=smem, size = 0x4, offset = 0x4, fixed_abs, tag = 'smem constant byte address 0x4 - core index']
  #allocation1 [shape = 'u32[144,128]{1,0:T(1,128)}', space=vmem, size = 0x12000, scoped, tag = 'internal scratch']
  #allocation2 [shape = 'f32[19,24,4]{2,1,0:T(8,128)}', space=vmem, size = 0x39000, scoped, tag = 'scratch operand']
  #allocation3 [shape = 'f32[19,24,4]{2,1,0:T(8,128)}', space=vmem, size = 0x39000, scoped, tag = 'scratch operand']
  %s0 = inlined_call_operand.vmem [shape: f32[2,16,16,4], index: 0, kind: input, shape index: {}]
  %s1 = inlined_call_operand.vmem [shape: f32[36,4], index: 1, kind: input, shape index: {}]
  %s2 = inlined_call_operand.vmem [shape: f32[1,4], index: 2, kind: input, shape index: {}]
  %s3 = inlined_call_operand.vmem [shape: f32[36,4], index: 3, kind: input, shape index: {}]
  %s4 = inlined_call_operand.vmem [shape: f32[1,4], index: 4, kind: input, shape index: {}]
  %s5 = inlined_call_operand.vmem [shape: f32[2,16,16,4], index: 5, kind: output, shape index: {}]
  %s6 = sld [smem:[#allocation0]]
  $region53: #{basic_block_forward.1} parent=0
    _
  %s8 = ssub.s32 1, %s6
  %s9 = scalar_select 0, %s8, %s6
  loop: start=0, step=1, limit=4
  $region2: #{basic_block_forward.1} parent=0 // loop_pre_header
    _
  $region3: #{basic_block_forward.1} parent=0 // loop_header
    %s11 = sphi 0, %s15
    %p12 = scmp.ge.s32.totalorder %s11, 4
    %s21 = sphi 0, %s23
    %s24 = sphi 0, %s21
    %s25 = sphi 0, %s24
    %s41 = sphi 0, %s25
    %s45 = sphi 0, %s45
    %s47 = sphi 0, %s45
    %s48 = sphi 0, %s47
    %s62 = sphi 0, %s48
    %s66 = sphi 0, %s66
    %s68 = sphi 0, %s66
    %s69 = sphi 0, %s68
    %s83 = sphi 0, %s69
    %s87 = sphi 0, %s87
    %s89 = sphi 0, %s87
    %s90 = sphi 0, %s89
    %s104 = sphi 0, %s90
    %s108 = sphi 0, %s108
    %s110 = sphi 0, %s108
    %s111 = sphi 0, %s110
    %s125 = sphi 0, %s111
    %s131 = sphi 0, %s133
    %s134 = sphi 0, %s131
    %s135 = sphi 0, %s134
    %s151 = sphi 0, %s135
  $region4: #{basic_block_forward.1} parent=0 // loop_header_branch
    %14 = sbr.rel (%p12) target = $region8
  $region5: #{basic_block_forward.1} parent=0 // loop_body
    %s16 = ssub.s32 %s11, 1
    %s17 = ssub.s32 %s11, 2
    %s18 = sadd.s32 %s11, 1
    %s19 = ssub.s32 %s11, %s18
    %p20 = scmp.eq.s32.totalorder %s19, 0
    %s22 = sadd.s32 %s21, 1
    %s23 = scalar_select %p20, %s21, %s22
    %p26 = pneg %p20
    %p27 = scmp.eq.s32.totalorder %s11, 1
    %p28 = por %p26, %p27
    %p29 = scmp.ne.s32.totalorder %s21, %s24
    %p30 = scmp.eq.s32.totalorder %s11, 0
    %p31 = por %p29, %p30
    %p32 = scmp.ne.s32.totalorder %s21, %s24
    %p33 = scmp.eq.s32.totalorder %s16, 1
    %p34 = por %p32, %p33
    %p35 = scmp.ne.s32.totalorder %s24, %s25
    %p36 = scmp.eq.s32.totalorder %s16, 0
    %p37 = por %p35, %p36
    %p38 = scmp.ne.s32.totalorder %s24, %s25
    %p39 = scmp.eq.s32.totalorder %s17, 1
    %p40 = por %p38, %p39
    %p42 = scmp.ne.s32.totalorder %s25, %s41
    %p43 = scmp.eq.s32.totalorder %s17, 0
    %p44 = por %p42, %p43
    %s46 = sadd.s32 %s45, 1
    %p49 = scmp.eq.s32.totalorder %s11, 1
    %p50 = scmp.ne.s32.totalorder %s45, %s47
    %p51 = scmp.eq.s32.totalorder %s11, 0
    %p52 = por %p50, %p51
    %p53 = scmp.ne.s32.totalorder %s45, %s47
    %p54 = scmp.eq.s32.totalorder %s16, 1
    %p55 = por %p53, %p54
    %p56 = scmp.ne.s32.totalorder %s47, %s48
    %p57 = scmp.eq.s32.totalorder %s16, 0
    %p58 = por %p56, %p57
    %p59 = scmp.ne.s32.totalorder %s47, %s48
    %p60 = scmp.eq.s32.totalorder %s17, 1
    %p61 = por %p59, %p60
    %p63 = scmp.ne.s32.totalorder %s48, %s62
    %p64 = scmp.eq.s32.totalorder %s17, 0
    %p65 = por %p63, %p64
    %s67 = sadd.s32 %s66, 1
    %p70 = scmp.eq.s32.totalorder %s11, 1
    %p71 = scmp.ne.s32.totalorder %s66, %s68
    %p72 = scmp.eq.s32.totalorder %s11, 0
    %p73 = por %p71, %p72
    %p74 = scmp.ne.s32.totalorder %s66, %s68
    %p75 = scmp.eq.s32.totalorder %s16, 1
    %p76 = por %p74, %p75
    %p77 = scmp.ne.s32.totalorder %s68, %s69
    %p78 = scmp.eq.s32.totalorder %s16, 0
    %p79 = por %p77, %p78
    %p80 = scmp.ne.s32.totalorder %s68, %s69
    %p81 = scmp.eq.s32.totalorder %s17, 1
    %p82 = por %p80, %p81
    %p84 = scmp.ne.s32.totalorder %s69, %s83
    %p85 = scmp.eq.s32.totalorder %s17, 0
    %p86 = por %p84, %p85
    %s88 = sadd.s32 %s87, 1
    %p91 = scmp.eq.s32.totalorder %s11, 1
    %p92 = scmp.ne.s32.totalorder %s87, %s89
    %p93 = scmp.eq.s32.totalorder %s11, 0
    %p94 = por %p92, %p93
    %p95 = scmp.ne.s32.totalorder %s87, %s89
    %p96 = scmp.eq.s32.totalorder %s16, 1
    %p97 = por %p95, %p96
    %p98 = scmp.ne.s32.totalorder %s89, %s90
    %p99 = scmp.eq.s32.totalorder %s16, 0
    %p100 = por %p98, %p99
    %p101 = scmp.ne.s32.totalorder %s89, %s90
    %p102 = scmp.eq.s32.totalorder %s17, 1
    %p103 = por %p101, %p102
    %p105 = scmp.ne.s32.totalorder %s90, %s104
    %p106 = scmp.eq.s32.totalorder %s17, 0
    %p107 = por %p105, %p106
    %s109 = sadd.s32 %s108, 1
    %p112 = scmp.eq.s32.totalorder %s11, 1
    %p113 = scmp.ne.s32.totalorder %s108, %s110
    %p114 = scmp.eq.s32.totalorder %s11, 0
    %p115 = por %p113, %p114
    %p116 = scmp.ne.s32.totalorder %s108, %s110
    %p117 = scmp.eq.s32.totalorder %s16, 1
    %p118 = por %p116, %p117
    %p119 = scmp.ne.s32.totalorder %s110, %s111
    %p120 = scmp.eq.s32.totalorder %s16, 0
    %p121 = por %p119, %p120
    %p122 = scmp.ne.s32.totalorder %s110, %s111
    %p123 = scmp.eq.s32.totalorder %s17, 1
    %p124 = por %p122, %p123
    %p126 = scmp.ne.s32.totalorder %s111, %s125
    %p127 = scmp.eq.s32.totalorder %s17, 0
    %p128 = por %p126, %p127
    %s129 = ssub.s32 %s11, %s18
    %p130 = scmp.eq.s32.totalorder %s129, 0
    %s132 = sadd.s32 %s131, 1
    %s133 = scalar_select %p130, %s131, %s132
    %p136 = pneg %p130
    %p137 = scmp.eq.s32.totalorder %s11, 1
    %p138 = por %p136, %p137
    %p139 = scmp.ne.s32.totalorder %s131, %s134
    %p140 = scmp.eq.s32.totalorder %s11, 0
    %p141 = por %p139, %p140
    %p142 = scmp.ne.s32.totalorder %s131, %s134
    %p143 = scmp.eq.s32.totalorder %s16, 1
    %p144 = por %p142, %p143
    %p145 = scmp.ne.s32.totalorder %s134, %s135
    %p146 = scmp.eq.s32.totalorder %s16, 0
    %p147 = por %p145, %p146
    %p148 = scmp.ne.s32.totalorder %s134, %s135
    %p149 = scmp.eq.s32.totalorder %s17, 1
    %p150 = por %p148, %p149
    %p152 = scmp.ne.s32.totalorder %s135, %s151
    %p153 = scmp.eq.s32.totalorder %s17, 0
    %p154 = por %p152, %p153
    %p155 = scmp.le.s32.totalorder 1, %s11
    %p156 = scmp.lt.s32.totalorder %s11, 3
    %p157 = pnand %p155, %p156
    %p158 = pneg %p157
    // Predicated region
    $region9: #{basic_block_forward.1} parent=5 // pred_check
      _
    $region10: #{basic_block_forward.1} parent=5 // pred_check_branch
      %160 = sbr.rel (%p157) target = $region12
    $region11: #{basic_block_forward.1} parent=5 // pred_region
      %s161 = ssub.s32 %s11, 1
      // Predicated region
      $region13: #{basic_block_forward.1} parent=11 // pred_check
        %p162 = pneg %p58
      $region14: #{basic_block_forward.1} parent=11 // pred_check_branch
        %164 = sbr.rel (%p162) target = $region16
      $region15: #{basic_block_forward.1} parent=11 // pred_region
        _
      $region16: #{basic_block_forward.1} parent=11 // pred_fallthru
        _
      // Predicated region
      $region17: #{basic_block_forward.1} parent=11 // pred_check
        %p165 = pneg %p79
      $region18: #{basic_block_forward.1} parent=11 // pred_check_branch
        %167 = sbr.rel (%p165) target = $region20
      $region19: #{basic_block_forward.1} parent=11 // pred_region
        _
      $region20: #{basic_block_forward.1} parent=11 // pred_fallthru
        _
      // Predicated region
      $region21: #{basic_block_forward.1} parent=11 // pred_check
        %p168 = pneg %p100
      $region22: #{basic_block_forward.1} parent=11 // pred_check_branch
        %170 = sbr.rel (%p168) target = $region24
      $region23: #{basic_block_forward.1} parent=11 // pred_region
        _
      $region24: #{basic_block_forward.1} parent=11 // pred_fallthru
        _
      // Predicated region
      $region25: #{basic_block_forward.1} parent=11 // pred_check
        %p171 = pneg %p121
      $region26: #{basic_block_forward.1} parent=11 // pred_check_branch
        %173 = sbr.rel (%p171) target = $region28
      $region27: #{basic_block_forward.1} parent=11 // pred_region
        _
      $region28: #{basic_block_forward.1} parent=11 // pred_fallthru
        _
    $region12: #{basic_block_forward.1} parent=5 // pred_fallthru
      _
    %p174 = scmp.lt.s32.totalorder %s11, 2
    // Predicated region
    $region29: #{basic_block_forward.1} parent=5 // pred_check
      %p175 = pneg %p174
    $region30: #{basic_block_forward.1} parent=5 // pred_check_branch
      %177 = sbr.rel (%p175) target = $region32
    $region31: #{basic_block_forward.1} parent=5 // pred_region
      // Predicated region
      $region33: #{basic_block_forward.1} parent=31 // pred_check
        %p178 = pneg %p31
      $region34: #{basic_block_forward.1} parent=31 // pred_check_branch
        %180 = sbr.rel (%p178) target = $region36
      $region35: #{basic_block_forward.1} parent=31 // pred_region
        %p181 = scmp.lt.s32.totalorder %s11, 1
        %s182 = scalar_select %p181, %s11, 1
        %s183 = smul.addr %s182, 32
        %s184 = smul.addr %s183, 8
        %s185 = scalar_lea.vmem %s0, %s184
      $region36: #{basic_block_forward.1} parent=31 // pred_fallthru
        _
    $region32: #{basic_block_forward.1} parent=5 // pred_fallthru
      _
    %p186 = scmp.le.s32.totalorder 1, %s11
    %p187 = scmp.lt.s32.totalorder %s11, 3
    %p188 = pnand %p186, %p187
    %p189 = pneg %p188
    // Predicated region
    $region37: #{basic_block_forward.1} parent=5 // pred_check
      _
    $region38: #{basic_block_forward.1} parent=5 // pred_check_branch
      %191 = sbr.rel (%p188) target = $region40
    $region39: #{basic_block_forward.1} parent=5 // pred_region
      %s192 = ssub.s32 %s11, 1
      %p193 = scmp.lt.s32.totalorder %s16, 1
      %s194 = scalar_select %p193, %s16, 1
      %s195 = smul.addr %s194, 32
      %s196 = smul.addr %s195, 8
      %s197 = scalar_lea.vmem %s0, %s196
      %p198 = pneg %p37
      %p199 = pneg %p34
      %p200 = pneg %p58
      %p201 = pneg %p55
      %p202 = pneg %p79
      %p203 = pneg %p76
      %p204 = pneg %p100
      %p205 = pneg %p97
      %p206 = pneg %p121
      %p207 = pneg %p118
      %p208 = pneg %p147
      %p209 = pneg %p144
      %p210 = scmp.lt.s32.totalorder %s16, 1
      %s211 = scalar_select %p210, %s16, 1
      %s212 = smul.addr %s211, 32
      %s213 = smul.addr %s212, 8
      %s214 = scalar_lea.vmem %s5, %s213
      %p215 = scmp.lt.s32.totalorder %s16, 1
      %s216 = scalar_select %p215, %s16, 1
      %s217 = smul.addr %s216, 32
      %s218 = smul.addr %s217, 8
      %s219 = scalar_lea.vmem %s0, %s218
      %p220 = scmp.lt.s32.totalorder %s16, 1
      %s221 = scalar_select %p220, %s16, 1
      %s222 = smul.addr %s221, 32
      %s223 = smul.addr %s222, 8
      %s224 = scalar_lea.vmem %s5, %s223
      %v225 = vld [vmem:[%s219] sm:$0xff]
      %v226 = vld [vmem:[%s219 + $0x8] sm:$0xff]
      %v227 = vld [vmem:[%s219 + $0x10] sm:$0xff]
      %v228 = vld [vmem:[%s219 + $0x18] sm:$0xff]
      %v229 = vld [vmem:[%s219 + $0x20] sm:$0xff]
      %v230 = vld [vmem:[%s219 + $0x28] sm:$0xff]
      %v231 = vld [vmem:[%s219 + $0x30] sm:$0xff]
      %v232 = vld [vmem:[%s219 + $0x38] sm:$0xff]
      %v233 = vld [vmem:[%s219 + $0x40] sm:$0xff]
      %v234 = vld [vmem:[%s219 + $0x48] sm:$0xff]
      %v235 = vld [vmem:[%s219 + $0x50] sm:$0xff]
      %v236 = vld [vmem:[%s219 + $0x58] sm:$0xff]
      %v237 = vld [vmem:[%s219 + $0x60] sm:$0xff]
      %v238 = vld [vmem:[%s219 + $0x68] sm:$0xff]
      %v239 = vld [vmem:[%s219 + $0x70] sm:$0xff]
      %v240 = vld [vmem:[%s219 + $0x78] sm:$0xff]
      %v241 = vld [vmem:[%s219 + $0x80] sm:$0xff]
      %v242 = vld [vmem:[%s219 + $0x88] sm:$0xff]
      %v243 = vld [vmem:[%s219 + $0x90] sm:$0xff]
      %v244 = vld [vmem:[%s219 + $0x98] sm:$0xff]
      %v245 = vld [vmem:[%s219 + $0xa0] sm:$0xff]
      %v246 = vld [vmem:[%s219 + $0xa8] sm:$0xff]
      %v247 = vld [vmem:[%s219 + $0xb0] sm:$0xff]
      %v248 = vld [vmem:[%s219 + $0xb8] sm:$0xff]
      %v249 = vld [vmem:[%s219 + $0xc0] sm:$0xff]
      %v250 = vld [vmem:[%s219 + $0xc8] sm:$0xff]
      %v251 = vld [vmem:[%s219 + $0xd0] sm:$0xff]
      %v252 = vld [vmem:[%s219 + $0xd8] sm:$0xff]
      %v253 = vld [vmem:[%s219 + $0xe0] sm:$0xff]
      %v254 = vld [vmem:[%s219 + $0xe8] sm:$0xff]
      %v255 = vld [vmem:[%s219 + $0xf0] sm:$0xff]
      %v256 = vld [vmem:[%s219 + $0xf8] sm:$0xff]
      %vm257 = vcmask 31744
      %258 = vst.msk [vmem:[#allocation2] sm:$0xff] %vm257, 0.0
      %259 = vst.msk [vmem:[#allocation2 + $0x8] sm:$0xff] %vm257, 0.0
      %260 = vst.msk [vmem:[#allocation2 + $0x10] sm:$0xff] %vm257, 0.0
      %s261 = scalar_lea.vmem [#allocation2], 408
      %262 = vst.msk [vmem:[%s261] sm:$0xff] %vm257, 0.0
      %263 = vst.msk [vmem:[%s261 + $0x8] sm:$0xff] %vm257, 0.0
      %264 = vst.msk [vmem:[%s261 + $0x10] sm:$0xff] %vm257, 0.0
      %265 = vst.msk [vmem:[%s261 + $0x18] sm:$0xff] %vm257, 0.0
      %266 = vst.msk [vmem:[%s261 + $0x20] sm:$0xff] %vm257, 0.0
      %267 = vst.msk [vmem:[%s261 + $0x28] sm:$0xff] %vm257, 0.0
      %s268 = scalar_lea.vmem [#allocation2], 24
      %vm269 = vcmask 24576
      %270 = vst.msk [vmem:[%s268] sm:$0x1] %vm269, 0.0
      %271 = vst.msk [vmem:[%s268 + $0x18] sm:$0x1] %vm269, 0.0
      %272 = vst.msk [vmem:[%s268 + $0x30] sm:$0x1] %vm269, 0.0
      %273 = vst.msk [vmem:[%s268 + $0x48] sm:$0x1] %vm269, 0.0
      %274 = vst.msk [vmem:[%s268 + $0x60] sm:$0x1] %vm269, 0.0
      %275 = vst.msk [vmem:[%s268 + $0x78] sm:$0x1] %vm269, 0.0
      %276 = vst.msk [vmem:[%s268 + $0x90] sm:$0x1] %vm269, 0.0
      %277 = vst.msk [vmem:[%s268 + $0xa8] sm:$0x1] %vm269, 0.0
      %278 = vst.msk [vmem:[%s268 + $0xc0] sm:$0x1] %vm269, 0.0
      %279 = vst.msk [vmem:[%s268 + $0xd8] sm:$0x1] %vm269, 0.0
      %280 = vst.msk [vmem:[%s268 + $0xf0] sm:$0x1] %vm269, 0.0
      %281 = vst.msk [vmem:[%s268 + $0x108] sm:$0x1] %vm269, 0.0
      %282 = vst.msk [vmem:[%s268 + $0x120] sm:$0x1] %vm269, 0.0
      %283 = vst.msk [vmem:[%s268 + $0x138] sm:$0x1] %vm269, 0.0
      %284 = vst.msk [vmem:[%s268 + $0x150] sm:$0x1] %vm269, 0.0
      %285 = vst.msk [vmem:[%s268 + $0x168] sm:$0x1] %vm269, 0.0
      %vm286 = vcmask 30720
      %287 = vst.msk [vmem:[%s268 + $0x11] sm:$0x7f] %vm286, 0.0
      %288 = vst.msk [vmem:[%s268 + $0x29] sm:$0x7f] %vm286, 0.0
      %289 = vst.msk [vmem:[%s268 + $0x41] sm:$0x7f] %vm286, 0.0
      %290 = vst.msk [vmem:[%s268 + $0x59] sm:$0x7f] %vm286, 0.0
      %291 = vst.msk [vmem:[%s268 + $0x71] sm:$0x7f] %vm286, 0.0
      %292 = vst.msk [vmem:[%s268 + $0x89] sm:$0x7f] %vm286, 0.0
      %293 = vst.msk [vmem:[%s268 + $0xa1] sm:$0x7f] %vm286, 0.0
      %294 = vst.msk [vmem:[%s268 + $0xb9] sm:$0x7f] %vm286, 0.0
      %295 = vst.msk [vmem:[%s268 + $0xd1] sm:$0x7f] %vm286, 0.0
      %296 = vst.msk [vmem:[%s268 + $0xe9] sm:$0x7f] %vm286, 0.0
      %297 = vst.msk [vmem:[%s268 + $0x101] sm:$0x7f] %vm286, 0.0
      %298 = vst.msk [vmem:[%s268 + $0x119] sm:$0x7f] %vm286, 0.0
      %299 = vst.msk [vmem:[%s268 + $0x131] sm:$0x7f] %vm286, 0.0
      %300 = vst.msk [vmem:[%s268 + $0x149] sm:$0x7f] %vm286, 0.0
      %301 = vst.msk [vmem:[%s268 + $0x161] sm:$0x7f] %vm286, 0.0
      %302 = vst.msk [vmem:[%s268 + $0x179] sm:$0x7f] %vm286, 0.0
      %303 = vst.msk [vmem:[#allocation3] sm:$0xff] %vm257, 0.0
      %304 = vst.msk [vmem:[#allocation3 + $0x8] sm:$0xff] %vm257, 0.0
      %305 = vst.msk [vmem:[#allocation3 + $0x10] sm:$0xff] %vm257, 0.0
      %s306 = scalar_lea.vmem [#allocation3], 408
      %307 = vst.msk [vmem:[%s306] sm:$0xff] %vm257, 0.0
      %308 = vst.msk [vmem:[%s306 + $0x8] sm:$0xff] %vm257, 0.0
      %309 = vst.msk [vmem:[%s306 + $0x10] sm:$0xff] %vm257, 0.0
      %310 = vst.msk [vmem:[%s306 + $0x18] sm:$0xff] %vm257, 0.0
      %311 = vst.msk [vmem:[%s306 + $0x20] sm:$0xff] %vm257, 0.0
      %312 = vst.msk [vmem:[%s306 + $0x28] sm:$0xff] %vm257, 0.0
      %s313 = scalar_lea.vmem [#allocation3], 24
      %314 = vst.msk [vmem:[%s313] sm:$0x1] %vm269, 0.0
      %315 = vst.msk [vmem:[%s313 + $0x18] sm:$0x1] %vm269, 0.0
      %316 = vst.msk [vmem:[%s313 + $0x30] sm:$0x1] %vm269, 0.0
      %317 = vst.msk [vmem:[%s313 + $0x48] sm:$0x1] %vm269, 0.0
      %318 = vst.msk [vmem:[%s313 + $0x60] sm:$0x1] %vm269, 0.0
      %319 = vst.msk [vmem:[%s313 + $0x78] sm:$0x1] %vm269, 0.0
      %320 = vst.msk [vmem:[%s313 + $0x90] sm:$0x1] %vm269, 0.0
      %321 = vst.msk [vmem:[%s313 + $0xa8] sm:$0x1] %vm269, 0.0
      %322 = vst.msk [vmem:[%s313 + $0xc0] sm:$0x1] %vm269, 0.0
      %323 = vst.msk [vmem:[%s313 + $0xd8] sm:$0x1] %vm269, 0.0
      %324 = vst.msk [vmem:[%s313 + $0xf0] sm:$0x1] %vm269, 0.0
      %325 = vst.msk [vmem:[%s313 + $0x108] sm:$0x1] %vm269, 0.0
      %326 = vst.msk [vmem:[%s313 + $0x120] sm:$0x1] %vm269, 0.0
      %327 = vst.msk [vmem:[%s313 + $0x138] sm:$0x1] %vm269, 0.0
      %328 = vst.msk [vmem:[%s313 + $0x150] sm:$0x1] %vm269, 0.0
      %329 = vst.msk [vmem:[%s313 + $0x168] sm:$0x1] %vm269, 0.0
      %330 = vst.msk [vmem:[%s313 + $0x11] sm:$0x7f] %vm286, 0.0
      %331 = vst.msk [vmem:[%s313 + $0x29] sm:$0x7f] %vm286, 0.0
      %332 = vst.msk [vmem:[%s313 + $0x41] sm:$0x7f] %vm286, 0.0
      %333 = vst.msk [vmem:[%s313 + $0x59] sm:$0x7f] %vm286, 0.0
      %334 = vst.msk [vmem:[%s313 + $0x71] sm:$0x7f] %vm286, 0.0
      %335 = vst.msk [vmem:[%s313 + $0x89] sm:$0x7f] %vm286, 0.0
      %336 = vst.msk [vmem:[%s313 + $0xa1] sm:$0x7f] %vm286, 0.0
      %337 = vst.msk [vmem:[%s313 + $0xb9] sm:$0x7f] %vm286, 0.0
      %338 = vst.msk [vmem:[%s313 + $0xd1] sm:$0x7f] %vm286, 0.0
      %339 = vst.msk [vmem:[%s313 + $0xe9] sm:$0x7f] %vm286, 0.0
      %340 = vst.msk [vmem:[%s313 + $0x101] sm:$0x7f] %vm286, 0.0
      %341 = vst.msk [vmem:[%s313 + $0x119] sm:$0x7f] %vm286, 0.0
      %342 = vst.msk [vmem:[%s313 + $0x131] sm:$0x7f] %vm286, 0.0
      %343 = vst.msk [vmem:[%s313 + $0x149] sm:$0x7f] %vm286, 0.0
      %344 = vst.msk [vmem:[%s313 + $0x161] sm:$0x7f] %vm286, 0.0
      %345 = vst.msk [vmem:[%s313 + $0x179] sm:$0x7f] %vm286, 0.0
      %346 = vst.msk [vmem:[%s268 + $0x1] sm:$0xff] %vm257, %v225
      %347 = vst.msk [vmem:[%s268 + $0x9] sm:$0xff] %vm257, %v226
      %348 = vst.msk [vmem:[%s268 + $0x19] sm:$0xff] %vm257, %v227
      %349 = vst.msk [vmem:[%s268 + $0x21] sm:$0xff] %vm257, %v228
      %350 = vst.msk [vmem:[%s268 + $0x31] sm:$0xff] %vm257, %v229
      %351 = vst.msk [vmem:[%s268 + $0x39] sm:$0xff] %vm257, %v230
      %352 = vst.msk [vmem:[%s268 + $0x49] sm:$0xff] %vm257, %v231
      %353 = vst.msk [vmem:[%s268 + $0x51] sm:$0xff] %vm257, %v232
      %354 = vst.msk [vmem:[%s268 + $0x61] sm:$0xff] %vm257, %v233
      %355 = vst.msk [vmem:[%s268 + $0x69] sm:$0xff] %vm257, %v234
      %356 = vst.msk [vmem:[%s268 + $0x79] sm:$0xff] %vm257, %v235
      %357 = vst.msk [vmem:[%s268 + $0x81] sm:$0xff] %vm257, %v236
      %358 = vst.msk [vmem:[%s268 + $0x91] sm:$0xff] %vm257, %v237
      %359 = vst.msk [vmem:[%s268 + $0x99] sm:$0xff] %vm257, %v238
      %360 = vst.msk [vmem:[%s268 + $0xa9] sm:$0xff] %vm257, %v239
      %361 = vst.msk [vmem:[%s268 + $0xb1] sm:$0xff] %vm257, %v240
      %362 = vst.msk [vmem:[%s268 + $0xc1] sm:$0xff] %vm257, %v241
      %363 = vst.msk [vmem:[%s268 + $0xc9] sm:$0xff] %vm257, %v242
      %364 = vst.msk [vmem:[%s268 + $0xd9] sm:$0xff] %vm257, %v243
      %365 = vst.msk [vmem:[%s268 + $0xe1] sm:$0xff] %vm257, %v244
      %366 = vst.msk [vmem:[%s268 + $0xf1] sm:$0xff] %vm257, %v245
      %367 = vst.msk [vmem:[%s268 + $0xf9] sm:$0xff] %vm257, %v246
      %368 = vst.msk [vmem:[%s268 + $0x109] sm:$0xff] %vm257, %v247
      %369 = vst.msk [vmem:[%s268 + $0x111] sm:$0xff] %vm257, %v248
      %370 = vst.msk [vmem:[%s268 + $0x121] sm:$0xff] %vm257, %v249
      %371 = vst.msk [vmem:[%s268 + $0x129] sm:$0xff] %vm257, %v250
      %372 = vst.msk [vmem:[%s268 + $0x139] sm:$0xff] %vm257, %v251
      %373 = vst.msk [vmem:[%s268 + $0x141] sm:$0xff] %vm257, %v252
      %374 = vst.msk [vmem:[%s268 + $0x151] sm:$0xff] %vm257, %v253
      %375 = vst.msk [vmem:[%s268 + $0x159] sm:$0xff] %vm257, %v254
      %376 = vst.msk [vmem:[%s268 + $0x169] sm:$0xff] %vm257, %v255
      %377 = vst.msk [vmem:[%s268 + $0x171] sm:$0xff] %vm257, %v256
      %v378 = vld [vmem:[#allocation2] sm:$0xff]
      %v379 = vld [vmem:[#allocation2 + $0x8] sm:$0xff]
      %v380 = vld [vmem:[#allocation2 + $0x10] sm:$0xff]
      %v381 = vld [vmem:[#allocation2 + $0x18] sm:$0xff]
      %v382 = vld [vmem:[#allocation2 + $0x20] sm:$0xff]
      %v383 = vld [vmem:[#allocation2 + $0x28] sm:$0xff]
      %v384 = vld [vmem:[#allocation2 + $0x30] sm:$0xff]
      %v385 = vld [vmem:[#allocation2 + $0x38] sm:$0xff]
      %v386 = vld [vmem:[#allocation2 + $0x40] sm:$0xff]
      %v387 = vld [vmem:[#allocation2 + $0x48] sm:$0xff]
      %v388 = vld [vmem:[#allocation2 + $0x50] sm:$0xff]
      %v389 = vld [vmem:[#allocation2 + $0x58] sm:$0xff]
      %v390 = vld [vmem:[#allocation2 + $0x60] sm:$0xff]
      %v391 = vld [vmem:[#allocation2 + $0x68] sm:$0xff]
      %v392 = vld [vmem:[#allocation2 + $0x70] sm:$0xff]
      %v393 = vld [vmem:[#allocation2 + $0x78] sm:$0xff]
      %v394 = vld [vmem:[#allocation2 + $0x80] sm:$0xff]
      %v395 = vld [vmem:[#allocation2 + $0x88] sm:$0xff]
      %v396 = vld [vmem:[#allocation2 + $0x90] sm:$0xff]
      %v397 = vld [vmem:[#allocation2 + $0x98] sm:$0xff]
      %v398 = vld [vmem:[#allocation2 + $0xa0] sm:$0xff]
      %v399 = vld [vmem:[#allocation2 + $0xa8] sm:$0xff]
      %v400 = vld [vmem:[#allocation2 + $0xb0] sm:$0xff]
      %v401 = vld [vmem:[#allocation2 + $0xb8] sm:$0xff]
      %v402 = vld [vmem:[#allocation2 + $0xc0] sm:$0xff]
      %v403 = vld [vmem:[#allocation2 + $0xc8] sm:$0xff]
      %v404 = vld [vmem:[#allocation2 + $0xd0] sm:$0xff]
      %v405 = vld [vmem:[#allocation2 + $0xd8] sm:$0xff]
      %v406 = vld [vmem:[#allocation2 + $0xe0] sm:$0xff]
      %v407 = vld [vmem:[#allocation2 + $0xe8] sm:$0xff]
      %v408 = vld [vmem:[#allocation2 + $0xf0] sm:$0xff]
      %v409 = vld [vmem:[#allocation2 + $0xf8] sm:$0xff]
      %v410 = vld [vmem:[#allocation2 + $0x100] sm:$0xff]
      %v411 = vld [vmem:[#allocation2 + $0x108] sm:$0xff]
      %v412 = vld [vmem:[#allocation2 + $0x110] sm:$0xff]
      %v413 = vld [vmem:[#allocation2 + $0x118] sm:$0xff]
      %v414 = vld [vmem:[#allocation2 + $0x120] sm:$0xff]
      %v415 = vld [vmem:[#allocation2 + $0x128] sm:$0xff]
      %v416 = vld [vmem:[#allocation2 + $0x130] sm:$0xff]
      %v417 = vld [vmem:[#allocation2 + $0x138] sm:$0xff]
      %v418 = vld [vmem:[#allocation2 + $0x140] sm:$0xff]
      %v419 = vld [vmem:[#allocation2 + $0x148] sm:$0xff]
      %v420 = vld [vmem:[#allocation2 + $0x150] sm:$0xff]
      %v421 = vld [vmem:[#allocation2 + $0x158] sm:$0xff]
      %v422 = vld [vmem:[#allocation2 + $0x160] sm:$0xff]
      %v423 = vld [vmem:[#allocation2 + $0x168] sm:$0xff]
      %v424 = vld [vmem:[#allocation2 + $0x170] sm:$0xff]
      %v425 = vld [vmem:[#allocation2 + $0x178] sm:$0xff]
      %v426 = vld [vmem:[#allocation2 + $0x180] sm:$0xff]
      %v427 = vld [vmem:[#allocation2 + $0x188] sm:$0xff]
      %v428 = vld [vmem:[#allocation2 + $0x190] sm:$0xff]
      %v429 = vld [vmem:[#allocation2 + $0x198] sm:$0xff]
      %v430 = vld [vmem:[#allocation2 + $0x1a0] sm:$0xff]
      %v431 = vld [vmem:[#allocation2 + $0x1a8] sm:$0xff]
      %v432 = vld [vmem:[#allocation2 + $0x1b0] sm:$0xff]
      %vm482 = vcmask 1046528
      %v483 = vrot.slane %v378, 1
      %v484 = vrot.slane %v379, 1
      %v485 = vsel %vm482, %v483, %v484
      %v486 = vrot.slane %v380, 1
      %v487 = vsel %vm482, %v484, %v486
      %v488 = vrot.slane %v381, 1
      %v489 = vsel %vm482, %v486, %v488
      %v490 = vrot.slane %v382, 1
      %v491 = vsel %vm482, %v488, %v490
      %v492 = vrot.slane %v383, 1
      %v493 = vsel %vm482, %v490, %v492
      %v494 = vrot.slane %v384, 1
      %v495 = vsel %vm482, %v492, %v494
      %v496 = vrot.slane %v385, 1
      %v497 = vsel %vm482, %v494, %v496
      %v498 = vrot.slane %v386, 1
      %v499 = vsel %vm482, %v496, %v498
      %v500 = vrot.slane %v387, 1
      %v501 = vsel %vm482, %v498, %v500
      %v502 = vrot.slane %v388, 1
      %v503 = vsel %vm482, %v500, %v502
      %v504 = vrot.slane %v389, 1
      %v505 = vsel %vm482, %v502, %v504
      %v506 = vrot.slane %v390, 1
      %v507 = vsel %vm482, %v504, %v506
      %v508 = vrot.slane %v391, 1
      %v509 = vsel %vm482, %v506, %v508
      %v510 = vrot.slane %v392, 1
      %v511 = vsel %vm482, %v508, %v510
      %v512 = vrot.slane %v393, 1
      %v513 = vsel %vm482, %v510, %v512
      %v514 = vrot.slane %v394, 1
      %v515 = vsel %vm482, %v512, %v514
      %v516 = vrot.slane %v395, 1
      %v517 = vsel %vm482, %v514, %v516
      %v518 = vrot.slane %v396, 1
      %v519 = vsel %vm482, %v516, %v518
      %v520 = vrot.slane %v397, 1
      %v521 = vsel %vm482, %v518, %v520
      %v522 = vrot.slane %v398, 1
      %v523 = vsel %vm482, %v520, %v522
      %v524 = vrot.slane %v399, 1
      %v525 = vsel %vm482, %v522, %v524
      %v526 = vrot.slane %v400, 1
      %v527 = vsel %vm482, %v524, %v526
      %v528 = vrot.slane %v401, 1
      %v529 = vsel %vm482, %v526, %v528
      %v530 = vrot.slane %v402, 1
      %v531 = vsel %vm482, %v528, %v530
      %v532 = vrot.slane %v403, 1
      %v533 = vsel %vm482, %v530, %v532
      %v534 = vrot.slane %v404, 1
      %v535 = vsel %vm482, %v532, %v534
      %v536 = vrot.slane %v405, 1
      %v537 = vsel %vm482, %v534, %v536
      %v538 = vrot.slane %v406, 1
      %v539 = vsel %vm482, %v536, %v538
      %v540 = vrot.slane %v407, 1
      %v541 = vsel %vm482, %v538, %v540
      %v542 = vrot.slane %v408, 1
      %v543 = vsel %vm482, %v540, %v542
      %v544 = vrot.slane %v409, 1
      %v545 = vsel %vm482, %v542, %v544
      %v546 = vrot.slane %v410, 1
      %v547 = vsel %vm482, %v544, %v546
      %v548 = vrot.slane %v411, 1
      %v549 = vsel %vm482, %v546, %v548
      %v550 = vrot.slane %v412, 1
      %v551 = vsel %vm482, %v548, %v550
      %v552 = vrot.slane %v413, 1
      %v553 = vsel %vm482, %v550, %v552
      %v554 = vrot.slane %v414, 1
      %v555 = vsel %vm482, %v552, %v554
      %v556 = vrot.slane %v415, 1
      %v557 = vsel %vm482, %v554, %v556
      %v558 = vrot.slane %v416, 1
      %v559 = vsel %vm482, %v556, %v558
      %v560 = vrot.slane %v417, 1
      %v561 = vsel %vm482, %v558, %v560
      %v562 = vrot.slane %v418, 1
      %v563 = vsel %vm482, %v560, %v562
      %v564 = vrot.slane %v419, 1
      %v565 = vsel %vm482, %v562, %v564
      %v566 = vrot.slane %v420, 1
      %v567 = vsel %vm482, %v564, %v566
      %v568 = vrot.slane %v421, 1
      %v569 = vsel %vm482, %v566, %v568
      %v570 = vrot.slane %v422, 1
      %v571 = vsel %vm482, %v568, %v570
      %v572 = vrot.slane %v423, 1
      %v573 = vsel %vm482, %v570, %v572
      %v574 = vrot.slane %v424, 1
      %v575 = vsel %vm482, %v572, %v574
      %v576 = vrot.slane %v425, 1
      %v577 = vsel %vm482, %v574, %v576
      %v578 = vrot.slane %v426, 1
      %v579 = vsel %vm482, %v576, %v578
      %580 = vrot.lane.b32.xlu0 %v485, 4
      %v581 = vpop.permute.xlu0 %580
      %582 = vrot.lane.b32.xlu0 %v487, 4
      %v583 = vpop.permute.xlu0 %582
      %584 = vrot.lane.b32.xlu0 %v489, 4
      %v585 = vpop.permute.xlu0 %584
      %586 = vrot.lane.b32.xlu0 %v491, 4
      %v587 = vpop.permute.xlu0 %586
      %588 = vrot.lane.b32.xlu0 %v493, 4
      %v589 = vpop.permute.xlu0 %588
      %590 = vrot.lane.b32.xlu0 %v495, 4
      %v591 = vpop.permute.xlu0 %590
      %592 = vrot.lane.b32.xlu0 %v497, 4
      %v593 = vpop.permute.xlu0 %592
      %594 = vrot.lane.b32.xlu0 %v499, 4
      %v595 = vpop.permute.xlu0 %594
      %596 = vrot.lane.b32.xlu0 %v501, 4
      %v597 = vpop.permute.xlu0 %596
      %598 = vrot.lane.b32.xlu0 %v503, 4
      %v599 = vpop.permute.xlu0 %598
      %600 = vrot.lane.b32.xlu0 %v505, 4
      %v601 = vpop.permute.xlu0 %600
      %602 = vrot.lane.b32.xlu0 %v507, 4
      %v603 = vpop.permute.xlu0 %602
      %604 = vrot.lane.b32.xlu0 %v509, 4
      %v605 = vpop.permute.xlu0 %604
      %606 = vrot.lane.b32.xlu0 %v511, 4
      %v607 = vpop.permute.xlu0 %606
      %608 = vrot.lane.b32.xlu0 %v513, 4
      %v609 = vpop.permute.xlu0 %608
      %610 = vrot.lane.b32.xlu0 %v515, 4
      %v611 = vpop.permute.xlu0 %610
      %612 = vrot.lane.b32.xlu0 %v517, 4
      %v613 = vpop.permute.xlu0 %612
      %614 = vrot.lane.b32.xlu0 %v519, 4
      %v615 = vpop.permute.xlu0 %614
      %616 = vrot.lane.b32.xlu0 %v521, 4
      %v617 = vpop.permute.xlu0 %616
      %618 = vrot.lane.b32.xlu0 %v523, 4
      %v619 = vpop.permute.xlu0 %618
      %620 = vrot.lane.b32.xlu0 %v525, 4
      %v621 = vpop.permute.xlu0 %620
      %622 = vrot.lane.b32.xlu0 %v527, 4
      %v623 = vpop.permute.xlu0 %622
      %624 = vrot.lane.b32.xlu0 %v529, 4
      %v625 = vpop.permute.xlu0 %624
      %626 = vrot.lane.b32.xlu0 %v531, 4
      %v627 = vpop.permute.xlu0 %626
      %628 = vrot.lane.b32.xlu0 %v533, 4
      %v629 = vpop.permute.xlu0 %628
      %630 = vrot.lane.b32.xlu0 %v535, 4
      %v631 = vpop.permute.xlu0 %630
      %632 = vrot.lane.b32.xlu0 %v537, 4
      %v633 = vpop.permute.xlu0 %632
      %634 = vrot.lane.b32.xlu0 %v539, 4
      %v635 = vpop.permute.xlu0 %634
      %636 = vrot.lane.b32.xlu0 %v541, 4
      %v637 = vpop.permute.xlu0 %636
      %638 = vrot.lane.b32.xlu0 %v543, 4
      %v639 = vpop.permute.xlu0 %638
      %640 = vrot.lane.b32.xlu0 %v545, 4
      %v641 = vpop.permute.xlu0 %640
      %642 = vrot.lane.b32.xlu0 %v547, 4
      %v643 = vpop.permute.xlu0 %642
      %644 = vrot.lane.b32.xlu0 %v549, 4
      %v645 = vpop.permute.xlu0 %644
      %646 = vrot.lane.b32.xlu0 %v551, 4
      %v647 = vpop.permute.xlu0 %646
      %648 = vrot.lane.b32.xlu0 %v553, 4
      %v649 = vpop.permute.xlu0 %648
      %650 = vrot.lane.b32.xlu0 %v555, 4
      %v651 = vpop.permute.xlu0 %650
      %652 = vrot.lane.b32.xlu0 %v557, 4
      %v653 = vpop.permute.xlu0 %652
      %654 = vrot.lane.b32.xlu0 %v559, 4
      %v655 = vpop.permute.xlu0 %654
      %656 = vrot.lane.b32.xlu0 %v561, 4
      %v657 = vpop.permute.xlu0 %656
      %658 = vrot.lane.b32.xlu0 %v563, 4
      %v659 = vpop.permute.xlu0 %658
      %660 = vrot.lane.b32.xlu0 %v565, 4
      %v661 = vpop.permute.xlu0 %660
      %662 = vrot.lane.b32.xlu0 %v567, 4
      %v663 = vpop.permute.xlu0 %662
      %664 = vrot.lane.b32.xlu0 %v569, 4
      %v665 = vpop.permute.xlu0 %664
      %666 = vrot.lane.b32.xlu0 %v571, 4
      %v667 = vpop.permute.xlu0 %666
      %668 = vrot.lane.b32.xlu0 %v573, 4
      %v669 = vpop.permute.xlu0 %668
      %670 = vrot.lane.b32.xlu0 %v575, 4
      %v671 = vpop.permute.xlu0 %670
      %672 = vrot.lane.b32.xlu0 %v577, 4
      %v673 = vpop.permute.xlu0 %672
      %674 = vrot.lane.b32.xlu0 %v579, 4
      %v675 = vpop.permute.xlu0 %674
      %vm724 = vcmask 1045504
      %v725 = vrot.slane %v378, 2
      %v726 = vrot.slane %v379, 2
      %v727 = vsel %vm724, %v725, %v726
      %v728 = vrot.slane %v380, 2
      %v729 = vsel %vm724, %v726, %v728
      %v730 = vrot.slane %v381, 2
      %v731 = vsel %vm724, %v728, %v730
      %v732 = vrot.slane %v382, 2
      %v733 = vsel %vm724, %v730, %v732
      %v734 = vrot.slane %v383, 2
      %v735 = vsel %vm724, %v732, %v734
      %v736 = vrot.slane %v384, 2
      %v737 = vsel %vm724, %v734, %v736
      %v738 = vrot.slane %v385, 2
      %v739 = vsel %vm724, %v736, %v738
      %v740 = vrot.slane %v386, 2
      %v741 = vsel %vm724, %v738, %v740
      %v742 = vrot.slane %v387, 2
      %v743 = vsel %vm724, %v740, %v742
      %v744 = vrot.slane %v388, 2
      %v745 = vsel %vm724, %v742, %v744
      %v746 = vrot.slane %v389, 2
      %v747 = vsel %vm724, %v744, %v746
      %v748 = vrot.slane %v390, 2
      %v749 = vsel %vm724, %v746, %v748
      %v750 = vrot.slane %v391, 2
      %v751 = vsel %vm724, %v748, %v750
      %v752 = vrot.slane %v392, 2
      %v753 = vsel %vm724, %v750, %v752
      %v754 = vrot.slane %v393, 2
      %v755 = vsel %vm724, %v752, %v754
      %v756 = vrot.slane %v394, 2
      %v757 = vsel %vm724, %v754, %v756
      %v758 = vrot.slane %v395, 2
      %v759 = vsel %vm724, %v756, %v758
      %v760 = vrot.slane %v396, 2
      %v761 = vsel %vm724, %v758, %v760
      %v762 = vrot.slane %v397, 2
      %v763 = vsel %vm724, %v760, %v762
      %v764 = vrot.slane %v398, 2
      %v765 = vsel %vm724, %v762, %v764
      %v766 = vrot.slane %v399, 2
      %v767 = vsel %vm724, %v764, %v766
      %v768 = vrot.slane %v400, 2
      %v769 = vsel %vm724, %v766, %v768
      %v770 = vrot.slane %v401, 2
      %v771 = vsel %vm724, %v768, %v770
      %v772 = vrot.slane %v402, 2
      %v773 = vsel %vm724, %v770, %v772
      %v774 = vrot.slane %v403, 2
      %v775 = vsel %vm724, %v772, %v774
      %v776 = vrot.slane %v404, 2
      %v777 = vsel %vm724, %v774, %v776
      %v778 = vrot.slane %v405, 2
      %v779 = vsel %vm724, %v776, %v778
      %v780 = vrot.slane %v406, 2
      %v781 = vsel %vm724, %v778, %v780
      %v782 = vrot.slane %v407, 2
      %v783 = vsel %vm724, %v780, %v782
      %v784 = vrot.slane %v408, 2
      %v785 = vsel %vm724, %v782, %v784
      %v786 = vrot.slane %v409, 2
      %v787 = vsel %vm724, %v784, %v786
      %v788 = vrot.slane %v410, 2
      %v789 = vsel %vm724, %v786, %v788
      %v790 = vrot.slane %v411, 2
      %v791 = vsel %vm724, %v788, %v790
      %v792 = vrot.slane %v412, 2
      %v793 = vsel %vm724, %v790, %v792
      %v794 = vrot.slane %v413, 2
      %v795 = vsel %vm724, %v792, %v794
      %v796 = vrot.slane %v414, 2
      %v797 = vsel %vm724, %v794, %v796
      %v798 = vrot.slane %v415, 2
      %v799 = vsel %vm724, %v796, %v798
      %v800 = vrot.slane %v416, 2
      %v801 = vsel %vm724, %v798, %v800
      %v802 = vrot.slane %v417, 2
      %v803 = vsel %vm724, %v800, %v802
      %v804 = vrot.slane %v418, 2
      %v805 = vsel %vm724, %v802, %v804
      %v806 = vrot.slane %v419, 2
      %v807 = vsel %vm724, %v804, %v806
      %v808 = vrot.slane %v420, 2
      %v809 = vsel %vm724, %v806, %v808
      %v810 = vrot.slane %v421, 2
      %v811 = vsel %vm724, %v808, %v810
      %v812 = vrot.slane %v422, 2
      %v813 = vsel %vm724, %v810, %v812
      %v814 = vrot.slane %v423, 2
      %v815 = vsel %vm724, %v812, %v814
      %v816 = vrot.slane %v424, 2
      %v817 = vsel %vm724, %v814, %v816
      %v818 = vrot.slane %v425, 2
      %v819 = vsel %vm724, %v816, %v818
      %v820 = vrot.slane %v426, 2
      %v821 = vsel %vm724, %v818, %v820
      %822 = vrot.lane.b32.xlu0 %v727, 8
      %v823 = vpop.permute.xlu0 %822
      %824 = vrot.lane.b32.xlu0 %v729, 8
      %v825 = vpop.permute.xlu0 %824
      %826 = vrot.lane.b32.xlu0 %v731, 8
      %v827 = vpop.permute.xlu0 %826
      %828 = vrot.lane.b32.xlu0 %v733, 8
      %v829 = vpop.permute.xlu0 %828
      %830 = vrot.lane.b32.xlu0 %v735, 8
      %v831 = vpop.permute.xlu0 %830
      %832 = vrot.lane.b32.xlu0 %v737, 8
      %v833 = vpop.permute.xlu0 %832
      %834 = vrot.lane.b32.xlu0 %v739, 8
      %v835 = vpop.permute.xlu0 %834
      %836 = vrot.lane.b32.xlu0 %v741, 8
      %v837 = vpop.permute.xlu0 %836
      %838 = vrot.lane.b32.xlu0 %v743, 8
      %v839 = vpop.permute.xlu0 %838
      %840 = vrot.lane.b32.xlu0 %v745, 8
      %v841 = vpop.permute.xlu0 %840
      %842 = vrot.lane.b32.xlu0 %v747, 8
      %v843 = vpop.permute.xlu0 %842
      %844 = vrot.lane.b32.xlu0 %v749, 8
      %v845 = vpop.permute.xlu0 %844
      %846 = vrot.lane.b32.xlu0 %v751, 8
      %v847 = vpop.permute.xlu0 %846
      %848 = vrot.lane.b32.xlu0 %v753, 8
      %v849 = vpop.permute.xlu0 %848
      %850 = vrot.lane.b32.xlu0 %v755, 8
      %v851 = vpop.permute.xlu0 %850
      %852 = vrot.lane.b32.xlu0 %v757, 8
      %v853 = vpop.permute.xlu0 %852
      %854 = vrot.lane.b32.xlu0 %v759, 8
      %v855 = vpop.permute.xlu0 %854
      %856 = vrot.lane.b32.xlu0 %v761, 8
      %v857 = vpop.permute.xlu0 %856
      %858 = vrot.lane.b32.xlu0 %v763, 8
      %v859 = vpop.permute.xlu0 %858
      %860 = vrot.lane.b32.xlu0 %v765, 8
      %v861 = vpop.permute.xlu0 %860
      %862 = vrot.lane.b32.xlu0 %v767, 8
      %v863 = vpop.permute.xlu0 %862
      %864 = vrot.lane.b32.xlu0 %v769, 8
      %v865 = vpop.permute.xlu0 %864
      %866 = vrot.lane.b32.xlu0 %v771, 8
      %v867 = vpop.permute.xlu0 %866
      %868 = vrot.lane.b32.xlu0 %v773, 8
      %v869 = vpop.permute.xlu0 %868
      %870 = vrot.lane.b32.xlu0 %v775, 8
      %v871 = vpop.permute.xlu0 %870
      %872 = vrot.lane.b32.xlu0 %v777, 8
      %v873 = vpop.permute.xlu0 %872
      %874 = vrot.lane.b32.xlu0 %v779, 8
      %v875 = vpop.permute.xlu0 %874
      %876 = vrot.lane.b32.xlu0 %v781, 8
      %v877 = vpop.permute.xlu0 %876
      %878 = vrot.lane.b32.xlu0 %v783, 8
      %v879 = vpop.permute.xlu0 %878
      %880 = vrot.lane.b32.xlu0 %v785, 8
      %v881 = vpop.permute.xlu0 %880
      %882 = vrot.lane.b32.xlu0 %v787, 8
      %v883 = vpop.permute.xlu0 %882
      %884 = vrot.lane.b32.xlu0 %v789, 8
      %v885 = vpop.permute.xlu0 %884
      %886 = vrot.lane.b32.xlu0 %v791, 8
      %v887 = vpop.permute.xlu0 %886
      %888 = vrot.lane.b32.xlu0 %v793, 8
      %v889 = vpop.permute.xlu0 %888
      %890 = vrot.lane.b32.xlu0 %v795, 8
      %v891 = vpop.permute.xlu0 %890
      %892 = vrot.lane.b32.xlu0 %v797, 8
      %v893 = vpop.permute.xlu0 %892
      %894 = vrot.lane.b32.xlu0 %v799, 8
      %v895 = vpop.permute.xlu0 %894
      %896 = vrot.lane.b32.xlu0 %v801, 8
      %v897 = vpop.permute.xlu0 %896
      %898 = vrot.lane.b32.xlu0 %v803, 8
      %v899 = vpop.permute.xlu0 %898
      %900 = vrot.lane.b32.xlu0 %v805, 8
      %v901 = vpop.permute.xlu0 %900
      %902 = vrot.lane.b32.xlu0 %v807, 8
      %v903 = vpop.permute.xlu0 %902
      %904 = vrot.lane.b32.xlu0 %v809, 8
      %v905 = vpop.permute.xlu0 %904
      %906 = vrot.lane.b32.xlu0 %v811, 8
      %v907 = vpop.permute.xlu0 %906
      %908 = vrot.lane.b32.xlu0 %v813, 8
      %v909 = vpop.permute.xlu0 %908
      %910 = vrot.lane.b32.xlu0 %v815, 8
      %v911 = vpop.permute.xlu0 %910
      %912 = vrot.lane.b32.xlu0 %v817, 8
      %v913 = vpop.permute.xlu0 %912
      %914 = vrot.lane.b32.xlu0 %v819, 8
      %v915 = vpop.permute.xlu0 %914
      %916 = vrot.lane.b32.xlu0 %v821, 8
      %v917 = vpop.permute.xlu0 %916
      %968 = vrot.lane.b32.xlu0 %v381, 12
      %v969 = vpop.permute.xlu0 %968
      %970 = vrot.lane.b32.xlu0 %v382, 12
      %v971 = vpop.permute.xlu0 %970
      %972 = vrot.lane.b32.xlu0 %v383, 12
      %v973 = vpop.permute.xlu0 %972
      %974 = vrot.lane.b32.xlu0 %v384, 12
      %v975 = vpop.permute.xlu0 %974
      %976 = vrot.lane.b32.xlu0 %v385, 12
      %v977 = vpop.permute.xlu0 %976
      %978 = vrot.lane.b32.xlu0 %v386, 12
      %v979 = vpop.permute.xlu0 %978
      %980 = vrot.lane.b32.xlu0 %v387, 12
      %v981 = vpop.permute.xlu0 %980
      %982 = vrot.lane.b32.xlu0 %v388, 12
      %v983 = vpop.permute.xlu0 %982
      %984 = vrot.lane.b32.xlu0 %v389, 12
      %v985 = vpop.permute.xlu0 %984
      %986 = vrot.lane.b32.xlu0 %v390, 12
      %v987 = vpop.permute.xlu0 %986
      %988 = vrot.lane.b32.xlu0 %v391, 12
      %v989 = vpop.permute.xlu0 %988
      %990 = vrot.lane.b32.xlu0 %v392, 12
      %v991 = vpop.permute.xlu0 %990
      %992 = vrot.lane.b32.xlu0 %v393, 12
      %v993 = vpop.permute.xlu0 %992
      %994 = vrot.lane.b32.xlu0 %v394, 12
      %v995 = vpop.permute.xlu0 %994
      %996 = vrot.lane.b32.xlu0 %v395, 12
      %v997 = vpop.permute.xlu0 %996
      %998 = vrot.lane.b32.xlu0 %v396, 12
      %v999 = vpop.permute.xlu0 %998
      %1000 = vrot.lane.b32.xlu0 %v397, 12
      %v1001 = vpop.permute.xlu0 %1000
      %1002 = vrot.lane.b32.xlu0 %v398, 12
      %v1003 = vpop.permute.xlu0 %1002
      %1004 = vrot.lane.b32.xlu0 %v399, 12
      %v1005 = vpop.permute.xlu0 %1004
      %1006 = vrot.lane.b32.xlu0 %v400, 12
      %v1007 = vpop.permute.xlu0 %1006
      %1008 = vrot.lane.b32.xlu0 %v401, 12
      %v1009 = vpop.permute.xlu0 %1008
      %1010 = vrot.lane.b32.xlu0 %v402, 12
      %v1011 = vpop.permute.xlu0 %1010
      %1012 = vrot.lane.b32.xlu0 %v403, 12
      %v1013 = vpop.permute.xlu0 %1012
      %1014 = vrot.lane.b32.xlu0 %v404, 12
      %v1015 = vpop.permute.xlu0 %1014
      %1016 = vrot.lane.b32.xlu0 %v405, 12
      %v1017 = vpop.permute.xlu0 %1016
      %1018 = vrot.lane.b32.xlu0 %v406, 12
      %v1019 = vpop.permute.xlu0 %1018
      %1020 = vrot.lane.b32.xlu0 %v407, 12
      %v1021 = vpop.permute.xlu0 %1020
      %1022 = vrot.lane.b32.xlu0 %v408, 12
      %v1023 = vpop.permute.xlu0 %1022
      %1024 = vrot.lane.b32.xlu0 %v409, 12
      %v1025 = vpop.permute.xlu0 %1024
      %1026 = vrot.lane.b32.xlu0 %v410, 12
      %v1027 = vpop.permute.xlu0 %1026
      %1028 = vrot.lane.b32.xlu0 %v411, 12
      %v1029 = vpop.permute.xlu0 %1028
      %1030 = vrot.lane.b32.xlu0 %v412, 12
      %v1031 = vpop.permute.xlu0 %1030
      %1032 = vrot.lane.b32.xlu0 %v413, 12
      %v1033 = vpop.permute.xlu0 %1032
      %1034 = vrot.lane.b32.xlu0 %v414, 12
      %v1035 = vpop.permute.xlu0 %1034
      %1036 = vrot.lane.b32.xlu0 %v415, 12
      %v1037 = vpop.permute.xlu0 %1036
      %1038 = vrot.lane.b32.xlu0 %v416, 12
      %v1039 = vpop.permute.xlu0 %1038
      %1040 = vrot.lane.b32.xlu0 %v417, 12
      %v1041 = vpop.permute.xlu0 %1040
      %1042 = vrot.lane.b32.xlu0 %v418, 12
      %v1043 = vpop.permute.xlu0 %1042
      %1044 = vrot.lane.b32.xlu0 %v419, 12
      %v1045 = vpop.permute.xlu0 %1044
      %1046 = vrot.lane.b32.xlu0 %v420, 12
      %v1047 = vpop.permute.xlu0 %1046
      %1048 = vrot.lane.b32.xlu0 %v421, 12
      %v1049 = vpop.permute.xlu0 %1048
      %1050 = vrot.lane.b32.xlu0 %v422, 12
      %v1051 = vpop.permute.xlu0 %1050
      %1052 = vrot.lane.b32.xlu0 %v423, 12
      %v1053 = vpop.permute.xlu0 %1052
      %1054 = vrot.lane.b32.xlu0 %v424, 12
      %v1055 = vpop.permute.xlu0 %1054
      %1056 = vrot.lane.b32.xlu0 %v425, 12
      %v1057 = vpop.permute.xlu0 %1056
      %1058 = vrot.lane.b32.xlu0 %v426, 12
      %v1059 = vpop.permute.xlu0 %1058
      %1060 = vrot.lane.b32.xlu0 %v427, 12
      %v1061 = vpop.permute.xlu0 %1060
      %1062 = vrot.lane.b32.xlu0 %v428, 12
      %v1063 = vpop.permute.xlu0 %1062
      %v1113 = vrot.slane %v427, 1
      %v1114 = vsel %vm482, %v578, %v1113
      %v1115 = vrot.slane %v428, 1
      %v1116 = vsel %vm482, %v1113, %v1115
      %v1117 = vrot.slane %v429, 1
      %v1118 = vsel %vm482, %v1115, %v1117
      %1119 = vrot.lane.b32.xlu0 %v491, 16
      %v1120 = vpop.permute.xlu0 %1119
      %1121 = vrot.lane.b32.xlu0 %v493, 16
      %v1122 = vpop.permute.xlu0 %1121
      %1123 = vrot.lane.b32.xlu0 %v495, 16
      %v1124 = vpop.permute.xlu0 %1123
      %1125 = vrot.lane.b32.xlu0 %v497, 16
      %v1126 = vpop.permute.xlu0 %1125
      %1127 = vrot.lane.b32.xlu0 %v499, 16
      %v1128 = vpop.permute.xlu0 %1127
      %1129 = vrot.lane.b32.xlu0 %v501, 16
      %v1130 = vpop.permute.xlu0 %1129
      %1131 = vrot.lane.b32.xlu0 %v503, 16
      %v1132 = vpop.permute.xlu0 %1131
      %1133 = vrot.lane.b32.xlu0 %v505, 16
      %v1134 = vpop.permute.xlu0 %1133
      %1135 = vrot.lane.b32.xlu0 %v507, 16
      %v1136 = vpop.permute.xlu0 %1135
      %1137 = vrot.lane.b32.xlu0 %v509, 16
      %v1138 = vpop.permute.xlu0 %1137
      %1139 = vrot.lane.b32.xlu0 %v511, 16
      %v1140 = vpop.permute.xlu0 %1139
      %1141 = vrot.lane.b32.xlu0 %v513, 16
      %v1142 = vpop.permute.xlu0 %1141
      %1143 = vrot.lane.b32.xlu0 %v515, 16
      %v1144 = vpop.permute.xlu0 %1143
      %1145 = vrot.lane.b32.xlu0 %v517, 16
      %v1146 = vpop.permute.xlu0 %1145
      %1147 = vrot.lane.b32.xlu0 %v519, 16
      %v1148 = vpop.permute.xlu0 %1147
      %1149 = vrot.lane.b32.xlu0 %v521, 16
      %v1150 = vpop.permute.xlu0 %1149
      %1151 = vrot.lane.b32.xlu0 %v523, 16
      %v1152 = vpop.permute.xlu0 %1151
      %1153 = vrot.lane.b32.xlu0 %v525, 16
      %v1154 = vpop.permute.xlu0 %1153
      %1155 = vrot.lane.b32.xlu0 %v527, 16
      %v1156 = vpop.permute.xlu0 %1155
      %1157 = vrot.lane.b32.xlu0 %v529, 16
      %v1158 = vpop.permute.xlu0 %1157
      %1159 = vrot.lane.b32.xlu0 %v531, 16
      %v1160 = vpop.permute.xlu0 %1159
      %1161 = vrot.lane.b32.xlu0 %v533, 16
      %v1162 = vpop.permute.xlu0 %1161
      %1163 = vrot.lane.b32.xlu0 %v535, 16
      %v1164 = vpop.permute.xlu0 %1163
      %1165 = vrot.lane.b32.xlu0 %v537, 16
      %v1166 = vpop.permute.xlu0 %1165
      %1167 = vrot.lane.b32.xlu0 %v539, 16
      %v1168 = vpop.permute.xlu0 %1167
      %1169 = vrot.lane.b32.xlu0 %v541, 16
      %v1170 = vpop.permute.xlu0 %1169
      %1171 = vrot.lane.b32.xlu0 %v543, 16
      %v1172 = vpop.permute.xlu0 %1171
      %1173 = vrot.lane.b32.xlu0 %v545, 16
      %v1174 = vpop.permute.xlu0 %1173
      %1175 = vrot.lane.b32.xlu0 %v547, 16
      %v1176 = vpop.permute.xlu0 %1175
      %1177 = vrot.lane.b32.xlu0 %v549, 16
      %v1178 = vpop.permute.xlu0 %1177
      %1179 = vrot.lane.b32.xlu0 %v551, 16
      %v1180 = vpop.permute.xlu0 %1179
      %1181 = vrot.lane.b32.xlu0 %v553, 16
      %v1182 = vpop.permute.xlu0 %1181
      %1183 = vrot.lane.b32.xlu0 %v555, 16
      %v1184 = vpop.permute.xlu0 %1183
      %1185 = vrot.lane.b32.xlu0 %v557, 16
      %v1186 = vpop.permute.xlu0 %1185
      %1187 = vrot.lane.b32.xlu0 %v559, 16
      %v1188 = vpop.permute.xlu0 %1187
      %1189 = vrot.lane.b32.xlu0 %v561, 16
      %v1190 = vpop.permute.xlu0 %1189
      %1191 = vrot.lane.b32.xlu0 %v563, 16
      %v1192 = vpop.permute.xlu0 %1191
      %1193 = vrot.lane.b32.xlu0 %v565, 16
      %v1194 = vpop.permute.xlu0 %1193
      %1195 = vrot.lane.b32.xlu0 %v567, 16
      %v1196 = vpop.permute.xlu0 %1195
      %1197 = vrot.lane.b32.xlu0 %v569, 16
      %v1198 = vpop.permute.xlu0 %1197
      %1199 = vrot.lane.b32.xlu0 %v571, 16
      %v1200 = vpop.permute.xlu0 %1199
      %1201 = vrot.lane.b32.xlu0 %v573, 16
      %v1202 = vpop.permute.xlu0 %1201
      %1203 = vrot.lane.b32.xlu0 %v575, 16
      %v1204 = vpop.permute.xlu0 %1203
      %1205 = vrot.lane.b32.xlu0 %v577, 16
      %v1206 = vpop.permute.xlu0 %1205
      %1207 = vrot.lane.b32.xlu0 %v579, 16
      %v1208 = vpop.permute.xlu0 %1207
      %1209 = vrot.lane.b32.xlu0 %v1114, 16
      %v1210 = vpop.permute.xlu0 %1209
      %1211 = vrot.lane.b32.xlu0 %v1116, 16
      %v1212 = vpop.permute.xlu0 %1211
      %1213 = vrot.lane.b32.xlu0 %v1118, 16
      %v1214 = vpop.permute.xlu0 %1213
      %v1263 = vrot.slane %v427, 2
      %v1264 = vsel %vm724, %v820, %v1263
      %v1265 = vrot.slane %v428, 2
      %v1266 = vsel %vm724, %v1263, %v1265
      %v1267 = vrot.slane %v429, 2
      %v1268 = vsel %vm724, %v1265, %v1267
      %1269 = vrot.lane.b32.xlu0 %v733, 20
      %v1270 = vpop.permute.xlu0 %1269
      %1271 = vrot.lane.b32.xlu0 %v735, 20
      %v1272 = vpop.permute.xlu0 %1271
      %1273 = vrot.lane.b32.xlu0 %v737, 20
      %v1274 = vpop.permute.xlu0 %1273
      %1275 = vrot.lane.b32.xlu0 %v739, 20
      %v1276 = vpop.permute.xlu0 %1275
      %1277 = vrot.lane.b32.xlu0 %v741, 20
      %v1278 = vpop.permute.xlu0 %1277
      %1279 = vrot.lane.b32.xlu0 %v743, 20
      %v1280 = vpop.permute.xlu0 %1279
      %1281 = vrot.lane.b32.xlu0 %v745, 20
      %v1282 = vpop.permute.xlu0 %1281
      %1283 = vrot.lane.b32.xlu0 %v747, 20
      %v1284 = vpop.permute.xlu0 %1283
      %1285 = vrot.lane.b32.xlu0 %v749, 20
      %v1286 = vpop.permute.xlu0 %1285
      %1287 = vrot.lane.b32.xlu0 %v751, 20
      %v1288 = vpop.permute.xlu0 %1287
      %1289 = vrot.lane.b32.xlu0 %v753, 20
      %v1290 = vpop.permute.xlu0 %1289
      %1291 = vrot.lane.b32.xlu0 %v755, 20
      %v1292 = vpop.permute.xlu0 %1291
      %1293 = vrot.lane.b32.xlu0 %v757, 20
      %v1294 = vpop.permute.xlu0 %1293
      %1295 = vrot.lane.b32.xlu0 %v759, 20
      %v1296 = vpop.permute.xlu0 %1295
      %1297 = vrot.lane.b32.xlu0 %v761, 20
      %v1298 = vpop.permute.xlu0 %1297
      %1299 = vrot.lane.b32.xlu0 %v763, 20
      %v1300 = vpop.permute.xlu0 %1299
      %1301 = vrot.lane.b32.xlu0 %v765, 20
      %v1302 = vpop.permute.xlu0 %1301
      %1303 = vrot.lane.b32.xlu0 %v767, 20
      %v1304 = vpop.permute.xlu0 %1303
      %1305 = vrot.lane.b32.xlu0 %v769, 20
      %v1306 = vpop.permute.xlu0 %1305
      %1307 = vrot.lane.b32.xlu0 %v771, 20
      %v1308 = vpop.permute.xlu0 %1307
      %1309 = vrot.lane.b32.xlu0 %v773, 20
      %v1310 = vpop.permute.xlu0 %1309
      %1311 = vrot.lane.b32.xlu0 %v775, 20
      %v1312 = vpop.permute.xlu0 %1311
      %1313 = vrot.lane.b32.xlu0 %v777, 20
      %v1314 = vpop.permute.xlu0 %1313
      %1315 = vrot.lane.b32.xlu0 %v779, 20
      %v1316 = vpop.permute.xlu0 %1315
      %1317 = vrot.lane.b32.xlu0 %v781, 20
      %v1318 = vpop.permute.xlu0 %1317
      %1319 = vrot.lane.b32.xlu0 %v783, 20
      %v1320 = vpop.permute.xlu0 %1319
      %1321 = vrot.lane.b32.xlu0 %v785, 20
      %v1322 = vpop.permute.xlu0 %1321
      %1323 = vrot.lane.b32.xlu0 %v787, 20
      %v1324 = vpop.permute.xlu0 %1323
      %1325 = vrot.lane.b32.xlu0 %v789, 20
      %v1326 = vpop.permute.xlu0 %1325
      %1327 = vrot.lane.b32.xlu0 %v791, 20
      %v1328 = vpop.permute.xlu0 %1327
      %1329 = vrot.lane.b32.xlu0 %v793, 20
      %v1330 = vpop.permute.xlu0 %1329
      %1331 = vrot.lane.b32.xlu0 %v795, 20
      %v1332 = vpop.permute.xlu0 %1331
      %1333 = vrot.lane.b32.xlu0 %v797, 20
      %v1334 = vpop.permute.xlu0 %1333
      %1335 = vrot.lane.b32.xlu0 %v799, 20
      %v1336 = vpop.permute.xlu0 %1335
      %1337 = vrot.lane.b32.xlu0 %v801, 20
      %v1338 = vpop.permute.xlu0 %1337
      %1339 = vrot.lane.b32.xlu0 %v803, 20
      %v1340 = vpop.permute.xlu0 %1339
      %1341 = vrot.lane.b32.xlu0 %v805, 20
      %v1342 = vpop.permute.xlu0 %1341
      %1343 = vrot.lane.b32.xlu0 %v807, 20
      %v1344 = vpop.permute.xlu0 %1343
      %1345 = vrot.lane.b32.xlu0 %v809, 20
      %v1346 = vpop.permute.xlu0 %1345
      %1347 = vrot.lane.b32.xlu0 %v811, 20
      %v1348 = vpop.permute.xlu0 %1347
      %1349 = vrot.lane.b32.xlu0 %v813, 20
      %v1350 = vpop.permute.xlu0 %1349
      %1351 = vrot.lane.b32.xlu0 %v815, 20
      %v1352 = vpop.permute.xlu0 %1351
      %1353 = vrot.lane.b32.xlu0 %v817, 20
      %v1354 = vpop.permute.xlu0 %1353
      %1355 = vrot.lane.b32.xlu0 %v819, 20
      %v1356 = vpop.permute.xlu0 %1355
      %1357 = vrot.lane.b32.xlu0 %v821, 20
      %v1358 = vpop.permute.xlu0 %1357
      %1359 = vrot.lane.b32.xlu0 %v1264, 20
      %v1360 = vpop.permute.xlu0 %1359
      %1361 = vrot.lane.b32.xlu0 %v1266, 20
      %v1362 = vpop.permute.xlu0 %1361
      %1363 = vrot.lane.b32.xlu0 %v1268, 20
      %v1364 = vpop.permute.xlu0 %1363
      %1415 = vrot.lane.b32.xlu0 %v384, 24
      %v1416 = vpop.permute.xlu0 %1415
      %1417 = vrot.lane.b32.xlu0 %v385, 24
      %v1418 = vpop.permute.xlu0 %1417
      %1419 = vrot.lane.b32.xlu0 %v386, 24
      %v1420 = vpop.permute.xlu0 %1419
      %1421 = vrot.lane.b32.xlu0 %v387, 24
      %v1422 = vpop.permute.xlu0 %1421
      %1423 = vrot.lane.b32.xlu0 %v388, 24
      %v1424 = vpop.permute.xlu0 %1423
      %1425 = vrot.lane.b32.xlu0 %v389, 24
      %v1426 = vpop.permute.xlu0 %1425
      %1427 = vrot.lane.b32.xlu0 %v390, 24
      %v1428 = vpop.permute.xlu0 %1427
      %1429 = vrot.lane.b32.xlu0 %v391, 24
      %v1430 = vpop.permute.xlu0 %1429
      %1431 = vrot.lane.b32.xlu0 %v392, 24
      %v1432 = vpop.permute.xlu0 %1431
      %1433 = vrot.lane.b32.xlu0 %v393, 24
      %v1434 = vpop.permute.xlu0 %1433
      %1435 = vrot.lane.b32.xlu0 %v394, 24
      %v1436 = vpop.permute.xlu0 %1435
      %1437 = vrot.lane.b32.xlu0 %v395, 24
      %v1438 = vpop.permute.xlu0 %1437
      %1439 = vrot.lane.b32.xlu0 %v396, 24
      %v1440 = vpop.permute.xlu0 %1439
      %1441 = vrot.lane.b32.xlu0 %v397, 24
      %v1442 = vpop.permute.xlu0 %1441
      %1443 = vrot.lane.b32.xlu0 %v398, 24
      %v1444 = vpop.permute.xlu0 %1443
      %1445 = vrot.lane.b32.xlu0 %v399, 24
      %v1446 = vpop.permute.xlu0 %1445
      %1447 = vrot.lane.b32.xlu0 %v400, 24
      %v1448 = vpop.permute.xlu0 %1447
      %1449 = vrot.lane.b32.xlu0 %v401, 24
      %v1450 = vpop.permute.xlu0 %1449
      %1451 = vrot.lane.b32.xlu0 %v402, 24
      %v1452 = vpop.permute.xlu0 %1451
      %1453 = vrot.lane.b32.xlu0 %v403, 24
      %v1454 = vpop.permute.xlu0 %1453
      %1455 = vrot.lane.b32.xlu0 %v404, 24
      %v1456 = vpop.permute.xlu0 %1455
      %1457 = vrot.lane.b32.xlu0 %v405, 24
      %v1458 = vpop.permute.xlu0 %1457
      %1459 = vrot.lane.b32.xlu0 %v406, 24
      %v1460 = vpop.permute.xlu0 %1459
      %1461 = vrot.lane.b32.xlu0 %v407, 24
      %v1462 = vpop.permute.xlu0 %1461
      %1463 = vrot.lane.b32.xlu0 %v408, 24
      %v1464 = vpop.permute.xlu0 %1463
      %1465 = vrot.lane.b32.xlu0 %v409, 24
      %v1466 = vpop.permute.xlu0 %1465
      %1467 = vrot.lane.b32.xlu0 %v410, 24
      %v1468 = vpop.permute.xlu0 %1467
      %1469 = vrot.lane.b32.xlu0 %v411, 24
      %v1470 = vpop.permute.xlu0 %1469
      %1471 = vrot.lane.b32.xlu0 %v412, 24
      %v1472 = vpop.permute.xlu0 %1471
      %1473 = vrot.lane.b32.xlu0 %v413, 24
      %v1474 = vpop.permute.xlu0 %1473
      %1475 = vrot.lane.b32.xlu0 %v414, 24
      %v1476 = vpop.permute.xlu0 %1475
      %1477 = vrot.lane.b32.xlu0 %v415, 24
      %v1478 = vpop.permute.xlu0 %1477
      %1479 = vrot.lane.b32.xlu0 %v416, 24
      %v1480 = vpop.permute.xlu0 %1479
      %1481 = vrot.lane.b32.xlu0 %v417, 24
      %v1482 = vpop.permute.xlu0 %1481
      %1483 = vrot.lane.b32.xlu0 %v418, 24
      %v1484 = vpop.permute.xlu0 %1483
      %1485 = vrot.lane.b32.xlu0 %v419, 24
      %v1486 = vpop.permute.xlu0 %1485
      %1487 = vrot.lane.b32.xlu0 %v420, 24
      %v1488 = vpop.permute.xlu0 %1487
      %1489 = vrot.lane.b32.xlu0 %v421, 24
      %v1490 = vpop.permute.xlu0 %1489
      %1491 = vrot.lane.b32.xlu0 %v422, 24
      %v1492 = vpop.permute.xlu0 %1491
      %1493 = vrot.lane.b32.xlu0 %v423, 24
      %v1494 = vpop.permute.xlu0 %1493
      %1495 = vrot.lane.b32.xlu0 %v424, 24
      %v1496 = vpop.permute.xlu0 %1495
      %1497 = vrot.lane.b32.xlu0 %v425, 24
      %v1498 = vpop.permute.xlu0 %1497
      %1499 = vrot.lane.b32.xlu0 %v426, 24
      %v1500 = vpop.permute.xlu0 %1499
      %1501 = vrot.lane.b32.xlu0 %v427, 24
      %v1502 = vpop.permute.xlu0 %1501
      %1503 = vrot.lane.b32.xlu0 %v428, 24
      %v1504 = vpop.permute.xlu0 %1503
      %1505 = vrot.lane.b32.xlu0 %v429, 24
      %v1506 = vpop.permute.xlu0 %1505
      %1507 = vrot.lane.b32.xlu0 %v430, 24
      %v1508 = vpop.permute.xlu0 %1507
      %1509 = vrot.lane.b32.xlu0 %v431, 24
      %v1510 = vpop.permute.xlu0 %1509
      %v1560 = vrot.slane %v430, 1
      %v1561 = vsel %vm482, %v1117, %v1560
      %v1562 = vrot.slane %v431, 1
      %v1563 = vsel %vm482, %v1560, %v1562
      %v1564 = vrot.slane %v432, 1
      %v1565 = vsel %vm482, %v1562, %v1564
      %1566 = vrot.lane.b32.xlu0 %v497, 28
      %v1567 = vpop.permute.xlu0 %1566
      %1568 = vrot.lane.b32.xlu0 %v499, 28
      %v1569 = vpop.permute.xlu0 %1568
      %1570 = vrot.lane.b32.xlu0 %v501, 28
      %v1571 = vpop.permute.xlu0 %1570
      %1572 = vrot.lane.b32.xlu0 %v503, 28
      %v1573 = vpop.permute.xlu0 %1572
      %1574 = vrot.lane.b32.xlu0 %v505, 28
      %v1575 = vpop.permute.xlu0 %1574
      %1576 = vrot.lane.b32.xlu0 %v507, 28
      %v1577 = vpop.permute.xlu0 %1576
      %1578 = vrot.lane.b32.xlu0 %v509, 28
      %v1579 = vpop.permute.xlu0 %1578
      %1580 = vrot.lane.b32.xlu0 %v511, 28
      %v1581 = vpop.permute.xlu0 %1580
      %1582 = vrot.lane.b32.xlu0 %v513, 28
      %v1583 = vpop.permute.xlu0 %1582
      %1584 = vrot.lane.b32.xlu0 %v515, 28
      %v1585 = vpop.permute.xlu0 %1584
      %1586 = vrot.lane.b32.xlu0 %v517, 28
      %v1587 = vpop.permute.xlu0 %1586
      %1588 = vrot.lane.b32.xlu0 %v519, 28
      %v1589 = vpop.permute.xlu0 %1588
      %1590 = vrot.lane.b32.xlu0 %v521, 28
      %v1591 = vpop.permute.xlu0 %1590
      %1592 = vrot.lane.b32.xlu0 %v523, 28
      %v1593 = vpop.permute.xlu0 %1592
      %1594 = vrot.lane.b32.xlu0 %v525, 28
      %v1595 = vpop.permute.xlu0 %1594
      %1596 = vrot.lane.b32.xlu0 %v527, 28
      %v1597 = vpop.permute.xlu0 %1596
      %1598 = vrot.lane.b32.xlu0 %v529, 28
      %v1599 = vpop.permute.xlu0 %1598
      %1600 = vrot.lane.b32.xlu0 %v531, 28
      %v1601 = vpop.permute.xlu0 %1600
      %1602 = vrot.lane.b32.xlu0 %v533, 28
      %v1603 = vpop.permute.xlu0 %1602
      %1604 = vrot.lane.b32.xlu0 %v535, 28
      %v1605 = vpop.permute.xlu0 %1604
      %1606 = vrot.lane.b32.xlu0 %v537, 28
      %v1607 = vpop.permute.xlu0 %1606
      %1608 = vrot.lane.b32.xlu0 %v539, 28
      %v1609 = vpop.permute.xlu0 %1608
      %1610 = vrot.lane.b32.xlu0 %v541, 28
      %v1611 = vpop.permute.xlu0 %1610
      %1612 = vrot.lane.b32.xlu0 %v543, 28
      %v1613 = vpop.permute.xlu0 %1612
      %1614 = vrot.lane.b32.xlu0 %v545, 28
      %v1615 = vpop.permute.xlu0 %1614
      %1616 = vrot.lane.b32.xlu0 %v547, 28
      %v1617 = vpop.permute.xlu0 %1616
      %1618 = vrot.lane.b32.xlu0 %v549, 28
      %v1619 = vpop.permute.xlu0 %1618
      %1620 = vrot.lane.b32.xlu0 %v551, 28
      %v1621 = vpop.permute.xlu0 %1620
      %1622 = vrot.lane.b32.xlu0 %v553, 28
      %v1623 = vpop.permute.xlu0 %1622
      %1624 = vrot.lane.b32.xlu0 %v555, 28
      %v1625 = vpop.permute.xlu0 %1624
      %1626 = vrot.lane.b32.xlu0 %v557, 28
      %v1627 = vpop.permute.xlu0 %1626
      %1628 = vrot.lane.b32.xlu0 %v559, 28
      %v1629 = vpop.permute.xlu0 %1628
      %1630 = vrot.lane.b32.xlu0 %v561, 28
      %v1631 = vpop.permute.xlu0 %1630
      %1632 = vrot.lane.b32.xlu0 %v563, 28
      %v1633 = vpop.permute.xlu0 %1632
      %1634 = vrot.lane.b32.xlu0 %v565, 28
      %v1635 = vpop.permute.xlu0 %1634
      %1636 = vrot.lane.b32.xlu0 %v567, 28
      %v1637 = vpop.permute.xlu0 %1636
      %1638 = vrot.lane.b32.xlu0 %v569, 28
      %v1639 = vpop.permute.xlu0 %1638
      %1640 = vrot.lane.b32.xlu0 %v571, 28
      %v1641 = vpop.permute.xlu0 %1640
      %1642 = vrot.lane.b32.xlu0 %v573, 28
      %v1643 = vpop.permute.xlu0 %1642
      %1644 = vrot.lane.b32.xlu0 %v575, 28
      %v1645 = vpop.permute.xlu0 %1644
      %1646 = vrot.lane.b32.xlu0 %v577, 28
      %v1647 = vpop.permute.xlu0 %1646
      %1648 = vrot.lane.b32.xlu0 %v579, 28
      %v1649 = vpop.permute.xlu0 %1648
      %1650 = vrot.lane.b32.xlu0 %v1114, 28
      %v1651 = vpop.permute.xlu0 %1650
      %1652 = vrot.lane.b32.xlu0 %v1116, 28
      %v1653 = vpop.permute.xlu0 %1652
      %1654 = vrot.lane.b32.xlu0 %v1118, 28
      %v1655 = vpop.permute.xlu0 %1654
      %1656 = vrot.lane.b32.xlu0 %v1561, 28
      %v1657 = vpop.permute.xlu0 %1656
      %1658 = vrot.lane.b32.xlu0 %v1563, 28
      %v1659 = vpop.permute.xlu0 %1658
      %1660 = vrot.lane.b32.xlu0 %v1565, 28
      %v1661 = vpop.permute.xlu0 %1660
      %v1710 = vrot.slane %v430, 2
      %v1711 = vsel %vm724, %v1267, %v1710
      %v1712 = vrot.slane %v431, 2
      %v1713 = vsel %vm724, %v1710, %v1712
      %v1714 = vrot.slane %v432, 2
      %v1715 = vsel %vm724, %v1712, %v1714
      %1716 = vrot.lane.b32.xlu0 %v739, 32
      %v1717 = vpop.permute.xlu0 %1716
      %1718 = vrot.lane.b32.xlu0 %v741, 32
      %v1719 = vpop.permute.xlu0 %1718
      %1720 = vrot.lane.b32.xlu0 %v743, 32
      %v1721 = vpop.permute.xlu0 %1720
      %1722 = vrot.lane.b32.xlu0 %v745, 32
      %v1723 = vpop.permute.xlu0 %1722
      %1724 = vrot.lane.b32.xlu0 %v747, 32
      %v1725 = vpop.permute.xlu0 %1724
      %1726 = vrot.lane.b32.xlu0 %v749, 32
      %v1727 = vpop.permute.xlu0 %1726
      %1728 = vrot.lane.b32.xlu0 %v751, 32
      %v1729 = vpop.permute.xlu0 %1728
      %1730 = vrot.lane.b32.xlu0 %v753, 32
      %v1731 = vpop.permute.xlu0 %1730
      %1732 = vrot.lane.b32.xlu0 %v755, 32
      %v1733 = vpop.permute.xlu0 %1732
      %1734 = vrot.lane.b32.xlu0 %v757, 32
      %v1735 = vpop.permute.xlu0 %1734
      %1736 = vrot.lane.b32.xlu0 %v759, 32
      %v1737 = vpop.permute.xlu0 %1736
      %1738 = vrot.lane.b32.xlu0 %v761, 32
      %v1739 = vpop.permute.xlu0 %1738
      %1740 = vrot.lane.b32.xlu0 %v763, 32
      %v1741 = vpop.permute.xlu0 %1740
      %1742 = vrot.lane.b32.xlu0 %v765, 32
      %v1743 = vpop.permute.xlu0 %1742
      %1744 = vrot.lane.b32.xlu0 %v767, 32
      %v1745 = vpop.permute.xlu0 %1744
      %1746 = vrot.lane.b32.xlu0 %v769, 32
      %v1747 = vpop.permute.xlu0 %1746
      %1748 = vrot.lane.b32.xlu0 %v771, 32
      %v1749 = vpop.permute.xlu0 %1748
      %1750 = vrot.lane.b32.xlu0 %v773, 32
      %v1751 = vpop.permute.xlu0 %1750
      %1752 = vrot.lane.b32.xlu0 %v775, 32
      %v1753 = vpop.permute.xlu0 %1752
      %1754 = vrot.lane.b32.xlu0 %v777, 32
      %v1755 = vpop.permute.xlu0 %1754
      %1756 = vrot.lane.b32.xlu0 %v779, 32
      %v1757 = vpop.permute.xlu0 %1756
      %1758 = vrot.lane.b32.xlu0 %v781, 32
      %v1759 = vpop.permute.xlu0 %1758
      %1760 = vrot.lane.b32.xlu0 %v783, 32
      %v1761 = vpop.permute.xlu0 %1760
      %1762 = vrot.lane.b32.xlu0 %v785, 32
      %v1763 = vpop.permute.xlu0 %1762
      %1764 = vrot.lane.b32.xlu0 %v787, 32
      %v1765 = vpop.permute.xlu0 %1764
      %1766 = vrot.lane.b32.xlu0 %v789, 32
      %v1767 = vpop.permute.xlu0 %1766
      %1768 = vrot.lane.b32.xlu0 %v791, 32
      %v1769 = vpop.permute.xlu0 %1768
      %1770 = vrot.lane.b32.xlu0 %v793, 32
      %v1771 = vpop.permute.xlu0 %1770
      %1772 = vrot.lane.b32.xlu0 %v795, 32
      %v1773 = vpop.permute.xlu0 %1772
      %1774 = vrot.lane.b32.xlu0 %v797, 32
      %v1775 = vpop.permute.xlu0 %1774
      %1776 = vrot.lane.b32.xlu0 %v799, 32
      %v1777 = vpop.permute.xlu0 %1776
      %1778 = vrot.lane.b32.xlu0 %v801, 32
      %v1779 = vpop.permute.xlu0 %1778
      %1780 = vrot.lane.b32.xlu0 %v803, 32
      %v1781 = vpop.permute.xlu0 %1780
      %1782 = vrot.lane.b32.xlu0 %v805, 32
      %v1783 = vpop.permute.xlu0 %1782
      %1784 = vrot.lane.b32.xlu0 %v807, 32
      %v1785 = vpop.permute.xlu0 %1784
      %1786 = vrot.lane.b32.xlu0 %v809, 32
      %v1787 = vpop.permute.xlu0 %1786
      %1788 = vrot.lane.b32.xlu0 %v811, 32
      %v1789 = vpop.permute.xlu0 %1788
      %1790 = vrot.lane.b32.xlu0 %v813, 32
      %v1791 = vpop.permute.xlu0 %1790
      %1792 = vrot.lane.b32.xlu0 %v815, 32
      %v1793 = vpop.permute.xlu0 %1792
      %1794 = vrot.lane.b32.xlu0 %v817, 32
      %v1795 = vpop.permute.xlu0 %1794
      %1796 = vrot.lane.b32.xlu0 %v819, 32
      %v1797 = vpop.permute.xlu0 %1796
      %1798 = vrot.lane.b32.xlu0 %v821, 32
      %v1799 = vpop.permute.xlu0 %1798
      %1800 = vrot.lane.b32.xlu0 %v1264, 32
      %v1801 = vpop.permute.xlu0 %1800
      %1802 = vrot.lane.b32.xlu0 %v1266, 32
      %v1803 = vpop.permute.xlu0 %1802
      %1804 = vrot.lane.b32.xlu0 %v1268, 32
      %v1805 = vpop.permute.xlu0 %1804
      %1806 = vrot.lane.b32.xlu0 %v1711, 32
      %v1807 = vpop.permute.xlu0 %1806
      %1808 = vrot.lane.b32.xlu0 %v1713, 32
      %v1809 = vpop.permute.xlu0 %1808
      %1810 = vrot.lane.b32.xlu0 %v1715, 32
      %v1811 = vpop.permute.xlu0 %1810
      %v1860 = vsel %vm257, %v378, %v581
      %v1861 = vsel %vm257, %v379, %v583
      %v1862 = vsel %vm257, %v380, %v585
      %v1863 = vsel %vm257, %v381, %v587
      %v1864 = vsel %vm257, %v382, %v589
      %v1865 = vsel %vm257, %v383, %v591
      %v1866 = vsel %vm257, %v384, %v593
      %v1867 = vsel %vm257, %v385, %v595
      %v1868 = vsel %vm257, %v386, %v597
      %v1869 = vsel %vm257, %v387, %v599
      %v1870 = vsel %vm257, %v388, %v601
      %v1871 = vsel %vm257, %v389, %v603
      %v1872 = vsel %vm257, %v390, %v605
      %v1873 = vsel %vm257, %v391, %v607
      %v1874 = vsel %vm257, %v392, %v609
      %v1875 = vsel %vm257, %v393, %v611
      %v1876 = vsel %vm257, %v394, %v613
      %v1877 = vsel %vm257, %v395, %v615
      %v1878 = vsel %vm257, %v396, %v617
      %v1879 = vsel %vm257, %v397, %v619
      %v1880 = vsel %vm257, %v398, %v621
      %v1881 = vsel %vm257, %v399, %v623
      %v1882 = vsel %vm257, %v400, %v625
      %v1883 = vsel %vm257, %v401, %v627
      %v1884 = vsel %vm257, %v402, %v629
      %v1885 = vsel %vm257, %v403, %v631
      %v1886 = vsel %vm257, %v404, %v633
      %v1887 = vsel %vm257, %v405, %v635
      %v1888 = vsel %vm257, %v406, %v637
      %v1889 = vsel %vm257, %v407, %v639
      %v1890 = vsel %vm257, %v408, %v641
      %v1891 = vsel %vm257, %v409, %v643
      %v1892 = vsel %vm257, %v410, %v645
      %v1893 = vsel %vm257, %v411, %v647
      %v1894 = vsel %vm257, %v412, %v649
      %v1895 = vsel %vm257, %v413, %v651
      %v1896 = vsel %vm257, %v414, %v653
      %v1897 = vsel %vm257, %v415, %v655
      %v1898 = vsel %vm257, %v416, %v657
      %v1899 = vsel %vm257, %v417, %v659
      %v1900 = vsel %vm257, %v418, %v661
      %v1901 = vsel %vm257, %v419, %v663
      %v1902 = vsel %vm257, %v420, %v665
      %v1903 = vsel %vm257, %v421, %v667
      %v1904 = vsel %vm257, %v422, %v669
      %v1905 = vsel %vm257, %v423, %v671
      %v1906 = vsel %vm257, %v424, %v673
      %v1907 = vsel %vm257, %v425, %v675
      %vm1908 = vcmask 64512
      %v1909 = vsel %vm1908, %v1860, %v823
      %v1910 = vsel %vm1908, %v1861, %v825
      %v1911 = vsel %vm1908, %v1862, %v827
      %v1912 = vsel %vm1908, %v1863, %v829
      %v1913 = vsel %vm1908, %v1864, %v831
      %v1914 = vsel %vm1908, %v1865, %v833
      %v1915 = vsel %vm1908, %v1866, %v835
      %v1916 = vsel %vm1908, %v1867, %v837
      %v1917 = vsel %vm1908, %v1868, %v839
      %v1918 = vsel %vm1908, %v1869, %v841
      %v1919 = vsel %vm1908, %v1870, %v843
      %v1920 = vsel %vm1908, %v1871, %v845
      %v1921 = vsel %vm1908, %v1872, %v847
      %v1922 = vsel %vm1908, %v1873, %v849
      %v1923 = vsel %vm1908, %v1874, %v851
      %v1924 = vsel %vm1908, %v1875, %v853
      %v1925 = vsel %vm1908, %v1876, %v855
      %v1926 = vsel %vm1908, %v1877, %v857
      %v1927 = vsel %vm1908, %v1878, %v859
      %v1928 = vsel %vm1908, %v1879, %v861
      %v1929 = vsel %vm1908, %v1880, %v863
      %v1930 = vsel %vm1908, %v1881, %v865
      %v1931 = vsel %vm1908, %v1882, %v867
      %v1932 = vsel %vm1908, %v1883, %v869
      %v1933 = vsel %vm1908, %v1884, %v871
      %v1934 = vsel %vm1908, %v1885, %v873
      %v1935 = vsel %vm1908, %v1886, %v875
      %v1936 = vsel %vm1908, %v1887, %v877
      %v1937 = vsel %vm1908, %v1888, %v879
      %v1938 = vsel %vm1908, %v1889, %v881
      %v1939 = vsel %vm1908, %v1890, %v883
      %v1940 = vsel %vm1908, %v1891, %v885
      %v1941 = vsel %vm1908, %v1892, %v887
      %v1942 = vsel %vm1908, %v1893, %v889
      %v1943 = vsel %vm1908, %v1894, %v891
      %v1944 = vsel %vm1908, %v1895, %v893
      %v1945 = vsel %vm1908, %v1896, %v895
      %v1946 = vsel %vm1908, %v1897, %v897
      %v1947 = vsel %vm1908, %v1898, %v899
      %v1948 = vsel %vm1908, %v1899, %v901
      %v1949 = vsel %vm1908, %v1900, %v903
      %v1950 = vsel %vm1908, %v1901, %v905
      %v1951 = vsel %vm1908, %v1902, %v907
      %v1952 = vsel %vm1908, %v1903, %v909
      %v1953 = vsel %vm1908, %v1904, %v911
      %v1954 = vsel %vm1908, %v1905, %v913
      %v1955 = vsel %vm1908, %v1906, %v915
      %v1956 = vsel %vm1908, %v1907, %v917
      %vm1957 = vcmask 97280
      %v1958 = vsel %vm1957, %v1909, %v969
      %v1959 = vsel %vm1957, %v1910, %v971
      %v1960 = vsel %vm1957, %v1911, %v973
      %v1961 = vsel %vm1957, %v1912, %v975
      %v1962 = vsel %vm1957, %v1913, %v977
      %v1963 = vsel %vm1957, %v1914, %v979
      %v1964 = vsel %vm1957, %v1915, %v981
      %v1965 = vsel %vm1957, %v1916, %v983
      %v1966 = vsel %vm1957, %v1917, %v985
      %v1967 = vsel %vm1957, %v1918, %v987
      %v1968 = vsel %vm1957, %v1919, %v989
      %v1969 = vsel %vm1957, %v1920, %v991
      %v1970 = vsel %vm1957, %v1921, %v993
      %v1971 = vsel %vm1957, %v1922, %v995
      %v1972 = vsel %vm1957, %v1923, %v997
      %v1973 = vsel %vm1957, %v1924, %v999
      %v1974 = vsel %vm1957, %v1925, %v1001
      %v1975 = vsel %vm1957, %v1926, %v1003
      %v1976 = vsel %vm1957, %v1927, %v1005
      %v1977 = vsel %vm1957, %v1928, %v1007
      %v1978 = vsel %vm1957, %v1929, %v1009
      %v1979 = vsel %vm1957, %v1930, %v1011
      %v1980 = vsel %vm1957, %v1931, %v1013
      %v1981 = vsel %vm1957, %v1932, %v1015
      %v1982 = vsel %vm1957, %v1933, %v1017
      %v1983 = vsel %vm1957, %v1934, %v1019
      %v1984 = vsel %vm1957, %v1935, %v1021
      %v1985 = vsel %vm1957, %v1936, %v1023
      %v1986 = vsel %vm1957, %v1937, %v1025
      %v1987 = vsel %vm1957, %v1938, %v1027
      %v1988 = vsel %vm1957, %v1939, %v1029
      %v1989 = vsel %vm1957, %v1940, %v1031
      %v1990 = vsel %vm1957, %v1941, %v1033
      %v1991 = vsel %vm1957, %v1942, %v1035
      %v1992 = vsel %vm1957, %v1943, %v1037
      %v1993 = vsel %vm1957, %v1944, %v1039
      %v1994 = vsel %vm1957, %v1945, %v1041
      %v1995 = vsel %vm1957, %v1946, %v1043
      %v1996 = vsel %vm1957, %v1947, %v1045
      %v1997 = vsel %vm1957, %v1948, %v1047
      %v1998 = vsel %vm1957, %v1949, %v1049
      %v1999 = vsel %vm1957, %v1950, %v1051
      %v2000 = vsel %vm1957, %v1951, %v1053
      %v2001 = vsel %vm1957, %v1952, %v1055
      %v2002 = vsel %vm1957, %v1953, %v1057
      %v2003 = vsel %vm1957, %v1954, %v1059
      %v2004 = vsel %vm1957, %v1955, %v1061
      %v2005 = vsel %vm1957, %v1956, %v1063
      %vm2006 = vcmask 130048
      %v2007 = vsel %vm2006, %v1958, %v1120
      %v2008 = vsel %vm2006, %v1959, %v1122
      %v2009 = vsel %vm2006, %v1960, %v1124
      %v2010 = vsel %vm2006, %v1961, %v1126
      %v2011 = vsel %vm2006, %v1962, %v1128
      %v2012 = vsel %vm2006, %v1963, %v1130
      %v2013 = vsel %vm2006, %v1964, %v1132
      %v2014 = vsel %vm2006, %v1965, %v1134
      %v2015 = vsel %vm2006, %v1966, %v1136
      %v2016 = vsel %vm2006, %v1967, %v1138
      %v2017 = vsel %vm2006, %v1968, %v1140
      %v2018 = vsel %vm2006, %v1969, %v1142
      %v2019 = vsel %vm2006, %v1970, %v1144
      %v2020 = vsel %vm2006, %v1971, %v1146
      %v2021 = vsel %vm2006, %v1972, %v1148
      %v2022 = vsel %vm2006, %v1973, %v1150
      %v2023 = vsel %vm2006, %v1974, %v1152
      %v2024 = vsel %vm2006, %v1975, %v1154
      %v2025 = vsel %vm2006, %v1976, %v1156
      %v2026 = vsel %vm2006, %v1977, %v1158
      %v2027 = vsel %vm2006, %v1978, %v1160
      %v2028 = vsel %vm2006, %v1979, %v1162
      %v2029 = vsel %vm2006, %v1980, %v1164
      %v2030 = vsel %vm2006, %v1981, %v1166
      %v2031 = vsel %vm2006, %v1982, %v1168
      %v2032 = vsel %vm2006, %v1983, %v1170
      %v2033 = vsel %vm2006, %v1984, %v1172
      %v2034 = vsel %vm2006, %v1985, %v1174
      %v2035 = vsel %vm2006, %v1986, %v1176
      %v2036 = vsel %vm2006, %v1987, %v1178
      %v2037 = vsel %vm2006, %v1988, %v1180
      %v2038 = vsel %vm2006, %v1989, %v1182
      %v2039 = vsel %vm2006, %v1990, %v1184
      %v2040 = vsel %vm2006, %v1991, %v1186
      %v2041 = vsel %vm2006, %v1992, %v1188
      %v2042 = vsel %vm2006, %v1993, %v1190
      %v2043 = vsel %vm2006, %v1994, %v1192
      %v2044 = vsel %vm2006, %v1995, %v1194
      %v2045 = vsel %vm2006, %v1996, %v1196
      %v2046 = vsel %vm2006, %v1997, %v1198
      %v2047 = vsel %vm2006, %v1998, %v1200
      %v2048 = vsel %vm2006, %v1999, %v1202
      %v2049 = vsel %vm2006, %v2000, %v1204
      %v2050 = vsel %vm2006, %v2001, %v1206
      %v2051 = vsel %vm2006, %v2002, %v1208
      %v2052 = vsel %vm2006, %v2003, %v1210
      %v2053 = vsel %vm2006, %v2004, %v1212
      %v2054 = vsel %vm2006, %v2005, %v1214
      %vm2055 = vcmask 162816
      %v2056 = vsel %vm2055, %v2007, %v1270
      %v2057 = vsel %vm2055, %v2008, %v1272
      %v2058 = vsel %vm2055, %v2009, %v1274
      %v2059 = vsel %vm2055, %v2010, %v1276
      %v2060 = vsel %vm2055, %v2011, %v1278
      %v2061 = vsel %vm2055, %v2012, %v1280
      %v2062 = vsel %vm2055, %v2013, %v1282
      %v2063 = vsel %vm2055, %v2014, %v1284
      %v2064 = vsel %vm2055, %v2015, %v1286
      %v2065 = vsel %vm2055, %v2016, %v1288
      %v2066 = vsel %vm2055, %v2017, %v1290
      %v2067 = vsel %vm2055, %v2018, %v1292
      %v2068 = vsel %vm2055, %v2019, %v1294
      %v2069 = vsel %vm2055, %v2020, %v1296
      %v2070 = vsel %vm2055, %v2021, %v1298
      %v2071 = vsel %vm2055, %v2022, %v1300
      %v2072 = vsel %vm2055, %v2023, %v1302
      %v2073 = vsel %vm2055, %v2024, %v1304
      %v2074 = vsel %vm2055, %v2025, %v1306
      %v2075 = vsel %vm2055, %v2026, %v1308
      %v2076 = vsel %vm2055, %v2027, %v1310
      %v2077 = vsel %vm2055, %v2028, %v1312
      %v2078 = vsel %vm2055, %v2029, %v1314
      %v2079 = vsel %vm2055, %v2030, %v1316
      %v2080 = vsel %vm2055, %v2031, %v1318
      %v2081 = vsel %vm2055, %v2032, %v1320
      %v2082 = vsel %vm2055, %v2033, %v1322
      %v2083 = vsel %vm2055, %v2034, %v1324
      %v2084 = vsel %vm2055, %v2035, %v1326
      %v2085 = vsel %vm2055, %v2036, %v1328
      %v2086 = vsel %vm2055, %v2037, %v1330
      %v2087 = vsel %vm2055, %v2038, %v1332
      %v2088 = vsel %vm2055, %v2039, %v1334
      %v2089 = vsel %vm2055, %v2040, %v1336
      %v2090 = vsel %vm2055, %v2041, %v1338
      %v2091 = vsel %vm2055, %v2042, %v1340
      %v2092 = vsel %vm2055, %v2043, %v1342
      %v2093 = vsel %vm2055, %v2044, %v1344
      %v2094 = vsel %vm2055, %v2045, %v1346
      %v2095 = vsel %vm2055, %v2046, %v1348
      %v2096 = vsel %vm2055, %v2047, %v1350
      %v2097 = vsel %vm2055, %v2048, %v1352
      %v2098 = vsel %vm2055, %v2049, %v1354
      %v2099 = vsel %vm2055, %v2050, %v1356
      %v2100 = vsel %vm2055, %v2051, %v1358
      %v2101 = vsel %vm2055, %v2052, %v1360
      %v2102 = vsel %vm2055, %v2053, %v1362
      %v2103 = vsel %vm2055, %v2054, %v1364
      %vm2104 = vcmask 195584
      %v2105 = vsel %vm2104, %v2056, %v1416
      %v2106 = vsel %vm2104, %v2057, %v1418
      %v2107 = vsel %vm2104, %v2058, %v1420
      %v2108 = vsel %vm2104, %v2059, %v1422
      %v2109 = vsel %vm2104, %v2060, %v1424
      %v2110 = vsel %vm2104, %v2061, %v1426
      %v2111 = vsel %vm2104, %v2062, %v1428
      %v2112 = vsel %vm2104, %v2063, %v1430
      %v2113 = vsel %vm2104, %v2064, %v1432
      %v2114 = vsel %vm2104, %v2065, %v1434
      %v2115 = vsel %vm2104, %v2066, %v1436
      %v2116 = vsel %vm2104, %v2067, %v1438
      %v2117 = vsel %vm2104, %v2068, %v1440
      %v2118 = vsel %vm2104, %v2069, %v1442
      %v2119 = vsel %vm2104, %v2070, %v1444
      %v2120 = vsel %vm2104, %v2071, %v1446
      %v2121 = vsel %vm2104, %v2072, %v1448
      %v2122 = vsel %vm2104, %v2073, %v1450
      %v2123 = vsel %vm2104, %v2074, %v1452
      %v2124 = vsel %vm2104, %v2075, %v1454
      %v2125 = vsel %vm2104, %v2076, %v1456
      %v2126 = vsel %vm2104, %v2077, %v1458
      %v2127 = vsel %vm2104, %v2078, %v1460
      %v2128 = vsel %vm2104, %v2079, %v1462
      %v2129 = vsel %vm2104, %v2080, %v1464
      %v2130 = vsel %vm2104, %v2081, %v1466
      %v2131 = vsel %vm2104, %v2082, %v1468
      %v2132 = vsel %vm2104, %v2083, %v1470
      %v2133 = vsel %vm2104, %v2084, %v1472
      %v2134 = vsel %vm2104, %v2085, %v1474
      %v2135 = vsel %vm2104, %v2086, %v1476
      %v2136 = vsel %vm2104, %v2087, %v1478
      %v2137 = vsel %vm2104, %v2088, %v1480
      %v2138 = vsel %vm2104, %v2089, %v1482
      %v2139 = vsel %vm2104, %v2090, %v1484
      %v2140 = vsel %vm2104, %v2091, %v1486
      %v2141 = vsel %vm2104, %v2092, %v1488
      %v2142 = vsel %vm2104, %v2093, %v1490
      %v2143 = vsel %vm2104, %v2094, %v1492
      %v2144 = vsel %vm2104, %v2095, %v1494
      %v2145 = vsel %vm2104, %v2096, %v1496
      %v2146 = vsel %vm2104, %v2097, %v1498
      %v2147 = vsel %vm2104, %v2098, %v1500
      %v2148 = vsel %vm2104, %v2099, %v1502
      %v2149 = vsel %vm2104, %v2100, %v1504
      %v2150 = vsel %vm2104, %v2101, %v1506
      %v2151 = vsel %vm2104, %v2102, %v1508
      %v2152 = vsel %vm2104, %v2103, %v1510
      %vm2153 = vcmask 228352
      %v2154 = vsel %vm2153, %v2105, %v1567
      %v2155 = vsel %vm2153, %v2106, %v1569
      %v2156 = vsel %vm2153, %v2107, %v1571
      %v2157 = vsel %vm2153, %v2108, %v1573
      %v2158 = vsel %vm2153, %v2109, %v1575
      %v2159 = vsel %vm2153, %v2110, %v1577
      %v2160 = vsel %vm2153, %v2111, %v1579
      %v2161 = vsel %vm2153, %v2112, %v1581
      %v2162 = vsel %vm2153, %v2113, %v1583
      %v2163 = vsel %vm2153, %v2114, %v1585
      %v2164 = vsel %vm2153, %v2115, %v1587
      %v2165 = vsel %vm2153, %v2116, %v1589
      %v2166 = vsel %vm2153, %v2117, %v1591
      %v2167 = vsel %vm2153, %v2118, %v1593
      %v2168 = vsel %vm2153, %v2119, %v1595
      %v2169 = vsel %vm2153, %v2120, %v1597
      %v2170 = vsel %vm2153, %v2121, %v1599
      %v2171 = vsel %vm2153, %v2122, %v1601
      %v2172 = vsel %vm2153, %v2123, %v1603
      %v2173 = vsel %vm2153, %v2124, %v1605
      %v2174 = vsel %vm2153, %v2125, %v1607
      %v2175 = vsel %vm2153, %v2126, %v1609
      %v2176 = vsel %vm2153, %v2127, %v1611
      %v2177 = vsel %vm2153, %v2128, %v1613
      %v2178 = vsel %vm2153, %v2129, %v1615
      %v2179 = vsel %vm2153, %v2130, %v1617
      %v2180 = vsel %vm2153, %v2131, %v1619
      %v2181 = vsel %vm2153, %v2132, %v1621
      %v2182 = vsel %vm2153, %v2133, %v1623
      %v2183 = vsel %vm2153, %v2134, %v1625
      %v2184 = vsel %vm2153, %v2135, %v1627
      %v2185 = vsel %vm2153, %v2136, %v1629
      %v2186 = vsel %vm2153, %v2137, %v1631
      %v2187 = vsel %vm2153, %v2138, %v1633
      %v2188 = vsel %vm2153, %v2139, %v1635
      %v2189 = vsel %vm2153, %v2140, %v1637
      %v2190 = vsel %vm2153, %v2141, %v1639
      %v2191 = vsel %vm2153, %v2142, %v1641
      %v2192 = vsel %vm2153, %v2143, %v1643
      %v2193 = vsel %vm2153, %v2144, %v1645
      %v2194 = vsel %vm2153, %v2145, %v1647
      %v2195 = vsel %vm2153, %v2146, %v1649
      %v2196 = vsel %vm2153, %v2147, %v1651
      %v2197 = vsel %vm2153, %v2148, %v1653
      %v2198 = vsel %vm2153, %v2149, %v1655
      %v2199 = vsel %vm2153, %v2150, %v1657
      %v2200 = vsel %vm2153, %v2151, %v1659
      %v2201 = vsel %vm2153, %v2152, %v1661
      %vm2202 = vcmask 261120
      %v2203 = vsel %vm2202, %v2154, %v1717
      %v2204 = vsel %vm2202, %v2155, %v1719
      %v2205 = vsel %vm2202, %v2156, %v1721
      %v2206 = vsel %vm2202, %v2157, %v1723
      %v2207 = vsel %vm2202, %v2158, %v1725
      %v2208 = vsel %vm2202, %v2159, %v1727
      %v2209 = vsel %vm2202, %v2160, %v1729
      %v2210 = vsel %vm2202, %v2161, %v1731
      %v2211 = vsel %vm2202, %v2162, %v1733
      %v2212 = vsel %vm2202, %v2163, %v1735
      %v2213 = vsel %vm2202, %v2164, %v1737
      %v2214 = vsel %vm2202, %v2165, %v1739
      %v2215 = vsel %vm2202, %v2166, %v1741
      %v2216 = vsel %vm2202, %v2167, %v1743
      %v2217 = vsel %vm2202, %v2168, %v1745
      %v2218 = vsel %vm2202, %v2169, %v1747
      %v2219 = vsel %vm2202, %v2170, %v1749
      %v2220 = vsel %vm2202, %v2171, %v1751
      %v2221 = vsel %vm2202, %v2172, %v1753
      %v2222 = vsel %vm2202, %v2173, %v1755
      %v2223 = vsel %vm2202, %v2174, %v1757
      %v2224 = vsel %vm2202, %v2175, %v1759
      %v2225 = vsel %vm2202, %v2176, %v1761
      %v2226 = vsel %vm2202, %v2177, %v1763
      %v2227 = vsel %vm2202, %v2178, %v1765
      %v2228 = vsel %vm2202, %v2179, %v1767
      %v2229 = vsel %vm2202, %v2180, %v1769
      %v2230 = vsel %vm2202, %v2181, %v1771
      %v2231 = vsel %vm2202, %v2182, %v1773
      %v2232 = vsel %vm2202, %v2183, %v1775
      %v2233 = vsel %vm2202, %v2184, %v1777
      %v2234 = vsel %vm2202, %v2185, %v1779
      %v2235 = vsel %vm2202, %v2186, %v1781
      %v2236 = vsel %vm2202, %v2187, %v1783
      %v2237 = vsel %vm2202, %v2188, %v1785
      %v2238 = vsel %vm2202, %v2189, %v1787
      %v2239 = vsel %vm2202, %v2190, %v1789
      %v2240 = vsel %vm2202, %v2191, %v1791
      %v2241 = vsel %vm2202, %v2192, %v1793
      %v2242 = vsel %vm2202, %v2193, %v1795
      %v2243 = vsel %vm2202, %v2194, %v1797
      %v2244 = vsel %vm2202, %v2195, %v1799
      %v2245 = vsel %vm2202, %v2196, %v1801
      %v2246 = vsel %vm2202, %v2197, %v1803
      %v2247 = vsel %vm2202, %v2198, %v1805
      %v2248 = vsel %vm2202, %v2199, %v1807
      %v2249 = vsel %vm2202, %v2200, %v1809
      %v2250 = vsel %vm2202, %v2201, %v1811
      %v2251 = vld [vmem:[%s1] sm:$0xff]
      %v2252 = vld [vmem:[%s1 + $0x8] sm:$0xff]
      %v2253 = vld [vmem:[%s1 + $0x10] sm:$0xff]
      %v2254 = vld [vmem:[%s1 + $0x18] sm:$0xff]
      %v2255 = vld [vmem:[%s1 + $0x20] sm:$0xf]
      %v2256 = vld [vmem:[%s2] sm:$0x1]
      %v2258 = vlaneseq
      %v2259 = vshrl.u32 %v2258, 7
      %v2260 = vsub.s32 0, %v2259
      %v2261 = vrot.slane %v2256, %v2260
      %vm2263 = vcmask 293888
      %v2265 = vsel %vm2263, %v2203, 0
      %v2268 = vsel %vm2263, %v2204, 0
      %v2271 = vsel %vm2263, %v2205, 0
      %v2274 = vsel %vm2263, %v2206, 0
      %v2277 = vsel %vm2263, %v2207, 0
      %v2280 = vsel %vm2263, %v2208, 0
      %v2283 = vsel %vm2263, %v2209, 0
      %v2286 = vsel %vm2263, %v2210, 0
      %v2289 = vsel %vm2263, %v2211, 0
      %v2292 = vsel %vm2263, %v2212, 0
      %v2295 = vsel %vm2263, %v2213, 0
      %v2298 = vsel %vm2263, %v2214, 0
      %v2301 = vsel %vm2263, %v2215, 0
      %v2304 = vsel %vm2263, %v2216, 0
      %v2307 = vsel %vm2263, %v2217, 0
      %v2310 = vsel %vm2263, %v2218, 0
      %v2313 = vsel %vm2263, %v2219, 0
      %v2316 = vsel %vm2263, %v2220, 0
      %v2319 = vsel %vm2263, %v2221, 0
      %v2322 = vsel %vm2263, %v2222, 0
      %v2325 = vsel %vm2263, %v2223, 0
      %v2328 = vsel %vm2263, %v2224, 0
      %v2331 = vsel %vm2263, %v2225, 0
      %v2334 = vsel %vm2263, %v2226, 0
      %v2337 = vsel %vm2263, %v2227, 0
      %v2340 = vsel %vm2263, %v2228, 0
      %v2343 = vsel %vm2263, %v2229, 0
      %v2346 = vsel %vm2263, %v2230, 0
      %v2349 = vsel %vm2263, %v2231, 0
      %v2352 = vsel %vm2263, %v2232, 0
      %v2355 = vsel %vm2263, %v2233, 0
      %v2358 = vsel %vm2263, %v2234, 0
      %v2361 = vsel %vm2263, %v2235, 0
      %v2364 = vsel %vm2263, %v2236, 0
      %v2367 = vsel %vm2263, %v2237, 0
      %v2370 = vsel %vm2263, %v2238, 0
      %v2373 = vsel %vm2263, %v2239, 0
      %v2376 = vsel %vm2263, %v2240, 0
      %v2379 = vsel %vm2263, %v2241, 0
      %v2382 = vsel %vm2263, %v2242, 0
      %v2385 = vsel %vm2263, %v2243, 0
      %v2388 = vsel %vm2263, %v2244, 0
      %v2391 = vsel %vm2263, %v2245, 0
      %v2394 = vsel %vm2263, %v2246, 0
      %v2397 = vsel %vm2263, %v2247, 0
      %v2400 = vsel %vm2263, %v2248, 0
      %v2403 = vsel %vm2263, %v2249, 0
      %v2406 = vsel %vm2263, %v2250, 0
      %vm2408 = vcmask 1043456
      %v2410 = vsel %vm2408, %v2255, 0
      %2412 = vmatprep.subr.mxu0 0.0
      %2413 = vmatpush1.msra.mxu0 %v2251
      %2414 = vmatprep.subr.mxu0 0.0
      %2415 = vmatpush1.msra.mxu0 %v2252
      %2416 = vmatprep.subr.mxu0 0.0
      %2417 = vmatpush1.msra.mxu0 %v2253
      %2418 = vmatprep.subr.mxu0 0.0
      %2419 = vmatpush1.msra.mxu0 %v2254
      %2420 = vmatprep.subr.mxu0 0.0
      %2421 = vmatpush1.msra.mxu0 %v2410
      %2422 = vmatprep.subr.mxu0 0.0
      %2423 = vmatpush1.msra.mxu0 0.0
      %2424 = vmatprep.subr.mxu0 0.0
      %2425 = vmatpush1.msra.mxu0 0.0
      %2426 = vmatprep.subr.mxu0 0.0
      %2427 = vmatpush1.msra.mxu0 0.0
      %2428 = vmatprep.subr.mxu0 0.0
      %2429 = vmatpush1.msra.mxu0 0.0
      %2430 = vmatprep.subr.mxu0 0.0
      %2431 = vmatpush1.msra.mxu0 0.0
      %2432 = vmatprep.subr.mxu0 0.0
      %2433 = vmatpush1.msra.mxu0 0.0
      %2434 = vmatprep.subr.mxu0 0.0
      %2435 = vmatpush1.msra.mxu0 0.0
      %2436 = vmatprep.subr.mxu0 0.0
      %2437 = vmatpush1.msra.mxu0 0.0
      %2438 = vmatprep.subr.mxu0 0.0
      %2439 = vmatpush1.msra.mxu0 0.0
      %2440 = vmatprep.subr.mxu0 0.0
      %2441 = vmatpush1.msra.mxu0 0.0
      %2442 = vmatprep.subr.mxu0 0.0
      %2443 = vmatpush1.msra.mxu0 0.0
      %2444 = vmatprep.subr.mxu0 0.0
      %2445 = vmatpush1.msra.mxu0 0.0
      %2446 = vmatprep.subr.mxu0 0.0
      %2447 = vmatpush1.msra.mxu0 0.0
      %2448 = vmatprep.subr.mxu0 0.0
      %2449 = vmatpush1.msra.mxu0 0.0
      %2450 = vmatprep.subr.mxu0 0.0
      %2451 = vmatpush1.msra.mxu0 0.0
      %2452 = vmatprep.subr.mxu0 0.0
      %2453 = vmatpush1.msra.mxu0 0.0
      %2454 = vmatprep.subr.mxu0 0.0
      %2455 = vmatpush1.msra.mxu0 0.0
      %2456 = vmatprep.subr.mxu0 0.0
      %2457 = vmatpush1.msra.mxu0 0.0
      %2458 = vmatprep.subr.mxu0 0.0
      %2459 = vmatpush1.msra.mxu0 0.0
      %2460 = vmatprep.subr.mxu0 0.0
      %2461 = vmatpush1.msra.mxu0 0.0
      %2462 = vmatprep.subr.mxu0 0.0
      %2463 = vmatpush1.msra.mxu0 0.0
      %2464 = vmatprep.subr.mxu0 0.0
      %2465 = vmatpush1.msra.mxu0 0.0
      %2466 = vmatprep.subr.mxu0 0.0
      %2467 = vmatpush1.msra.mxu0 0.0
      %2468 = vmatprep.subr.mxu0 0.0
      %2469 = vmatpush1.msra.mxu0 0.0
      %2470 = vmatprep.subr.mxu0 0.0
      %2471 = vmatpush1.msra.mxu0 0.0
      %2472 = vmatprep.subr.mxu0 0.0
      %2473 = vmatpush1.msra.mxu0 0.0
      %2474 = vmatprep.subr.mxu0 0.0
      %2475 = vmatpush1.msra.mxu0 0.0
      %2476 = vmatprep.mubr.f32.mxu0 0.0
      %2477 = vmatmul.mubr.f32.gmra.mrb[0].mxu0 %v2265
      %v2478 = vpop.f32.mrb[0].mxu0
      %v2479 = vadd.f32 %v2261, %v2478
      %v2480 = vpop.f32.mrb[0].mxu0
      %2481 = vmatprep.mubr.f32.mxu0 0.0
      %2482 = vmatmul.mubr.f32.gmra.mrb[0].mxu0 %v2268
      %v2483 = vpop.f32.mrb[0].mxu0
      %v2484 = vadd.f32 %v2261, %v2483
      %v2485 = vpop.f32.mrb[0].mxu0
      %2486 = vmatprep.mubr.f32.mxu0 0.0
      %2487 = vmatmul.mubr.f32.gmra.mrb[0].mxu0 %v2271
      %v2488 = vpop.f32.mrb[0].mxu0
      %v2489 = vpop.f32.mrb[0].mxu0
      %2490 = vmatprep.mubr.f32.mxu0 0.0
      %2491 = vmatmul.mubr.f32.gmra.mrb[0].mxu0 %v2274
      %v2492 = vpop.f32.mrb[0].mxu0
      %v2493 = vadd.f32 %v2261, %v2492
      %v2494 = vpop.f32.mrb[0].mxu0
      %2495 = vmatprep.mubr.f32.mxu0 0.0
      %2496 = vmatmul.mubr.f32.gmra.mrb[0].mxu0 %v2277
      %v2497 = vpop.f32.mrb[0].mxu0
      %v2498 = vadd.f32 %v2261, %v2497
      %v2499 = vpop.f32.mrb[0].mxu0
      %2500 = vmatprep.mubr.f32.mxu0 0.0
      %2501 = vmatmul.mubr.f32.gmra.mrb[0].mxu0 %v2280
      %v2502 = vpop.f32.mrb[0].mxu0
      %v2503 = vpop.f32.mrb[0].mxu0
      %2504 = vmatprep.mubr.f32.mxu0 0.0
      %2505 = vmatmul.mubr.f32.gmra.mrb[0].mxu0 %v2283
      %v2506 = vpop.f32.mrb[0].mxu0
      %v2507 = vadd.f32 %v2261, %v2506
      %v2508 = vpop.f32.mrb[0].mxu0
      %2509 = vmatprep.mubr.f32.mxu0 0.0
      %2510 = vmatmul.mubr.f32.gmra.mrb[0].mxu0 %v2286
      %v2511 = vpop.f32.mrb[0].mxu0
      %v2512 = vadd.f32 %v2261, %v2511
      %v2513 = vpop.f32.mrb[0].mxu0
      %2514 = vmatprep.mubr.f32.mxu0 0.0
      %2515 = vmatmul.mubr.f32.gmra.mrb[0].mxu0 %v2289
      %v2516 = vpop.f32.mrb[0].mxu0
      %v2517 = vpop.f32.mrb[0].mxu0
      %2518 = vmatprep.mubr.f32.mxu0 0.0
      %2519 = vmatmul.mubr.f32.gmra.mrb[0].mxu0 %v2292
      %v2520 = vpop.f32.mrb[0].mxu0
      %v2521 = vadd.f32 %v2261, %v2520
      %v2522 = vpop.f32.mrb[0].mxu0
      %2523 = vmatprep.mubr.f32.mxu0 0.0
      %2524 = vmatmul.mubr.f32.gmra.mrb[0].mxu0 %v2295
      %v2525 = vpop.f32.mrb[0].mxu0
      %v2526 = vadd.f32 %v2261, %v2525
      %v2527 = vpop.f32.mrb[0].mxu0
      %2528 = vmatprep.mubr.f32.mxu0 0.0
      %2529 = vmatmul.mubr.f32.gmra.mrb[0].mxu0 %v2298
      %v2530 = vpop.f32.mrb[0].mxu0
      %v2531 = vpop.f32.mrb[0].mxu0
      %2532 = vmatprep.mubr.f32.mxu0 0.0
      %2533 = vmatmul.mubr.f32.gmra.mrb[0].mxu0 %v2301
      %v2534 = vpop.f32.mrb[0].mxu0
      %v2535 = vadd.f32 %v2261, %v2534
      %v2536 = vpop.f32.mrb[0].mxu0
      %2537 = vmatprep.mubr.f32.mxu0 0.0
      %2538 = vmatmul.mubr.f32.gmra.mrb[0].mxu0 %v2304
      %v2539 = vpop.f32.mrb[0].mxu0
      %v2540 = vadd.f32 %v2261, %v2539
      %v2541 = vpop.f32.mrb[0].mxu0
      %2542 = vmatprep.mubr.f32.mxu0 0.0
      %2543 = vmatmul.mubr.f32.gmra.mrb[0].mxu0 %v2307
      %v2544 = vpop.f32.mrb[0].mxu0
      %v2545 = vpop.f32.mrb[0].mxu0
      %2546 = vmatprep.mubr.f32.mxu0 0.0
      %2547 = vmatmul.mubr.f32.gmra.mrb[0].mxu0 %v2310
      %v2548 = vpop.f32.mrb[0].mxu0
      %v2549 = vadd.f32 %v2261, %v2548
      %v2550 = vpop.f32.mrb[0].mxu0
      %2551 = vmatprep.mubr.f32.mxu0 0.0
      %2552 = vmatmul.mubr.f32.gmra.mrb[0].mxu0 %v2313
      %v2553 = vpop.f32.mrb[0].mxu0
      %v2554 = vadd.f32 %v2261, %v2553
      %v2555 = vpop.f32.mrb[0].mxu0
      %2556 = vmatprep.mubr.f32.mxu0 0.0
      %2557 = vmatmul.mubr.f32.gmra.mrb[0].mxu0 %v2316
      %v2558 = vpop.f32.mrb[0].mxu0
      %v2559 = vpop.f32.mrb[0].mxu0
      %2560 = vmatprep.mubr.f32.mxu0 0.0
      %2561 = vmatmul.mubr.f32.gmra.mrb[0].mxu0 %v2319
      %v2562 = vpop.f32.mrb[0].mxu0
      %v2563 = vadd.f32 %v2261, %v2562
      %v2564 = vpop.f32.mrb[0].mxu0
      %2565 = vmatprep.mubr.f32.mxu0 0.0
      %2566 = vmatmul.mubr.f32.gmra.mrb[0].mxu0 %v2322
      %v2567 = vpop.f32.mrb[0].mxu0
      %v2568 = vadd.f32 %v2261, %v2567
      %v2569 = vpop.f32.mrb[0].mxu0
      %2570 = vmatprep.mubr.f32.mxu0 0.0
      %2571 = vmatmul.mubr.f32.gmra.mrb[0].mxu0 %v2325
      %v2572 = vpop.f32.mrb[0].mxu0
      %v2573 = vpop.f32.mrb[0].mxu0
      %2574 = vmatprep.mubr.f32.mxu0 0.0
      %2575 = vmatmul.mubr.f32.gmra.mrb[0].mxu0 %v2328
      %v2576 = vpop.f32.mrb[0].mxu0
      %v2577 = vadd.f32 %v2261, %v2576
      %v2578 = vpop.f32.mrb[0].mxu0
      %2579 = vmatprep.mubr.f32.mxu0 0.0
      %2580 = vmatmul.mubr.f32.gmra.mrb[0].mxu0 %v2331
      %v2581 = vpop.f32.mrb[0].mxu0
      %v2582 = vadd.f32 %v2261, %v2581
      %v2583 = vpop.f32.mrb[0].mxu0
      %2584 = vmatprep.mubr.f32.mxu0 0.0
      %2585 = vmatmul.mubr.f32.gmra.mrb[0].mxu0 %v2334
      %v2586 = vpop.f32.mrb[0].mxu0
      %v2587 = vpop.f32.mrb[0].mxu0
      %2588 = vmatprep.mubr.f32.mxu0 0.0
      %2589 = vmatmul.mubr.f32.gmra.mrb[0].mxu0 %v2337
      %v2590 = vpop.f32.mrb[0].mxu0
      %v2591 = vadd.f32 %v2261, %v2590
      %v2592 = vpop.f32.mrb[0].mxu0
      %2593 = vmatprep.mubr.f32.mxu0 0.0
      %2594 = vmatmul.mubr.f32.gmra.mrb[0].mxu0 %v2340
      %v2595 = vpop.f32.mrb[0].mxu0
      %v2596 = vadd.f32 %v2261, %v2595
      %v2597 = vpop.f32.mrb[0].mxu0
      %2598 = vmatprep.mubr.f32.mxu0 0.0
      %2599 = vmatmul.mubr.f32.gmra.mrb[0].mxu0 %v2343
      %v2600 = vpop.f32.mrb[0].mxu0
      %v2601 = vpop.f32.mrb[0].mxu0
      %2602 = vmatprep.mubr.f32.mxu0 0.0
      %2603 = vmatmul.mubr.f32.gmra.mrb[0].mxu0 %v2346
      %v2604 = vpop.f32.mrb[0].mxu0
      %v2605 = vadd.f32 %v2261, %v2604
      %v2606 = vpop.f32.mrb[0].mxu0
      %2607 = vmatprep.mubr.f32.mxu0 0.0
      %2608 = vmatmul.mubr.f32.gmra.mrb[0].mxu0 %v2349
      %v2609 = vpop.f32.mrb[0].mxu0
      %v2610 = vadd.f32 %v2261, %v2609
      %v2611 = vpop.f32.mrb[0].mxu0
      %2612 = vmatprep.mubr.f32.mxu0 0.0
      %2613 = vmatmul.mubr.f32.gmra.mrb[0].mxu0 %v2352
      %v2614 = vpop.f32.mrb[0].mxu0
      %v2615 = vpop.f32.mrb[0].mxu0
      %2616 = vmatprep.mubr.f32.mxu0 0.0
      %2617 = vmatmul.mubr.f32.gmra.mrb[0].mxu0 %v2355
      %v2618 = vpop.f32.mrb[0].mxu0
      %v2619 = vadd.f32 %v2261, %v2618
      %v2620 = vpop.f32.mrb[0].mxu0
      %2621 = vmatprep.mubr.f32.mxu0 0.0
      %2622 = vmatmul.mubr.f32.gmra.mrb[0].mxu0 %v2358
      %v2623 = vpop.f32.mrb[0].mxu0
      %v2624 = vadd.f32 %v2261, %v2623
      %v2625 = vpop.f32.mrb[0].mxu0
      %2626 = vmatprep.mubr.f32.mxu0 0.0
      %2627 = vmatmul.mubr.f32.gmra.mrb[0].mxu0 %v2361
      %v2628 = vpop.f32.mrb[0].mxu0
      %v2629 = vpop.f32.mrb[0].mxu0
      %2630 = vmatprep.mubr.f32.mxu0 0.0
      %2631 = vmatmul.mubr.f32.gmra.mrb[0].mxu0 %v2364
      %v2632 = vpop.f32.mrb[0].mxu0
      %v2633 = vadd.f32 %v2261, %v2632
      %v2634 = vpop.f32.mrb[0].mxu0
      %2635 = vmatprep.mubr.f32.mxu0 0.0
      %2636 = vmatmul.mubr.f32.gmra.mrb[0].mxu0 %v2367
      %v2637 = vpop.f32.mrb[0].mxu0
      %v2638 = vadd.f32 %v2261, %v2637
      %v2639 = vpop.f32.mrb[0].mxu0
      %2640 = vmatprep.mubr.f32.mxu0 0.0
      %2641 = vmatmul.mubr.f32.gmra.mrb[0].mxu0 %v2370
      %v2642 = vpop.f32.mrb[0].mxu0
      %v2643 = vpop.f32.mrb[0].mxu0
      %2644 = vmatprep.mubr.f32.mxu0 0.0
      %2645 = vmatmul.mubr.f32.gmra.mrb[0].mxu0 %v2373
      %v2646 = vpop.f32.mrb[0].mxu0
      %v2647 = vadd.f32 %v2261, %v2646
      %v2648 = vpop.f32.mrb[0].mxu0
      %2649 = vmatprep.mubr.f32.mxu0 0.0
      %2650 = vmatmul.mubr.f32.gmra.mrb[0].mxu0 %v2376
      %v2651 = vpop.f32.mrb[0].mxu0
      %v2652 = vadd.f32 %v2261, %v2651
      %v2653 = vpop.f32.mrb[0].mxu0
      %2654 = vmatprep.mubr.f32.mxu0 0.0
      %2655 = vmatmul.mubr.f32.gmra.mrb[0].mxu0 %v2379
      %v2656 = vpop.f32.mrb[0].mxu0
      %v2657 = vpop.f32.mrb[0].mxu0
      %2658 = vmatprep.mubr.f32.mxu0 0.0
      %2659 = vmatmul.mubr.f32.gmra.mrb[0].mxu0 %v2382
      %v2660 = vpop.f32.mrb[0].mxu0
      %v2661 = vadd.f32 %v2261, %v2660
      %v2662 = vpop.f32.mrb[0].mxu0
      %2663 = vmatprep.mubr.f32.mxu0 0.0
      %2664 = vmatmul.mubr.f32.gmra.mrb[0].mxu0 %v2385
      %v2665 = vpop.f32.mrb[0].mxu0
      %v2666 = vadd.f32 %v2261, %v2665
      %v2667 = vpop.f32.mrb[0].mxu0
      %2668 = vmatprep.mubr.f32.mxu0 0.0
      %2669 = vmatmul.mubr.f32.gmra.mrb[0].mxu0 %v2388
      %v2670 = vpop.f32.mrb[0].mxu0
      %v2671 = vpop.f32.mrb[0].mxu0
      %2672 = vmatprep.mubr.f32.mxu0 0.0
      %2673 = vmatmul.mubr.f32.gmra.mrb[0].mxu0 %v2391
      %v2674 = vpop.f32.mrb[0].mxu0
      %v2675 = vadd.f32 %v2261, %v2674
      %v2676 = vpop.f32.mrb[0].mxu0
      %2677 = vmatprep.mubr.f32.mxu0 0.0
      %2678 = vmatmul.mubr.f32.gmra.mrb[0].mxu0 %v2394
      %v2679 = vpop.f32.mrb[0].mxu0
      %v2680 = vadd.f32 %v2261, %v2679
      %v2681 = vpop.f32.mrb[0].mxu0
      %2682 = vmatprep.mubr.f32.mxu0 0.0
      %2683 = vmatmul.mubr.f32.gmra.mrb[0].mxu0 %v2397
      %v2684 = vpop.f32.mrb[0].mxu0
      %v2685 = vpop.f32.mrb[0].mxu0
      %2686 = vmatprep.mubr.f32.mxu0 0.0
      %2687 = vmatmul.mubr.f32.gmra.mrb[0].mxu0 %v2400
      %v2688 = vpop.f32.mrb[0].mxu0
      %v2689 = vadd.f32 %v2261, %v2688
      %v2690 = vpop.f32.mrb[0].mxu0
      %2691 = vmatprep.mubr.f32.mxu0 0.0
      %2692 = vmatmul.mubr.f32.gmra.mrb[0].mxu0 %v2403
      %v2693 = vpop.f32.mrb[0].mxu0
      %v2694 = vadd.f32 %v2261, %v2693
      %v2695 = vpop.f32.mrb[0].mxu0
      %2696 = vmatprep.mubr.f32.mxu0 0.0
      %2697 = vmatmul.mubr.f32.gmra.mrb[0].mxu0 %v2406
      %v2698 = vpop.f32.mrb[0].mxu0
      %v2699 = vpop.f32.mrb[0].mxu0
      %2700 = vdwg.mxu0
      %v2701 = vmax.f32 %v2479, 0.0
      %v2702 = vmax.f32 %v2484, 0.0
      %v2703 = vmax.f32 %v2493, 0.0
      %v2704 = vmax.f32 %v2498, 0.0
      %v2705 = vmax.f32 %v2507, 0.0
      %v2706 = vmax.f32 %v2512, 0.0
      %v2707 = vmax.f32 %v2521, 0.0
      %v2708 = vmax.f32 %v2526, 0.0
      %v2709 = vmax.f32 %v2535, 0.0
      %v2710 = vmax.f32 %v2540, 0.0
      %v2711 = vmax.f32 %v2549, 0.0
      %v2712 = vmax.f32 %v2554, 0.0
      %v2713 = vmax.f32 %v2563, 0.0
      %v2714 = vmax.f32 %v2568, 0.0
      %v2715 = vmax.f32 %v2577, 0.0
      %v2716 = vmax.f32 %v2582, 0.0
      %v2717 = vmax.f32 %v2591, 0.0
      %v2718 = vmax.f32 %v2596, 0.0
      %v2719 = vmax.f32 %v2605, 0.0
      %v2720 = vmax.f32 %v2610, 0.0
      %v2721 = vmax.f32 %v2619, 0.0
      %v2722 = vmax.f32 %v2624, 0.0
      %v2723 = vmax.f32 %v2633, 0.0
      %v2724 = vmax.f32 %v2638, 0.0
      %v2725 = vmax.f32 %v2647, 0.0
      %v2726 = vmax.f32 %v2652, 0.0
      %v2727 = vmax.f32 %v2661, 0.0
      %v2728 = vmax.f32 %v2666, 0.0
      %v2729 = vmax.f32 %v2675, 0.0
      %v2730 = vmax.f32 %v2680, 0.0
      %v2731 = vmax.f32 %v2689, 0.0
      %v2732 = vmax.f32 %v2694, 0.0
      %2733 = vst.msk [vmem:[%s313 + $0x1] sm:$0xff] %vm257, %v2701
      %2734 = vst.msk [vmem:[%s313 + $0x9] sm:$0xff] %vm257, %v2702
      %2735 = vst.msk [vmem:[%s313 + $0x19] sm:$0xff] %vm257, %v2703
      %2736 = vst.msk [vmem:[%s313 + $0x21] sm:$0xff] %vm257, %v2704
      %2737 = vst.msk [vmem:[%s313 + $0x31] sm:$0xff] %vm257, %v2705
      %2738 = vst.msk [vmem:[%s313 + $0x39] sm:$0xff] %vm257, %v2706
      %2739 = vst.msk [vmem:[%s313 + $0x49] sm:$0xff] %vm257, %v2707
      %2740 = vst.msk [vmem:[%s313 + $0x51] sm:$0xff] %vm257, %v2708
      %2741 = vst.msk [vmem:[%s313 + $0x61] sm:$0xff] %vm257, %v2709
      %2742 = vst.msk [vmem:[%s313 + $0x69] sm:$0xff] %vm257, %v2710
      %2743 = vst.msk [vmem:[%s313 + $0x79] sm:$0xff] %vm257, %v2711
      %2744 = vst.msk [vmem:[%s313 + $0x81] sm:$0xff] %vm257, %v2712
      %2745 = vst.msk [vmem:[%s313 + $0x91] sm:$0xff] %vm257, %v2713
      %2746 = vst.msk [vmem:[%s313 + $0x99] sm:$0xff] %vm257, %v2714
      %2747 = vst.msk [vmem:[%s313 + $0xa9] sm:$0xff] %vm257, %v2715
      %2748 = vst.msk [vmem:[%s313 + $0xb1] sm:$0xff] %vm257, %v2716
      %2749 = vst.msk [vmem:[%s313 + $0xc1] sm:$0xff] %vm257, %v2717
      %2750 = vst.msk [vmem:[%s313 + $0xc9] sm:$0xff] %vm257, %v2718
      %2751 = vst.msk [vmem:[%s313 + $0xd9] sm:$0xff] %vm257, %v2719
      %2752 = vst.msk [vmem:[%s313 + $0xe1] sm:$0xff] %vm257, %v2720
      %2753 = vst.msk [vmem:[%s313 + $0xf1] sm:$0xff] %vm257, %v2721
      %2754 = vst.msk [vmem:[%s313 + $0xf9] sm:$0xff] %vm257, %v2722
      %2755 = vst.msk [vmem:[%s313 + $0x109] sm:$0xff] %vm257, %v2723
      %2756 = vst.msk [vmem:[%s313 + $0x111] sm:$0xff] %vm257, %v2724
      %2757 = vst.msk [vmem:[%s313 + $0x121] sm:$0xff] %vm257, %v2725
      %2758 = vst.msk [vmem:[%s313 + $0x129] sm:$0xff] %vm257, %v2726
      %2759 = vst.msk [vmem:[%s313 + $0x139] sm:$0xff] %vm257, %v2727
      %2760 = vst.msk [vmem:[%s313 + $0x141] sm:$0xff] %vm257, %v2728
      %2761 = vst.msk [vmem:[%s313 + $0x151] sm:$0xff] %vm257, %v2729
      %2762 = vst.msk [vmem:[%s313 + $0x159] sm:$0xff] %vm257, %v2730
      %2763 = vst.msk [vmem:[%s313 + $0x169] sm:$0xff] %vm257, %v2731
      %2764 = vst.msk [vmem:[%s313 + $0x171] sm:$0xff] %vm257, %v2732
      %v2765 = vld [vmem:[#allocation3] sm:$0xff]
      %v2766 = vld [vmem:[#allocation3 + $0x8] sm:$0xff]
      %v2767 = vld [vmem:[#allocation3 + $0x10] sm:$0xff]
      %v2768 = vld [vmem:[#allocation3 + $0x18] sm:$0xff]
      %v2769 = vld [vmem:[#allocation3 + $0x20] sm:$0xff]
      %v2770 = vld [vmem:[#allocation3 + $0x28] sm:$0xff]
      %v2771 = vld [vmem:[#allocation3 + $0x30] sm:$0xff]
      %v2772 = vld [vmem:[#allocation3 + $0x38] sm:$0xff]
      %v2773 = vld [vmem:[#allocation3 + $0x40] sm:$0xff]
      %v2774 = vld [vmem:[#allocation3 + $0x48] sm:$0xff]
      %v2775 = vld [vmem:[#allocation3 + $0x50] sm:$0xff]
      %v2776 = vld [vmem:[#allocation3 + $0x58] sm:$0xff]
      %v2777 = vld [vmem:[#allocation3 + $0x60] sm:$0xff]
      %v2778 = vld [vmem:[#allocation3 + $0x68] sm:$0xff]
      %v2779 = vld [vmem:[#allocation3 + $0x70] sm:$0xff]
      %v2780 = vld [vmem:[#allocation3 + $0x78] sm:$0xff]
      %v2781 = vld [vmem:[#allocation3 + $0x80] sm:$0xff]
      %v2782 = vld [vmem:[#allocation3 + $0x88] sm:$0xff]
      %v2783 = vld [vmem:[#allocation3 + $0x90] sm:$0xff]
      %v2784 = vld [vmem:[#allocation3 + $0x98] sm:$0xff]
      %v2785 = vld [vmem:[#allocation3 + $0xa0] sm:$0xff]
      %v2786 = vld [vmem:[#allocation3 + $0xa8] sm:$0xff]
      %v2787 = vld [vmem:[#allocation3 + $0xb0] sm:$0xff]
      %v2788 = vld [vmem:[#allocation3 + $0xb8] sm:$0xff]
      %v2789 = vld [vmem:[#allocation3 + $0xc0] sm:$0xff]
      %v2790 = vld [vmem:[#allocation3 + $0xc8] sm:$0xff]
      %v2791 = vld [vmem:[#allocation3 + $0xd0] sm:$0xff]
      %v2792 = vld [vmem:[#allocation3 + $0xd8] sm:$0xff]
      %v2793 = vld [vmem:[#allocation3 + $0xe0] sm:$0xff]
      %v2794 = vld [vmem:[#allocation3 + $0xe8] sm:$0xff]
      %v2795 = vld [vmem:[#allocation3 + $0xf0] sm:$0xff]
      %v2796 = vld [vmem:[#allocation3 + $0xf8] sm:$0xff]
      %v2797 = vld [vmem:[#allocation3 + $0x100] sm:$0xff]
      %v2798 = vld [vmem:[#allocation3 + $0x108] sm:$0xff]
      %v2799 = vld [vmem:[#allocation3 + $0x110] sm:$0xff]
      %v2800 = vld [vmem:[#allocation3 + $0x118] sm:$0xff]
      %v2801 = vld [vmem:[#allocation3 + $0x120] sm:$0xff]
      %v2802 = vld [vmem:[#allocation3 + $0x128] sm:$0xff]
      %v2803 = vld [vmem:[#allocation3 + $0x130] sm:$0xff]
      %v2804 = vld [vmem:[#allocation3 + $0x138] sm:$0xff]
      %v2805 = vld [vmem:[#allocation3 + $0x140] sm:$0xff]
      %v2806 = vld [vmem:[#allocation3 + $0x148] sm:$0xff]
      %v2807 = vld [vmem:[#allocation3 + $0x150] sm:$0xff]
      %v2808 = vld [vmem:[#allocation3 + $0x158] sm:$0xff]
      %v2809 = vld [vmem:[#allocation3 + $0x160] sm:$0xff]
      %v2810 = vld [vmem:[#allocation3 + $0x168] sm:$0xff]
      %v2811 = vld [vmem:[#allocation3 + $0x170] sm:$0xff]
      %v2812 = vld [vmem:[#allocation3 + $0x178] sm:$0xff]
      %v2813 = vld [vmem:[#allocation3 + $0x180] sm:$0xff]
      %v2814 = vld [vmem:[#allocation3 + $0x188] sm:$0xff]
      %v2815 = vld [vmem:[#allocation3 + $0x190] sm:$0xff]
      %v2816 = vld [vmem:[#allocation3 + $0x198] sm:$0xff]
      %v2817 = vld [vmem:[#allocation3 + $0x1a0] sm:$0xff]
      %v2818 = vld [vmem:[#allocation3 + $0x1a8] sm:$0xff]
      %v2819 = vld [vmem:[#allocation3 + $0x1b0] sm:$0xff]
      %v2869 = vrot.slane %v2765, 1
      %v2870 = vrot.slane %v2766, 1
      %v2871 = vsel %vm482, %v2869, %v2870
      %v2872 = vrot.slane %v2767, 1
      %v2873 = vsel %vm482, %v2870, %v2872
      %v2874 = vrot.slane %v2768, 1
      %v2875 = vsel %vm482, %v2872, %v2874
      %v2876 = vrot.slane %v2769, 1
      %v2877 = vsel %vm482, %v2874, %v2876
      %v2878 = vrot.slane %v2770, 1
      %v2879 = vsel %vm482, %v2876, %v2878
      %v2880 = vrot.slane %v2771, 1
      %v2881 = vsel %vm482, %v2878, %v2880
      %v2882 = vrot.slane %v2772, 1
      %v2883 = vsel %vm482, %v2880, %v2882
      %v2884 = vrot.slane %v2773, 1
      %v2885 = vsel %vm482, %v2882, %v2884
      %v2886 = vrot.slane %v2774, 1
      %v2887 = vsel %vm482, %v2884, %v2886
      %v2888 = vrot.slane %v2775, 1
      %v2889 = vsel %vm482, %v2886, %v2888
      %v2890 = vrot.slane %v2776, 1
      %v2891 = vsel %vm482, %v2888, %v2890
      %v2892 = vrot.slane %v2777, 1
      %v2893 = vsel %vm482, %v2890, %v2892
      %v2894 = vrot.slane %v2778, 1
      %v2895 = vsel %vm482, %v2892, %v2894
      %v2896 = vrot.slane %v2779, 1
      %v2897 = vsel %vm482, %v2894, %v2896
      %v2898 = vrot.slane %v2780, 1
      %v2899 = vsel %vm482, %v2896, %v2898
      %v2900 = vrot.slane %v2781, 1
      %v2901 = vsel %vm482, %v2898, %v2900
      %v2902 = vrot.slane %v2782, 1
      %v2903 = vsel %vm482, %v2900, %v2902
      %v2904 = vrot.slane %v2783, 1
      %v2905 = vsel %vm482, %v2902, %v2904
      %v2906 = vrot.slane %v2784, 1
      %v2907 = vsel %vm482, %v2904, %v2906
      %v2908 = vrot.slane %v2785, 1
      %v2909 = vsel %vm482, %v2906, %v2908
      %v2910 = vrot.slane %v2786, 1
      %v2911 = vsel %vm482, %v2908, %v2910
      %v2912 = vrot.slane %v2787, 1
      %v2913 = vsel %vm482, %v2910, %v2912
      %v2914 = vrot.slane %v2788, 1
      %v2915 = vsel %vm482, %v2912, %v2914
      %v2916 = vrot.slane %v2789, 1
      %v2917 = vsel %vm482, %v2914, %v2916
      %v2918 = vrot.slane %v2790, 1
      %v2919 = vsel %vm482, %v2916, %v2918
      %v2920 = vrot.slane %v2791, 1
      %v2921 = vsel %vm482, %v2918, %v2920
      %v2922 = vrot.slane %v2792, 1
      %v2923 = vsel %vm482, %v2920, %v2922
      %v2924 = vrot.slane %v2793, 1
      %v2925 = vsel %vm482, %v2922, %v2924
      %v2926 = vrot.slane %v2794, 1
      %v2927 = vsel %vm482, %v2924, %v2926
      %v2928 = vrot.slane %v2795, 1
      %v2929 = vsel %vm482, %v2926, %v2928
      %v2930 = vrot.slane %v2796, 1
      %v2931 = vsel %vm482, %v2928, %v2930
      %v2932 = vrot.slane %v2797, 1
      %v2933 = vsel %vm482, %v2930, %v2932
      %v2934 = vrot.slane %v2798, 1
      %v2935 = vsel %vm482, %v2932, %v2934
      %v2936 = vrot.slane %v2799, 1
      %v2937 = vsel %vm482, %v2934, %v2936
      %v2938 = vrot.slane %v2800, 1
      %v2939 = vsel %vm482, %v2936, %v2938
      %v2940 = vrot.slane %v2801, 1
      %v2941 = vsel %vm482, %v2938, %v2940
      %v2942 = vrot.slane %v2802, 1
      %v2943 = vsel %vm482, %v2940, %v2942
      %v2944 = vrot.slane %v2803, 1
      %v2945 = vsel %vm482, %v2942, %v2944
      %v2946 = vrot.slane %v2804, 1
      %v2947 = vsel %vm482, %v2944, %v2946
      %v2948 = vrot.slane %v2805, 1
      %v2949 = vsel %vm482, %v2946, %v2948
      %v2950 = vrot.slane %v2806, 1
      %v2951 = vsel %vm482, %v2948, %v2950
      %v2952 = vrot.slane %v2807, 1
      %v2953 = vsel %vm482, %v2950, %v2952
      %v2954 = vrot.slane %v2808, 1
      %v2955 = vsel %vm482, %v2952, %v2954
      %v2956 = vrot.slane %v2809, 1
      %v2957 = vsel %vm482, %v2954, %v2956
      %v2958 = vrot.slane %v2810, 1
      %v2959 = vsel %vm482, %v2956, %v2958
      %v2960 = vrot.slane %v2811, 1
      %v2961 = vsel %vm482, %v2958, %v2960
      %v2962 = vrot.slane %v2812, 1
      %v2963 = vsel %vm482, %v2960, %v2962
      %v2964 = vrot.slane %v2813, 1
      %v2965 = vsel %vm482, %v2962, %v2964
      %2966 = vrot.lane.b32.xlu0 %v2871, 4
      %v2967 = vpop.permute.xlu0 %2966
      %2968 = vrot.lane.b32.xlu0 %v2873, 4
      %v2969 = vpop.permute.xlu0 %2968
      %2970 = vrot.lane.b32.xlu0 %v2875, 4
      %v2971 = vpop.permute.xlu0 %2970
      %2972 = vrot.lane.b32.xlu0 %v2877, 4
      %v2973 = vpop.permute.xlu0 %2972
      %2974 = vrot.lane.b32.xlu0 %v2879, 4
      %v2975 = vpop.permute.xlu0 %2974
      %2976 = vrot.lane.b32.xlu0 %v2881, 4
      %v2977 = vpop.permute.xlu0 %2976
      %2978 = vrot.lane.b32.xlu0 %v2883, 4
      %v2979 = vpop.permute.xlu0 %2978
      %2980 = vrot.lane.b32.xlu0 %v2885, 4
      %v2981 = vpop.permute.xlu0 %2980
      %2982 = vrot.lane.b32.xlu0 %v2887, 4
      %v2983 = vpop.permute.xlu0 %2982
      %2984 = vrot.lane.b32.xlu0 %v2889, 4
      %v2985 = vpop.permute.xlu0 %2984
      %2986 = vrot.lane.b32.xlu0 %v2891, 4
      %v2987 = vpop.permute.xlu0 %2986
      %2988 = vrot.lane.b32.xlu0 %v2893, 4
      %v2989 = vpop.permute.xlu0 %2988
      %2990 = vrot.lane.b32.xlu0 %v2895, 4
      %v2991 = vpop.permute.xlu0 %2990
      %2992 = vrot.lane.b32.xlu0 %v2897, 4
      %v2993 = vpop.permute.xlu0 %2992
      %2994 = vrot.lane.b32.xlu0 %v2899, 4
      %v2995 = vpop.permute.xlu0 %2994
      %2996 = vrot.lane.b32.xlu0 %v2901, 4
      %v2997 = vpop.permute.xlu0 %2996
      %2998 = vrot.lane.b32.xlu0 %v2903, 4
      %v2999 = vpop.permute.xlu0 %2998
      %3000 = vrot.lane.b32.xlu0 %v2905, 4
      %v3001 = vpop.permute.xlu0 %3000
      %3002 = vrot.lane.b32.xlu0 %v2907, 4
      %v3003 = vpop.permute.xlu0 %3002
      %3004 = vrot.lane.b32.xlu0 %v2909, 4
      %v3005 = vpop.permute.xlu0 %3004
      %3006 = vrot.lane.b32.xlu0 %v2911, 4
      %v3007 = vpop.permute.xlu0 %3006
      %3008 = vrot.lane.b32.xlu0 %v2913, 4
      %v3009 = vpop.permute.xlu0 %3008
      %3010 = vrot.lane.b32.xlu0 %v2915, 4
      %v3011 = vpop.permute.xlu0 %3010
      %3012 = vrot.lane.b32.xlu0 %v2917, 4
      %v3013 = vpop.permute.xlu0 %3012
      %3014 = vrot.lane.b32.xlu0 %v2919, 4
      %v3015 = vpop.permute.xlu0 %3014
      %3016 = vrot.lane.b32.xlu0 %v2921, 4
      %v3017 = vpop.permute.xlu0 %3016
      %3018 = vrot.lane.b32.xlu0 %v2923, 4
      %v3019 = vpop.permute.xlu0 %3018
      %3020 = vrot.lane.b32.xlu0 %v2925, 4
      %v3021 = vpop.permute.xlu0 %3020
      %3022 = vrot.lane.b32.xlu0 %v2927, 4
      %v3023 = vpop.permute.xlu0 %3022
      %3024 = vrot.lane.b32.xlu0 %v2929, 4
      %v3025 = vpop.permute.xlu0 %3024
      %3026 = vrot.lane.b32.xlu0 %v2931, 4
      %v3027 = vpop.permute.xlu0 %3026
      %3028 = vrot.lane.b32.xlu0 %v2933, 4
      %v3029 = vpop.permute.xlu0 %3028
      %3030 = vrot.lane.b32.xlu0 %v2935, 4
      %v3031 = vpop.permute.xlu0 %3030
      %3032 = vrot.lane.b32.xlu0 %v2937, 4
      %v3033 = vpop.permute.xlu0 %3032
      %3034 = vrot.lane.b32.xlu0 %v2939, 4
      %v3035 = vpop.permute.xlu0 %3034
      %3036 = vrot.lane.b32.xlu0 %v2941, 4
      %v3037 = vpop.permute.xlu0 %3036
      %3038 = vrot.lane.b32.xlu0 %v2943, 4
      %v3039 = vpop.permute.xlu0 %3038
      %3040 = vrot.lane.b32.xlu0 %v2945, 4
      %v3041 = vpop.permute.xlu0 %3040
      %3042 = vrot.lane.b32.xlu0 %v2947, 4
      %v3043 = vpop.permute.xlu0 %3042
      %3044 = vrot.lane.b32.xlu0 %v2949, 4
      %v3045 = vpop.permute.xlu0 %3044
      %3046 = vrot.lane.b32.xlu0 %v2951, 4
      %v3047 = vpop.permute.xlu0 %3046
      %3048 = vrot.lane.b32.xlu0 %v2953, 4
      %v3049 = vpop.permute.xlu0 %3048
      %3050 = vrot.lane.b32.xlu0 %v2955, 4
      %v3051 = vpop.permute.xlu0 %3050
      %3052 = vrot.lane.b32.xlu0 %v2957, 4
      %v3053 = vpop.permute.xlu0 %3052
      %3054 = vrot.lane.b32.xlu0 %v2959, 4
      %v3055 = vpop.permute.xlu0 %3054
      %3056 = vrot.lane.b32.xlu0 %v2961, 4
      %v3057 = vpop.permute.xlu0 %3056
      %3058 = vrot.lane.b32.xlu0 %v2963, 4
      %v3059 = vpop.permute.xlu0 %3058
      %3060 = vrot.lane.b32.xlu0 %v2965, 4
      %v3061 = vpop.permute.xlu0 %3060
      %v3110 = vrot.slane %v2765, 2
      %v3111 = vrot.slane %v2766, 2
      %v3112 = vsel %vm724, %v3110, %v3111
      %v3113 = vrot.slane %v2767, 2
      %v3114 = vsel %vm724, %v3111, %v3113
      %v3115 = vrot.slane %v2768, 2
      %v3116 = vsel %vm724, %v3113, %v3115
      %v3117 = vrot.slane %v2769, 2
      %v3118 = vsel %vm724, %v3115, %v3117
      %v3119 = vrot.slane %v2770, 2
      %v3120 = vsel %vm724, %v3117, %v3119
      %v3121 = vrot.slane %v2771, 2
      %v3122 = vsel %vm724, %v3119, %v3121
      %v3123 = vrot.slane %v2772, 2
      %v3124 = vsel %vm724, %v3121, %v3123
      %v3125 = vrot.slane %v2773, 2
      %v3126 = vsel %vm724, %v3123, %v3125
      %v3127 = vrot.slane %v2774, 2
      %v3128 = vsel %vm724, %v3125, %v3127
      %v3129 = vrot.slane %v2775, 2
      %v3130 = vsel %vm724, %v3127, %v3129
      %v3131 = vrot.slane %v2776, 2
      %v3132 = vsel %vm724, %v3129, %v3131
      %v3133 = vrot.slane %v2777, 2
      %v3134 = vsel %vm724, %v3131, %v3133
      %v3135 = vrot.slane %v2778, 2
      %v3136 = vsel %vm724, %v3133, %v3135
      %v3137 = vrot.slane %v2779, 2
      %v3138 = vsel %vm724, %v3135, %v3137
      %v3139 = vrot.slane %v2780, 2
      %v3140 = vsel %vm724, %v3137, %v3139
      %v3141 = vrot.slane %v2781, 2
      %v3142 = vsel %vm724, %v3139, %v3141
      %v3143 = vrot.slane %v2782, 2
      %v3144 = vsel %vm724, %v3141, %v3143
      %v3145 = vrot.slane %v2783, 2
      %v3146 = vsel %vm724, %v3143, %v3145
      %v3147 = vrot.slane %v2784, 2
      %v3148 = vsel %vm724, %v3145, %v3147
      %v3149 = vrot.slane %v2785, 2
      %v3150 = vsel %vm724, %v3147, %v3149
      %v3151 = vrot.slane %v2786, 2
      %v3152 = vsel %vm724, %v3149, %v3151
      %v3153 = vrot.slane %v2787, 2
      %v3154 = vsel %vm724, %v3151, %v3153
      %v3155 = vrot.slane %v2788, 2
      %v3156 = vsel %vm724, %v3153, %v3155
      %v3157 = vrot.slane %v2789, 2
      %v3158 = vsel %vm724, %v3155, %v3157
      %v3159 = vrot.slane %v2790, 2
      %v3160 = vsel %vm724, %v3157, %v3159
      %v3161 = vrot.slane %v2791, 2
      %v3162 = vsel %vm724, %v3159, %v3161
      %v3163 = vrot.slane %v2792, 2
      %v3164 = vsel %vm724, %v3161, %v3163
      %v3165 = vrot.slane %v2793, 2
      %v3166 = vsel %vm724, %v3163, %v3165
      %v3167 = vrot.slane %v2794, 2
      %v3168 = vsel %vm724, %v3165, %v3167
      %v3169 = vrot.slane %v2795, 2
      %v3170 = vsel %vm724, %v3167, %v3169
      %v3171 = vrot.slane %v2796, 2
      %v3172 = vsel %vm724, %v3169, %v3171
      %v3173 = vrot.slane %v2797, 2
      %v3174 = vsel %vm724, %v3171, %v3173
      %v3175 = vrot.slane %v2798, 2
      %v3176 = vsel %vm724, %v3173, %v3175
      %v3177 = vrot.slane %v2799, 2
      %v3178 = vsel %vm724, %v3175, %v3177
      %v3179 = vrot.slane %v2800, 2
      %v3180 = vsel %vm724, %v3177, %v3179
      %v3181 = vrot.slane %v2801, 2
      %v3182 = vsel %vm724, %v3179, %v3181
      %v3183 = vrot.slane %v2802, 2
      %v3184 = vsel %vm724, %v3181, %v3183
      %v3185 = vrot.slane %v2803, 2
      %v3186 = vsel %vm724, %v3183, %v3185
      %v3187 = vrot.slane %v2804, 2
      %v3188 = vsel %vm724, %v3185, %v3187
      %v3189 = vrot.slane %v2805, 2
      %v3190 = vsel %vm724, %v3187, %v3189
      %v3191 = vrot.slane %v2806, 2
      %v3192 = vsel %vm724, %v3189, %v3191
      %v3193 = vrot.slane %v2807, 2
      %v3194 = vsel %vm724, %v3191, %v3193
      %v3195 = vrot.slane %v2808, 2
      %v3196 = vsel %vm724, %v3193, %v3195
      %v3197 = vrot.slane %v2809, 2
      %v3198 = vsel %vm724, %v3195, %v3197
      %v3199 = vrot.slane %v2810, 2
      %v3200 = vsel %vm724, %v3197, %v3199
      %v3201 = vrot.slane %v2811, 2
      %v3202 = vsel %vm724, %v3199, %v3201
      %v3203 = vrot.slane %v2812, 2
      %v3204 = vsel %vm724, %v3201, %v3203
      %v3205 = vrot.slane %v2813, 2
      %v3206 = vsel %vm724, %v3203, %v3205
      %3207 = vrot.lane.b32.xlu0 %v3112, 8
      %v3208 = vpop.permute.xlu0 %3207
      %3209 = vrot.lane.b32.xlu0 %v3114, 8
      %v3210 = vpop.permute.xlu0 %3209
      %3211 = vrot.lane.b32.xlu0 %v3116, 8
      %v3212 = vpop.permute.xlu0 %3211
      %3213 = vrot.lane.b32.xlu0 %v3118, 8
      %v3214 = vpop.permute.xlu0 %3213
      %3215 = vrot.lane.b32.xlu0 %v3120, 8
      %v3216 = vpop.permute.xlu0 %3215
      %3217 = vrot.lane.b32.xlu0 %v3122, 8
      %v3218 = vpop.permute.xlu0 %3217
      %3219 = vrot.lane.b32.xlu0 %v3124, 8
      %v3220 = vpop.permute.xlu0 %3219
      %3221 = vrot.lane.b32.xlu0 %v3126, 8
      %v3222 = vpop.permute.xlu0 %3221
      %3223 = vrot.lane.b32.xlu0 %v3128, 8
      %v3224 = vpop.permute.xlu0 %3223
      %3225 = vrot.lane.b32.xlu0 %v3130, 8
      %v3226 = vpop.permute.xlu0 %3225
      %3227 = vrot.lane.b32.xlu0 %v3132, 8
      %v3228 = vpop.permute.xlu0 %3227
      %3229 = vrot.lane.b32.xlu0 %v3134, 8
      %v3230 = vpop.permute.xlu0 %3229
      %3231 = vrot.lane.b32.xlu0 %v3136, 8
      %v3232 = vpop.permute.xlu0 %3231
      %3233 = vrot.lane.b32.xlu0 %v3138, 8
      %v3234 = vpop.permute.xlu0 %3233
      %3235 = vrot.lane.b32.xlu0 %v3140, 8
      %v3236 = vpop.permute.xlu0 %3235
      %3237 = vrot.lane.b32.xlu0 %v3142, 8
      %v3238 = vpop.permute.xlu0 %3237
      %3239 = vrot.lane.b32.xlu0 %v3144, 8
      %v3240 = vpop.permute.xlu0 %3239
      %3241 = vrot.lane.b32.xlu0 %v3146, 8
      %v3242 = vpop.permute.xlu0 %3241
      %3243 = vrot.lane.b32.xlu0 %v3148, 8
      %v3244 = vpop.permute.xlu0 %3243
      %3245 = vrot.lane.b32.xlu0 %v3150, 8
      %v3246 = vpop.permute.xlu0 %3245
      %3247 = vrot.lane.b32.xlu0 %v3152, 8
      %v3248 = vpop.permute.xlu0 %3247
      %3249 = vrot.lane.b32.xlu0 %v3154, 8
      %v3250 = vpop.permute.xlu0 %3249
      %3251 = vrot.lane.b32.xlu0 %v3156, 8
      %v3252 = vpop.permute.xlu0 %3251
      %3253 = vrot.lane.b32.xlu0 %v3158, 8
      %v3254 = vpop.permute.xlu0 %3253
      %3255 = vrot.lane.b32.xlu0 %v3160, 8
      %v3256 = vpop.permute.xlu0 %3255
      %3257 = vrot.lane.b32.xlu0 %v3162, 8
      %v3258 = vpop.permute.xlu0 %3257
      %3259 = vrot.lane.b32.xlu0 %v3164, 8
      %v3260 = vpop.permute.xlu0 %3259
      %3261 = vrot.lane.b32.xlu0 %v3166, 8
      %v3262 = vpop.permute.xlu0 %3261
      %3263 = vrot.lane.b32.xlu0 %v3168, 8
      %v3264 = vpop.permute.xlu0 %3263
      %3265 = vrot.lane.b32.xlu0 %v3170, 8
      %v3266 = vpop.permute.xlu0 %3265
      %3267 = vrot.lane.b32.xlu0 %v3172, 8
      %v3268 = vpop.permute.xlu0 %3267
      %3269 = vrot.lane.b32.xlu0 %v3174, 8
      %v3270 = vpop.permute.xlu0 %3269
      %3271 = vrot.lane.b32.xlu0 %v3176, 8
      %v3272 = vpop.permute.xlu0 %3271
      %3273 = vrot.lane.b32.xlu0 %v3178, 8
      %v3274 = vpop.permute.xlu0 %3273
      %3275 = vrot.lane.b32.xlu0 %v3180, 8
      %v3276 = vpop.permute.xlu0 %3275
      %3277 = vrot.lane.b32.xlu0 %v3182, 8
      %v3278 = vpop.permute.xlu0 %3277
      %3279 = vrot.lane.b32.xlu0 %v3184, 8
      %v3280 = vpop.permute.xlu0 %3279
      %3281 = vrot.lane.b32.xlu0 %v3186, 8
      %v3282 = vpop.permute.xlu0 %3281
      %3283 = vrot.lane.b32.xlu0 %v3188, 8
      %v3284 = vpop.permute.xlu0 %3283
      %3285 = vrot.lane.b32.xlu0 %v3190, 8
      %v3286 = vpop.permute.xlu0 %3285
      %3287 = vrot.lane.b32.xlu0 %v3192, 8
      %v3288 = vpop.permute.xlu0 %3287
      %3289 = vrot.lane.b32.xlu0 %v3194, 8
      %v3290 = vpop.permute.xlu0 %3289
      %3291 = vrot.lane.b32.xlu0 %v3196, 8
      %v3292 = vpop.permute.xlu0 %3291
      %3293 = vrot.lane.b32.xlu0 %v3198, 8
      %v3294 = vpop.permute.xlu0 %3293
      %3295 = vrot.lane.b32.xlu0 %v3200, 8
      %v3296 = vpop.permute.xlu0 %3295
      %3297 = vrot.lane.b32.xlu0 %v3202, 8
      %v3298 = vpop.permute.xlu0 %3297
      %3299 = vrot.lane.b32.xlu0 %v3204, 8
      %v3300 = vpop.permute.xlu0 %3299
      %3301 = vrot.lane.b32.xlu0 %v3206, 8
      %v3302 = vpop.permute.xlu0 %3301
      %3353 = vrot.lane.b32.xlu0 %v2768, 12
      %v3354 = vpop.permute.xlu0 %3353
      %3355 = vrot.lane.b32.xlu0 %v2769, 12
      %v3356 = vpop.permute.xlu0 %3355
      %3357 = vrot.lane.b32.xlu0 %v2770, 12
      %v3358 = vpop.permute.xlu0 %3357
      %3359 = vrot.lane.b32.xlu0 %v2771, 12
      %v3360 = vpop.permute.xlu0 %3359
      %3361 = vrot.lane.b32.xlu0 %v2772, 12
      %v3362 = vpop.permute.xlu0 %3361
      %3363 = vrot.lane.b32.xlu0 %v2773, 12
      %v3364 = vpop.permute.xlu0 %3363
      %3365 = vrot.lane.b32.xlu0 %v2774, 12
      %v3366 = vpop.permute.xlu0 %3365
      %3367 = vrot.lane.b32.xlu0 %v2775, 12
      %v3368 = vpop.permute.xlu0 %3367
      %3369 = vrot.lane.b32.xlu0 %v2776, 12
      %v3370 = vpop.permute.xlu0 %3369
      %3371 = vrot.lane.b32.xlu0 %v2777, 12
      %v3372 = vpop.permute.xlu0 %3371
      %3373 = vrot.lane.b32.xlu0 %v2778, 12
      %v3374 = vpop.permute.xlu0 %3373
      %3375 = vrot.lane.b32.xlu0 %v2779, 12
      %v3376 = vpop.permute.xlu0 %3375
      %3377 = vrot.lane.b32.xlu0 %v2780, 12
      %v3378 = vpop.permute.xlu0 %3377
      %3379 = vrot.lane.b32.xlu0 %v2781, 12
      %v3380 = vpop.permute.xlu0 %3379
      %3381 = vrot.lane.b32.xlu0 %v2782, 12
      %v3382 = vpop.permute.xlu0 %3381
      %3383 = vrot.lane.b32.xlu0 %v2783, 12
      %v3384 = vpop.permute.xlu0 %3383
      %3385 = vrot.lane.b32.xlu0 %v2784, 12
      %v3386 = vpop.permute.xlu0 %3385
      %3387 = vrot.lane.b32.xlu0 %v2785, 12
      %v3388 = vpop.permute.xlu0 %3387
      %3389 = vrot.lane.b32.xlu0 %v2786, 12
      %v3390 = vpop.permute.xlu0 %3389
      %3391 = vrot.lane.b32.xlu0 %v2787, 12
      %v3392 = vpop.permute.xlu0 %3391
      %3393 = vrot.lane.b32.xlu0 %v2788, 12
      %v3394 = vpop.permute.xlu0 %3393
      %3395 = vrot.lane.b32.xlu0 %v2789, 12
      %v3396 = vpop.permute.xlu0 %3395
      %3397 = vrot.lane.b32.xlu0 %v2790, 12
      %v3398 = vpop.permute.xlu0 %3397
      %3399 = vrot.lane.b32.xlu0 %v2791, 12
      %v3400 = vpop.permute.xlu0 %3399
      %3401 = vrot.lane.b32.xlu0 %v2792, 12
      %v3402 = vpop.permute.xlu0 %3401
      %3403 = vrot.lane.b32.xlu0 %v2793, 12
      %v3404 = vpop.permute.xlu0 %3403
      %3405 = vrot.lane.b32.xlu0 %v2794, 12
      %v3406 = vpop.permute.xlu0 %3405
      %3407 = vrot.lane.b32.xlu0 %v2795, 12
      %v3408 = vpop.permute.xlu0 %3407
      %3409 = vrot.lane.b32.xlu0 %v2796, 12
      %v3410 = vpop.permute.xlu0 %3409
      %3411 = vrot.lane.b32.xlu0 %v2797, 12
      %v3412 = vpop.permute.xlu0 %3411
      %3413 = vrot.lane.b32.xlu0 %v2798, 12
      %v3414 = vpop.permute.xlu0 %3413
      %3415 = vrot.lane.b32.xlu0 %v2799, 12
      %v3416 = vpop.permute.xlu0 %3415
      %3417 = vrot.lane.b32.xlu0 %v2800, 12
      %v3418 = vpop.permute.xlu0 %3417
      %3419 = vrot.lane.b32.xlu0 %v2801, 12
      %v3420 = vpop.permute.xlu0 %3419
      %3421 = vrot.lane.b32.xlu0 %v2802, 12
      %v3422 = vpop.permute.xlu0 %3421
      %3423 = vrot.lane.b32.xlu0 %v2803, 12
      %v3424 = vpop.permute.xlu0 %3423
      %3425 = vrot.lane.b32.xlu0 %v2804, 12
      %v3426 = vpop.permute.xlu0 %3425
      %3427 = vrot.lane.b32.xlu0 %v2805, 12
      %v3428 = vpop.permute.xlu0 %3427
      %3429 = vrot.lane.b32.xlu0 %v2806, 12
      %v3430 = vpop.permute.xlu0 %3429
      %3431 = vrot.lane.b32.xlu0 %v2807, 12
      %v3432 = vpop.permute.xlu0 %3431
      %3433 = vrot.lane.b32.xlu0 %v2808, 12
      %v3434 = vpop.permute.xlu0 %3433
      %3435 = vrot.lane.b32.xlu0 %v2809, 12
      %v3436 = vpop.permute.xlu0 %3435
      %3437 = vrot.lane.b32.xlu0 %v2810, 12
      %v3438 = vpop.permute.xlu0 %3437
      %3439 = vrot.lane.b32.xlu0 %v2811, 12
      %v3440 = vpop.permute.xlu0 %3439
      %3441 = vrot.lane.b32.xlu0 %v2812, 12
      %v3442 = vpop.permute.xlu0 %3441
      %3443 = vrot.lane.b32.xlu0 %v2813, 12
      %v3444 = vpop.permute.xlu0 %3443
      %3445 = vrot.lane.b32.xlu0 %v2814, 12
      %v3446 = vpop.permute.xlu0 %3445
      %3447 = vrot.lane.b32.xlu0 %v2815, 12
      %v3448 = vpop.permute.xlu0 %3447
      %v3498 = vrot.slane %v2814, 1
      %v3499 = vsel %vm482, %v2964, %v3498
      %v3500 = vrot.slane %v2815, 1
      %v3501 = vsel %vm482, %v3498, %v3500
      %v3502 = vrot.slane %v2816, 1
      %v3503 = vsel %vm482, %v3500, %v3502
      %3504 = vrot.lane.b32.xlu0 %v2877, 16
      %v3505 = vpop.permute.xlu0 %3504
      %3506 = vrot.lane.b32.xlu0 %v2879, 16
      %v3507 = vpop.permute.xlu0 %3506
      %3508 = vrot.lane.b32.xlu0 %v2881, 16
      %v3509 = vpop.permute.xlu0 %3508
      %3510 = vrot.lane.b32.xlu0 %v2883, 16
      %v3511 = vpop.permute.xlu0 %3510
      %3512 = vrot.lane.b32.xlu0 %v2885, 16
      %v3513 = vpop.permute.xlu0 %3512
      %3514 = vrot.lane.b32.xlu0 %v2887, 16
      %v3515 = vpop.permute.xlu0 %3514
      %3516 = vrot.lane.b32.xlu0 %v2889, 16
      %v3517 = vpop.permute.xlu0 %3516
      %3518 = vrot.lane.b32.xlu0 %v2891, 16
      %v3519 = vpop.permute.xlu0 %3518
      %3520 = vrot.lane.b32.xlu0 %v2893, 16
      %v3521 = vpop.permute.xlu0 %3520
      %3522 = vrot.lane.b32.xlu0 %v2895, 16
      %v3523 = vpop.permute.xlu0 %3522
      %3524 = vrot.lane.b32.xlu0 %v2897, 16
      %v3525 = vpop.permute.xlu0 %3524
      %3526 = vrot.lane.b32.xlu0 %v2899, 16
      %v3527 = vpop.permute.xlu0 %3526
      %3528 = vrot.lane.b32.xlu0 %v2901, 16
      %v3529 = vpop.permute.xlu0 %3528
      %3530 = vrot.lane.b32.xlu0 %v2903, 16
      %v3531 = vpop.permute.xlu0 %3530
      %3532 = vrot.lane.b32.xlu0 %v2905, 16
      %v3533 = vpop.permute.xlu0 %3532
      %3534 = vrot.lane.b32.xlu0 %v2907, 16
      %v3535 = vpop.permute.xlu0 %3534
      %3536 = vrot.lane.b32.xlu0 %v2909, 16
      %v3537 = vpop.permute.xlu0 %3536
      %3538 = vrot.lane.b32.xlu0 %v2911, 16
      %v3539 = vpop.permute.xlu0 %3538
      %3540 = vrot.lane.b32.xlu0 %v2913, 16
      %v3541 = vpop.permute.xlu0 %3540
      %3542 = vrot.lane.b32.xlu0 %v2915, 16
      %v3543 = vpop.permute.xlu0 %3542
      %3544 = vrot.lane.b32.xlu0 %v2917, 16
      %v3545 = vpop.permute.xlu0 %3544
      %3546 = vrot.lane.b32.xlu0 %v2919, 16
      %v3547 = vpop.permute.xlu0 %3546
      %3548 = vrot.lane.b32.xlu0 %v2921, 16
      %v3549 = vpop.permute.xlu0 %3548
      %3550 = vrot.lane.b32.xlu0 %v2923, 16
      %v3551 = vpop.permute.xlu0 %3550
      %3552 = vrot.lane.b32.xlu0 %v2925, 16
      %v3553 = vpop.permute.xlu0 %3552
      %3554 = vrot.lane.b32.xlu0 %v2927, 16
      %v3555 = vpop.permute.xlu0 %3554
      %3556 = vrot.lane.b32.xlu0 %v2929, 16
      %v3557 = vpop.permute.xlu0 %3556
      %3558 = vrot.lane.b32.xlu0 %v2931, 16
      %v3559 = vpop.permute.xlu0 %3558
      %3560 = vrot.lane.b32.xlu0 %v2933, 16
      %v3561 = vpop.permute.xlu0 %3560
      %3562 = vrot.lane.b32.xlu0 %v2935, 16
      %v3563 = vpop.permute.xlu0 %3562
      %3564 = vrot.lane.b32.xlu0 %v2937, 16
      %v3565 = vpop.permute.xlu0 %3564
      %3566 = vrot.lane.b32.xlu0 %v2939, 16
      %v3567 = vpop.permute.xlu0 %3566
      %3568 = vrot.lane.b32.xlu0 %v2941, 16
      %v3569 = vpop.permute.xlu0 %3568
      %3570 = vrot.lane.b32.xlu0 %v2943, 16
      %v3571 = vpop.permute.xlu0 %3570
      %3572 = vrot.lane.b32.xlu0 %v2945, 16
      %v3573 = vpop.permute.xlu0 %3572
      %3574 = vrot.lane.b32.xlu0 %v2947, 16
      %v3575 = vpop.permute.xlu0 %3574
      %3576 = vrot.lane.b32.xlu0 %v2949, 16
      %v3577 = vpop.permute.xlu0 %3576
      %3578 = vrot.lane.b32.xlu0 %v2951, 16
      %v3579 = vpop.permute.xlu0 %3578
      %3580 = vrot.lane.b32.xlu0 %v2953, 16
      %v3581 = vpop.permute.xlu0 %3580
      %3582 = vrot.lane.b32.xlu0 %v2955, 16
      %v3583 = vpop.permute.xlu0 %3582
      %3584 = vrot.lane.b32.xlu0 %v2957, 16
      %v3585 = vpop.permute.xlu0 %3584
      %3586 = vrot.lane.b32.xlu0 %v2959, 16
      %v3587 = vpop.permute.xlu0 %3586
      %3588 = vrot.lane.b32.xlu0 %v2961, 16
      %v3589 = vpop.permute.xlu0 %3588
      %3590 = vrot.lane.b32.xlu0 %v2963, 16
      %v3591 = vpop.permute.xlu0 %3590
      %3592 = vrot.lane.b32.xlu0 %v2965, 16
      %v3593 = vpop.permute.xlu0 %3592
      %3594 = vrot.lane.b32.xlu0 %v3499, 16
      %v3595 = vpop.permute.xlu0 %3594
      %3596 = vrot.lane.b32.xlu0 %v3501, 16
      %v3597 = vpop.permute.xlu0 %3596
      %3598 = vrot.lane.b32.xlu0 %v3503, 16
      %v3599 = vpop.permute.xlu0 %3598
      %v3648 = vrot.slane %v2814, 2
      %v3649 = vsel %vm724, %v3205, %v3648
      %v3650 = vrot.slane %v2815, 2
      %v3651 = vsel %vm724, %v3648, %v3650
      %v3652 = vrot.slane %v2816, 2
      %v3653 = vsel %vm724, %v3650, %v3652
      %3654 = vrot.lane.b32.xlu0 %v3118, 20
      %v3655 = vpop.permute.xlu0 %3654
      %3656 = vrot.lane.b32.xlu0 %v3120, 20
      %v3657 = vpop.permute.xlu0 %3656
      %3658 = vrot.lane.b32.xlu0 %v3122, 20
      %v3659 = vpop.permute.xlu0 %3658
      %3660 = vrot.lane.b32.xlu0 %v3124, 20
      %v3661 = vpop.permute.xlu0 %3660
      %3662 = vrot.lane.b32.xlu0 %v3126, 20
      %v3663 = vpop.permute.xlu0 %3662
      %3664 = vrot.lane.b32.xlu0 %v3128, 20
      %v3665 = vpop.permute.xlu0 %3664
      %3666 = vrot.lane.b32.xlu0 %v3130, 20
      %v3667 = vpop.permute.xlu0 %3666
      %3668 = vrot.lane.b32.xlu0 %v3132, 20
      %v3669 = vpop.permute.xlu0 %3668
      %3670 = vrot.lane.b32.xlu0 %v3134, 20
      %v3671 = vpop.permute.xlu0 %3670
      %3672 = vrot.lane.b32.xlu0 %v3136, 20
      %v3673 = vpop.permute.xlu0 %3672
      %3674 = vrot.lane.b32.xlu0 %v3138, 20
      %v3675 = vpop.permute.xlu0 %3674
      %3676 = vrot.lane.b32.xlu0 %v3140, 20
      %v3677 = vpop.permute.xlu0 %3676
      %3678 = vrot.lane.b32.xlu0 %v3142, 20
      %v3679 = vpop.permute.xlu0 %3678
      %3680 = vrot.lane.b32.xlu0 %v3144, 20
      %v3681 = vpop.permute.xlu0 %3680
      %3682 = vrot.lane.b32.xlu0 %v3146, 20
      %v3683 = vpop.permute.xlu0 %3682
      %3684 = vrot.lane.b32.xlu0 %v3148, 20
      %v3685 = vpop.permute.xlu0 %3684
      %3686 = vrot.lane.b32.xlu0 %v3150, 20
      %v3687 = vpop.permute.xlu0 %3686
      %3688 = vrot.lane.b32.xlu0 %v3152, 20
      %v3689 = vpop.permute.xlu0 %3688
      %3690 = vrot.lane.b32.xlu0 %v3154, 20
      %v3691 = vpop.permute.xlu0 %3690
      %3692 = vrot.lane.b32.xlu0 %v3156, 20
      %v3693 = vpop.permute.xlu0 %3692
      %3694 = vrot.lane.b32.xlu0 %v3158, 20
      %v3695 = vpop.permute.xlu0 %3694
      %3696 = vrot.lane.b32.xlu0 %v3160, 20
      %v3697 = vpop.permute.xlu0 %3696
      %3698 = vrot.lane.b32.xlu0 %v3162, 20
      %v3699 = vpop.permute.xlu0 %3698
      %3700 = vrot.lane.b32.xlu0 %v3164, 20
      %v3701 = vpop.permute.xlu0 %3700
      %3702 = vrot.lane.b32.xlu0 %v3166, 20
      %v3703 = vpop.permute.xlu0 %3702
      %3704 = vrot.lane.b32.xlu0 %v3168, 20
      %v3705 = vpop.permute.xlu0 %3704
      %3706 = vrot.lane.b32.xlu0 %v3170, 20
      %v3707 = vpop.permute.xlu0 %3706
      %3708 = vrot.lane.b32.xlu0 %v3172, 20
      %v3709 = vpop.permute.xlu0 %3708
      %3710 = vrot.lane.b32.xlu0 %v3174, 20
      %v3711 = vpop.permute.xlu0 %3710
      %3712 = vrot.lane.b32.xlu0 %v3176, 20
      %v3713 = vpop.permute.xlu0 %3712
      %3714 = vrot.lane.b32.xlu0 %v3178, 20
      %v3715 = vpop.permute.xlu0 %3714
      %3716 = vrot.lane.b32.xlu0 %v3180, 20
      %v3717 = vpop.permute.xlu0 %3716
      %3718 = vrot.lane.b32.xlu0 %v3182, 20
      %v3719 = vpop.permute.xlu0 %3718
      %3720 = vrot.lane.b32.xlu0 %v3184, 20
      %v3721 = vpop.permute.xlu0 %3720
      %3722 = vrot.lane.b32.xlu0 %v3186, 20
      %v3723 = vpop.permute.xlu0 %3722
      %3724 = vrot.lane.b32.xlu0 %v3188, 20
      %v3725 = vpop.permute.xlu0 %3724
      %3726 = vrot.lane.b32.xlu0 %v3190, 20
      %v3727 = vpop.permute.xlu0 %3726
      %3728 = vrot.lane.b32.xlu0 %v3192, 20
      %v3729 = vpop.permute.xlu0 %3728
      %3730 = vrot.lane.b32.xlu0 %v3194, 20
      %v3731 = vpop.permute.xlu0 %3730
      %3732 = vrot.lane.b32.xlu0 %v3196, 20
      %v3733 = vpop.permute.xlu0 %3732
      %3734 = vrot.lane.b32.xlu0 %v3198, 20
      %v3735 = vpop.permute.xlu0 %3734
      %3736 = vrot.lane.b32.xlu0 %v3200, 20
      %v3737 = vpop.permute.xlu0 %3736
      %3738 = vrot.lane.b32.xlu0 %v3202, 20
      %v3739 = vpop.permute.xlu0 %3738
      %3740 = vrot.lane.b32.xlu0 %v3204, 20
      %v3741 = vpop.permute.xlu0 %3740
      %3742 = vrot.lane.b32.xlu0 %v3206, 20
      %v3743 = vpop.permute.xlu0 %3742
      %3744 = vrot.lane.b32.xlu0 %v3649, 20
      %v3745 = vpop.permute.xlu0 %3744
      %3746 = vrot.lane.b32.xlu0 %v3651, 20
      %v3747 = vpop.permute.xlu0 %3746
      %3748 = vrot.lane.b32.xlu0 %v3653, 20
      %v3749 = vpop.permute.xlu0 %3748
      %3800 = vrot.lane.b32.xlu0 %v2771, 24
      %v3801 = vpop.permute.xlu0 %3800
      %3802 = vrot.lane.b32.xlu0 %v2772, 24
      %v3803 = vpop.permute.xlu0 %3802
      %3804 = vrot.lane.b32.xlu0 %v2773, 24
      %v3805 = vpop.permute.xlu0 %3804
      %3806 = vrot.lane.b32.xlu0 %v2774, 24
      %v3807 = vpop.permute.xlu0 %3806
      %3808 = vrot.lane.b32.xlu0 %v2775, 24
      %v3809 = vpop.permute.xlu0 %3808
      %3810 = vrot.lane.b32.xlu0 %v2776, 24
      %v3811 = vpop.permute.xlu0 %3810
      %3812 = vrot.lane.b32.xlu0 %v2777, 24
      %v3813 = vpop.permute.xlu0 %3812
      %3814 = vrot.lane.b32.xlu0 %v2778, 24
      %v3815 = vpop.permute.xlu0 %3814
      %3816 = vrot.lane.b32.xlu0 %v2779, 24
      %v3817 = vpop.permute.xlu0 %3816
      %3818 = vrot.lane.b32.xlu0 %v2780, 24
      %v3819 = vpop.permute.xlu0 %3818
      %3820 = vrot.lane.b32.xlu0 %v2781, 24
      %v3821 = vpop.permute.xlu0 %3820
      %3822 = vrot.lane.b32.xlu0 %v2782, 24
      %v3823 = vpop.permute.xlu0 %3822
      %3824 = vrot.lane.b32.xlu0 %v2783, 24
      %v3825 = vpop.permute.xlu0 %3824
      %3826 = vrot.lane.b32.xlu0 %v2784, 24
      %v3827 = vpop.permute.xlu0 %3826
      %3828 = vrot.lane.b32.xlu0 %v2785, 24
      %v3829 = vpop.permute.xlu0 %3828
      %3830 = vrot.lane.b32.xlu0 %v2786, 24
      %v3831 = vpop.permute.xlu0 %3830
      %3832 = vrot.lane.b32.xlu0 %v2787, 24
      %v3833 = vpop.permute.xlu0 %3832
      %3834 = vrot.lane.b32.xlu0 %v2788, 24
      %v3835 = vpop.permute.xlu0 %3834
      %3836 = vrot.lane.b32.xlu0 %v2789, 24
      %v3837 = vpop.permute.xlu0 %3836
      %3838 = vrot.lane.b32.xlu0 %v2790, 24
      %v3839 = vpop.permute.xlu0 %3838
      %3840 = vrot.lane.b32.xlu0 %v2791, 24
      %v3841 = vpop.permute.xlu0 %3840
      %3842 = vrot.lane.b32.xlu0 %v2792, 24
      %v3843 = vpop.permute.xlu0 %3842
      %3844 = vrot.lane.b32.xlu0 %v2793, 24
      %v3845 = vpop.permute.xlu0 %3844
      %3846 = vrot.lane.b32.xlu0 %v2794, 24
      %v3847 = vpop.permute.xlu0 %3846
      %3848 = vrot.lane.b32.xlu0 %v2795, 24
      %v3849 = vpop.permute.xlu0 %3848
      %3850 = vrot.lane.b32.xlu0 %v2796, 24
      %v3851 = vpop.permute.xlu0 %3850
      %3852 = vrot.lane.b32.xlu0 %v2797, 24
      %v3853 = vpop.permute.xlu0 %3852
      %3854 = vrot.lane.b32.xlu0 %v2798, 24
      %v3855 = vpop.permute.xlu0 %3854
      %3856 = vrot.lane.b32.xlu0 %v2799, 24
      %v3857 = vpop.permute.xlu0 %3856
      %3858 = vrot.lane.b32.xlu0 %v2800, 24
      %v3859 = vpop.permute.xlu0 %3858
      %3860 = vrot.lane.b32.xlu0 %v2801, 24
      %v3861 = vpop.permute.xlu0 %3860
      %3862 = vrot.lane.b32.xlu0 %v2802, 24
      %v3863 = vpop.permute.xlu0 %3862
      %3864 = vrot.lane.b32.xlu0 %v2803, 24
      %v3865 = vpop.permute.xlu0 %3864
      %3866 = vrot.lane.b32.xlu0 %v2804, 24
      %v3867 = vpop.permute.xlu0 %3866
      %3868 = vrot.lane.b32.xlu0 %v2805, 24
      %v3869 = vpop.permute.xlu0 %3868
      %3870 = vrot.lane.b32.xlu0 %v2806, 24
      %v3871 = vpop.permute.xlu0 %3870
      %3872 = vrot.lane.b32.xlu0 %v2807, 24
      %v3873 = vpop.permute.xlu0 %3872
      %3874 = vrot.lane.b32.xlu0 %v2808, 24
      %v3875 = vpop.permute.xlu0 %3874
      %3876 = vrot.lane.b32.xlu0 %v2809, 24
      %v3877 = vpop.permute.xlu0 %3876
      %3878 = vrot.lane.b32.xlu0 %v2810, 24
      %v3879 = vpop.permute.xlu0 %3878
      %3880 = vrot.lane.b32.xlu0 %v2811, 24
      %v3881 = vpop.permute.xlu0 %3880
      %3882 = vrot.lane.b32.xlu0 %v2812, 24
      %v3883 = vpop.permute.xlu0 %3882
      %3884 = vrot.lane.b32.xlu0 %v2813, 24
      %v3885 = vpop.permute.xlu0 %3884
      %3886 = vrot.lane.b32.xlu0 %v2814, 24
      %v3887 = vpop.permute.xlu0 %3886
      %3888 = vrot.lane.b32.xlu0 %v2815, 24
      %v3889 = vpop.permute.xlu0 %3888
      %3890 = vrot.lane.b32.xlu0 %v2816, 24
      %v3891 = vpop.permute.xlu0 %3890
      %3892 = vrot.lane.b32.xlu0 %v2817, 24
      %v3893 = vpop.permute.xlu0 %3892
      %3894 = vrot.lane.b32.xlu0 %v2818, 24
      %v3895 = vpop.permute.xlu0 %3894
      %v3945 = vrot.slane %v2817, 1
      %v3946 = vsel %vm482, %v3502, %v3945
      %v3947 = vrot.slane %v2818, 1
      %v3948 = vsel %vm482, %v3945, %v3947
      %v3949 = vrot.slane %v2819, 1
      %v3950 = vsel %vm482, %v3947, %v3949
      %3951 = vrot.lane.b32.xlu0 %v2883, 28
      %v3952 = vpop.permute.xlu0 %3951
      %3953 = vrot.lane.b32.xlu0 %v2885, 28
      %v3954 = vpop.permute.xlu0 %3953
      %3955 = vrot.lane.b32.xlu0 %v2887, 28
      %v3956 = vpop.permute.xlu0 %3955
      %3957 = vrot.lane.b32.xlu0 %v2889, 28
      %v3958 = vpop.permute.xlu0 %3957
      %3959 = vrot.lane.b32.xlu0 %v2891, 28
      %v3960 = vpop.permute.xlu0 %3959
      %3961 = vrot.lane.b32.xlu0 %v2893, 28
      %v3962 = vpop.permute.xlu0 %3961
      %3963 = vrot.lane.b32.xlu0 %v2895, 28
      %v3964 = vpop.permute.xlu0 %3963
      %3965 = vrot.lane.b32.xlu0 %v2897, 28
      %v3966 = vpop.permute.xlu0 %3965
      %3967 = vrot.lane.b32.xlu0 %v2899, 28
      %v3968 = vpop.permute.xlu0 %3967
      %3969 = vrot.lane.b32.xlu0 %v2901, 28
      %v3970 = vpop.permute.xlu0 %3969
      %3971 = vrot.lane.b32.xlu0 %v2903, 28
      %v3972 = vpop.permute.xlu0 %3971
      %3973 = vrot.lane.b32.xlu0 %v2905, 28
      %v3974 = vpop.permute.xlu0 %3973
      %3975 = vrot.lane.b32.xlu0 %v2907, 28
      %v3976 = vpop.permute.xlu0 %3975
      %3977 = vrot.lane.b32.xlu0 %v2909, 28
      %v3978 = vpop.permute.xlu0 %3977
      %3979 = vrot.lane.b32.xlu0 %v2911, 28
      %v3980 = vpop.permute.xlu0 %3979
      %3981 = vrot.lane.b32.xlu0 %v2913, 28
      %v3982 = vpop.permute.xlu0 %3981
      %3983 = vrot.lane.b32.xlu0 %v2915, 28
      %v3984 = vpop.permute.xlu0 %3983
      %3985 = vrot.lane.b32.xlu0 %v2917, 28
      %v3986 = vpop.permute.xlu0 %3985
      %3987 = vrot.lane.b32.xlu0 %v2919, 28
      %v3988 = vpop.permute.xlu0 %3987
      %3989 = vrot.lane.b32.xlu0 %v2921, 28
      %v3990 = vpop.permute.xlu0 %3989
      %3991 = vrot.lane.b32.xlu0 %v2923, 28
      %v3992 = vpop.permute.xlu0 %3991
      %3993 = vrot.lane.b32.xlu0 %v2925, 28
      %v3994 = vpop.permute.xlu0 %3993
      %3995 = vrot.lane.b32.xlu0 %v2927, 28
      %v3996 = vpop.permute.xlu0 %3995
      %3997 = vrot.lane.b32.xlu0 %v2929, 28
      %v3998 = vpop.permute.xlu0 %3997
      %3999 = vrot.lane.b32.xlu0 %v2931, 28
      %v4000 = vpop.permute.xlu0 %3999
      %4001 = vrot.lane.b32.xlu0 %v2933, 28
      %v4002 = vpop.permute.xlu0 %4001
      %4003 = vrot.lane.b32.xlu0 %v2935, 28
      %v4004 = vpop.permute.xlu0 %4003
      %4005 = vrot.lane.b32.xlu0 %v2937, 28
      %v4006 = vpop.permute.xlu0 %4005
      %4007 = vrot.lane.b32.xlu0 %v2939, 28
      %v4008 = vpop.permute.xlu0 %4007
      %4009 = vrot.lane.b32.xlu0 %v2941, 28
      %v4010 = vpop.permute.xlu0 %4009
      %4011 = vrot.lane.b32.xlu0 %v2943, 28
      %v4012 = vpop.permute.xlu0 %4011
      %4013 = vrot.lane.b32.xlu0 %v2945, 28
      %v4014 = vpop.permute.xlu0 %4013
      %4015 = vrot.lane.b32.xlu0 %v2947, 28
      %v4016 = vpop.permute.xlu0 %4015
      %4017 = vrot.lane.b32.xlu0 %v2949, 28
      %v4018 = vpop.permute.xlu0 %4017
      %4019 = vrot.lane.b32.xlu0 %v2951, 28
      %v4020 = vpop.permute.xlu0 %4019
      %4021 = vrot.lane.b32.xlu0 %v2953, 28
      %v4022 = vpop.permute.xlu0 %4021
      %4023 = vrot.lane.b32.xlu0 %v2955, 28
      %v4024 = vpop.permute.xlu0 %4023
      %4025 = vrot.lane.b32.xlu0 %v2957, 28
      %v4026 = vpop.permute.xlu0 %4025
      %4027 = vrot.lane.b32.xlu0 %v2959, 28
      %v4028 = vpop.permute.xlu0 %4027
      %4029 = vrot.lane.b32.xlu0 %v2961, 28
      %v4030 = vpop.permute.xlu0 %4029
      %4031 = vrot.lane.b32.xlu0 %v2963, 28
      %v4032 = vpop.permute.xlu0 %4031
      %4033 = vrot.lane.b32.xlu0 %v2965, 28
      %v4034 = vpop.permute.xlu0 %4033
      %4035 = vrot.lane.b32.xlu0 %v3499, 28
      %v4036 = vpop.permute.xlu0 %4035
      %4037 = vrot.lane.b32.xlu0 %v3501, 28
      %v4038 = vpop.permute.xlu0 %4037
      %4039 = vrot.lane.b32.xlu0 %v3503, 28
      %v4040 = vpop.permute.xlu0 %4039
      %4041 = vrot.lane.b32.xlu0 %v3946, 28
      %v4042 = vpop.permute.xlu0 %4041
      %4043 = vrot.lane.b32.xlu0 %v3948, 28
      %v4044 = vpop.permute.xlu0 %4043
      %4045 = vrot.lane.b32.xlu0 %v3950, 28
      %v4046 = vpop.permute.xlu0 %4045
      %v4095 = vrot.slane %v2817, 2
      %v4096 = vsel %vm724, %v3652, %v4095
      %v4097 = vrot.slane %v2818, 2
      %v4098 = vsel %vm724, %v4095, %v4097
      %v4099 = vrot.slane %v2819, 2
      %v4100 = vsel %vm724, %v4097, %v4099
      %4101 = vrot.lane.b32.xlu0 %v3124, 32
      %v4102 = vpop.permute.xlu0 %4101
      %4103 = vrot.lane.b32.xlu0 %v3126, 32
      %v4104 = vpop.permute.xlu0 %4103
      %4105 = vrot.lane.b32.xlu0 %v3128, 32
      %v4106 = vpop.permute.xlu0 %4105
      %4107 = vrot.lane.b32.xlu0 %v3130, 32
      %v4108 = vpop.permute.xlu0 %4107
      %4109 = vrot.lane.b32.xlu0 %v3132, 32
      %v4110 = vpop.permute.xlu0 %4109
      %4111 = vrot.lane.b32.xlu0 %v3134, 32
      %v4112 = vpop.permute.xlu0 %4111
      %4113 = vrot.lane.b32.xlu0 %v3136, 32
      %v4114 = vpop.permute.xlu0 %4113
      %4115 = vrot.lane.b32.xlu0 %v3138, 32
      %v4116 = vpop.permute.xlu0 %4115
      %4117 = vrot.lane.b32.xlu0 %v3140, 32
      %v4118 = vpop.permute.xlu0 %4117
      %4119 = vrot.lane.b32.xlu0 %v3142, 32
      %v4120 = vpop.permute.xlu0 %4119
      %4121 = vrot.lane.b32.xlu0 %v3144, 32
      %v4122 = vpop.permute.xlu0 %4121
      %4123 = vrot.lane.b32.xlu0 %v3146, 32
      %v4124 = vpop.permute.xlu0 %4123
      %4125 = vrot.lane.b32.xlu0 %v3148, 32
      %v4126 = vpop.permute.xlu0 %4125
      %4127 = vrot.lane.b32.xlu0 %v3150, 32
      %v4128 = vpop.permute.xlu0 %4127
      %4129 = vrot.lane.b32.xlu0 %v3152, 32
      %v4130 = vpop.permute.xlu0 %4129
      %4131 = vrot.lane.b32.xlu0 %v3154, 32
      %v4132 = vpop.permute.xlu0 %4131
      %4133 = vrot.lane.b32.xlu0 %v3156, 32
      %v4134 = vpop.permute.xlu0 %4133
      %4135 = vrot.lane.b32.xlu0 %v3158, 32
      %v4136 = vpop.permute.xlu0 %4135
      %4137 = vrot.lane.b32.xlu0 %v3160, 32
      %v4138 = vpop.permute.xlu0 %4137
      %4139 = vrot.lane.b32.xlu0 %v3162, 32
      %v4140 = vpop.permute.xlu0 %4139
      %4141 = vrot.lane.b32.xlu0 %v3164, 32
      %v4142 = vpop.permute.xlu0 %4141
      %4143 = vrot.lane.b32.xlu0 %v3166, 32
      %v4144 = vpop.permute.xlu0 %4143
      %4145 = vrot.lane.b32.xlu0 %v3168, 32
      %v4146 = vpop.permute.xlu0 %4145
      %4147 = vrot.lane.b32.xlu0 %v3170, 32
      %v4148 = vpop.permute.xlu0 %4147
      %4149 = vrot.lane.b32.xlu0 %v3172, 32
      %v4150 = vpop.permute.xlu0 %4149
      %4151 = vrot.lane.b32.xlu0 %v3174, 32
      %v4152 = vpop.permute.xlu0 %4151
      %4153 = vrot.lane.b32.xlu0 %v3176, 32
      %v4154 = vpop.permute.xlu0 %4153
      %4155 = vrot.lane.b32.xlu0 %v3178, 32
      %v4156 = vpop.permute.xlu0 %4155
      %4157 = vrot.lane.b32.xlu0 %v3180, 32
      %v4158 = vpop.permute.xlu0 %4157
      %4159 = vrot.lane.b32.xlu0 %v3182, 32
      %v4160 = vpop.permute.xlu0 %4159
      %4161 = vrot.lane.b32.xlu0 %v3184, 32
      %v4162 = vpop.permute.xlu0 %4161
      %4163 = vrot.lane.b32.xlu0 %v3186, 32
      %v4164 = vpop.permute.xlu0 %4163
      %4165 = vrot.lane.b32.xlu0 %v3188, 32
      %v4166 = vpop.permute.xlu0 %4165
      %4167 = vrot.lane.b32.xlu0 %v3190, 32
      %v4168 = vpop.permute.xlu0 %4167
      %4169 = vrot.lane.b32.xlu0 %v3192, 32
      %v4170 = vpop.permute.xlu0 %4169
      %4171 = vrot.lane.b32.xlu0 %v3194, 32
      %v4172 = vpop.permute.xlu0 %4171
      %4173 = vrot.lane.b32.xlu0 %v3196, 32
      %v4174 = vpop.permute.xlu0 %4173
      %4175 = vrot.lane.b32.xlu0 %v3198, 32
      %v4176 = vpop.permute.xlu0 %4175
      %4177 = vrot.lane.b32.xlu0 %v3200, 32
      %v4178 = vpop.permute.xlu0 %4177
      %4179 = vrot.lane.b32.xlu0 %v3202, 32
      %v4180 = vpop.permute.xlu0 %4179
      %4181 = vrot.lane.b32.xlu0 %v3204, 32
      %v4182 = vpop.permute.xlu0 %4181
      %4183 = vrot.lane.b32.xlu0 %v3206, 32
      %v4184 = vpop.permute.xlu0 %4183
      %4185 = vrot.lane.b32.xlu0 %v3649, 32
      %v4186 = vpop.permute.xlu0 %4185
      %4187 = vrot.lane.b32.xlu0 %v3651, 32
      %v4188 = vpop.permute.xlu0 %4187
      %4189 = vrot.lane.b32.xlu0 %v3653, 32
      %v4190 = vpop.permute.xlu0 %4189
      %4191 = vrot.lane.b32.xlu0 %v4096, 32
      %v4192 = vpop.permute.xlu0 %4191
      %4193 = vrot.lane.b32.xlu0 %v4098, 32
      %v4194 = vpop.permute.xlu0 %4193
      %4195 = vrot.lane.b32.xlu0 %v4100, 32
      %v4196 = vpop.permute.xlu0 %4195
      %v4245 = vsel %vm257, %v2765, %v2967
      %v4246 = vsel %vm257, %v2766, %v2969
      %v4247 = vsel %vm257, %v2767, %v2971
      %v4248 = vsel %vm257, %v2768, %v2973
      %v4249 = vsel %vm257, %v2769, %v2975
      %v4250 = vsel %vm257, %v2770, %v2977
      %v4251 = vsel %vm257, %v2771, %v2979
      %v4252 = vsel %vm257, %v2772, %v2981
      %v4253 = vsel %vm257, %v2773, %v2983
      %v4254 = vsel %vm257, %v2774, %v2985
      %v4255 = vsel %vm257, %v2775, %v2987
      %v4256 = vsel %vm257, %v2776, %v2989
      %v4257 = vsel %vm257, %v2777, %v2991
      %v4258 = vsel %vm257, %v2778, %v2993
      %v4259 = vsel %vm257, %v2779, %v2995
      %v4260 = vsel %vm257, %v2780, %v2997
      %v4261 = vsel %vm257, %v2781, %v2999
      %v4262 = vsel %vm257, %v2782, %v3001
      %v4263 = vsel %vm257, %v2783, %v3003
      %v4264 = vsel %vm257, %v2784, %v3005
      %v4265 = vsel %vm257, %v2785, %v3007
      %v4266 = vsel %vm257, %v2786, %v3009
      %v4267 = vsel %vm257, %v2787, %v3011
      %v4268 = vsel %vm257, %v2788, %v3013
      %v4269 = vsel %vm257, %v2789, %v3015
      %v4270 = vsel %vm257, %v2790, %v3017
      %v4271 = vsel %vm257, %v2791, %v3019
      %v4272 = vsel %vm257, %v2792, %v3021
      %v4273 = vsel %vm257, %v2793, %v3023
      %v4274 = vsel %vm257, %v2794, %v3025
      %v4275 = vsel %vm257, %v2795, %v3027
      %v4276 = vsel %vm257, %v2796, %v3029
      %v4277 = vsel %vm257, %v2797, %v3031
      %v4278 = vsel %vm257, %v2798, %v3033
      %v4279 = vsel %vm257, %v2799, %v3035
      %v4280 = vsel %vm257, %v2800, %v3037
      %v4281 = vsel %vm257, %v2801, %v3039
      %v4282 = vsel %vm257, %v2802, %v3041
      %v4283 = vsel %vm257, %v2803, %v3043
      %v4284 = vsel %vm257, %v2804, %v3045
      %v4285 = vsel %vm257, %v2805, %v3047
      %v4286 = vsel %vm257, %v2806, %v3049
      %v4287 = vsel %vm257, %v2807, %v3051
      %v4288 = vsel %vm257, %v2808, %v3053
      %v4289 = vsel %vm257, %v2809, %v3055
      %v4290 = vsel %vm257, %v2810, %v3057
      %v4291 = vsel %vm257, %v2811, %v3059
      %v4292 = vsel %vm257, %v2812, %v3061
      %v4293 = vsel %vm1908, %v4245, %v3208
      %v4294 = vsel %vm1908, %v4246, %v3210
      %v4295 = vsel %vm1908, %v4247, %v3212
      %v4296 = vsel %vm1908, %v4248, %v3214
      %v4297 = vsel %vm1908, %v4249, %v3216
      %v4298 = vsel %vm1908, %v4250, %v3218
      %v4299 = vsel %vm1908, %v4251, %v3220
      %v4300 = vsel %vm1908, %v4252, %v3222
      %v4301 = vsel %vm1908, %v4253, %v3224
      %v4302 = vsel %vm1908, %v4254, %v3226
      %v4303 = vsel %vm1908, %v4255, %v3228
      %v4304 = vsel %vm1908, %v4256, %v3230
      %v4305 = vsel %vm1908, %v4257, %v3232
      %v4306 = vsel %vm1908, %v4258, %v3234
      %v4307 = vsel %vm1908, %v4259, %v3236
      %v4308 = vsel %vm1908, %v4260, %v3238
      %v4309 = vsel %vm1908, %v4261, %v3240
      %v4310 = vsel %vm1908, %v4262, %v3242
      %v4311 = vsel %vm1908, %v4263, %v3244
      %v4312 = vsel %vm1908, %v4264, %v3246
      %v4313 = vsel %vm1908, %v4265, %v3248
      %v4314 = vsel %vm1908, %v4266, %v3250
      %v4315 = vsel %vm1908, %v4267, %v3252
      %v4316 = vsel %vm1908, %v4268, %v3254
      %v4317 = vsel %vm1908, %v4269, %v3256
      %v4318 = vsel %vm1908, %v4270, %v3258
      %v4319 = vsel %vm1908, %v4271, %v3260
      %v4320 = vsel %vm1908, %v4272, %v3262
      %v4321 = vsel %vm1908, %v4273, %v3264
      %v4322 = vsel %vm1908, %v4274, %v3266
      %v4323 = vsel %vm1908, %v4275, %v3268
      %v4324 = vsel %vm1908, %v4276, %v3270
      %v4325 = vsel %vm1908, %v4277, %v3272
      %v4326 = vsel %vm1908, %v4278, %v3274
      %v4327 = vsel %vm1908, %v4279, %v3276
      %v4328 = vsel %vm1908, %v4280, %v3278
      %v4329 = vsel %vm1908, %v4281, %v3280
      %v4330 = vsel %vm1908, %v4282, %v3282
      %v4331 = vsel %vm1908, %v4283, %v3284
      %v4332 = vsel %vm1908, %v4284, %v3286
      %v4333 = vsel %vm1908, %v4285, %v3288
      %v4334 = vsel %vm1908, %v4286, %v3290
      %v4335 = vsel %vm1908, %v4287, %v3292
      %v4336 = vsel %vm1908, %v4288, %v3294
      %v4337 = vsel %vm1908, %v4289, %v3296
      %v4338 = vsel %vm1908, %v4290, %v3298
      %v4339 = vsel %vm1908, %v4291, %v3300
      %v4340 = vsel %vm1908, %v4292, %v3302
      %v4341 = vsel %vm1957, %v4293, %v3354
      %v4342 = vsel %vm1957, %v4294, %v3356
      %v4343 = vsel %vm1957, %v4295, %v3358
      %v4344 = vsel %vm1957, %v4296, %v3360
      %v4345 = vsel %vm1957, %v4297, %v3362
      %v4346 = vsel %vm1957, %v4298, %v3364
      %v4347 = vsel %vm1957, %v4299, %v3366
      %v4348 = vsel %vm1957, %v4300, %v3368
      %v4349 = vsel %vm1957, %v4301, %v3370
      %v4350 = vsel %vm1957, %v4302, %v3372
      %v4351 = vsel %vm1957, %v4303, %v3374
      %v4352 = vsel %vm1957, %v4304, %v3376
      %v4353 = vsel %vm1957, %v4305, %v3378
      %v4354 = vsel %vm1957, %v4306, %v3380
      %v4355 = vsel %vm1957, %v4307, %v3382
      %v4356 = vsel %vm1957, %v4308, %v3384
      %v4357 = vsel %vm1957, %v4309, %v3386
      %v4358 = vsel %vm1957, %v4310, %v3388
      %v4359 = vsel %vm1957, %v4311, %v3390
      %v4360 = vsel %vm1957, %v4312, %v3392
      %v4361 = vsel %vm1957, %v4313, %v3394
      %v4362 = vsel %vm1957, %v4314, %v3396
      %v4363 = vsel %vm1957, %v4315, %v3398
      %v4364 = vsel %vm1957, %v4316, %v3400
      %v4365 = vsel %vm1957, %v4317, %v3402
      %v4366 = vsel %vm1957, %v4318, %v3404
      %v4367 = vsel %vm1957, %v4319, %v3406
      %v4368 = vsel %vm1957, %v4320, %v3408
      %v4369 = vsel %vm1957, %v4321, %v3410
      %v4370 = vsel %vm1957, %v4322, %v3412
      %v4371 = vsel %vm1957, %v4323, %v3414
      %v4372 = vsel %vm1957, %v4324, %v3416
      %v4373 = vsel %vm1957, %v4325, %v3418
      %v4374 = vsel %vm1957, %v4326, %v3420
      %v4375 = vsel %vm1957, %v4327, %v3422
      %v4376 = vsel %vm1957, %v4328, %v3424
      %v4377 = vsel %vm1957, %v4329, %v3426
      %v4378 = vsel %vm1957, %v4330, %v3428
      %v4379 = vsel %vm1957, %v4331, %v3430
      %v4380 = vsel %vm1957, %v4332, %v3432
      %v4381 = vsel %vm1957, %v4333, %v3434
      %v4382 = vsel %vm1957, %v4334, %v3436
      %v4383 = vsel %vm1957, %v4335, %v3438
      %v4384 = vsel %vm1957, %v4336, %v3440
      %v4385 = vsel %vm1957, %v4337, %v3442
      %v4386 = vsel %vm1957, %v4338, %v3444
      %v4387 = vsel %vm1957, %v4339, %v3446
      %v4388 = vsel %vm1957, %v4340, %v3448
      %v4389 = vsel %vm2006, %v4341, %v3505
      %v4390 = vsel %vm2006, %v4342, %v3507
      %v4391 = vsel %vm2006, %v4343, %v3509
      %v4392 = vsel %vm2006, %v4344, %v3511
      %v4393 = vsel %vm2006, %v4345, %v3513
      %v4394 = vsel %vm2006, %v4346, %v3515
      %v4395 = vsel %vm2006, %v4347, %v3517
      %v4396 = vsel %vm2006, %v4348, %v3519
      %v4397 = vsel %vm2006, %v4349, %v3521
      %v4398 = vsel %vm2006, %v4350, %v3523
      %v4399 = vsel %vm2006, %v4351, %v3525
      %v4400 = vsel %vm2006, %v4352, %v3527
      %v4401 = vsel %vm2006, %v4353, %v3529
      %v4402 = vsel %vm2006, %v4354, %v3531
      %v4403 = vsel %vm2006, %v4355, %v3533
      %v4404 = vsel %vm2006, %v4356, %v3535
      %v4405 = vsel %vm2006, %v4357, %v3537
      %v4406 = vsel %vm2006, %v4358, %v3539
      %v4407 = vsel %vm2006, %v4359, %v3541
      %v4408 = vsel %vm2006, %v4360, %v3543
      %v4409 = vsel %vm2006, %v4361, %v3545
      %v4410 = vsel %vm2006, %v4362, %v3547
      %v4411 = vsel %vm2006, %v4363, %v3549
      %v4412 = vsel %vm2006, %v4364, %v3551
      %v4413 = vsel %vm2006, %v4365, %v3553
      %v4414 = vsel %vm2006, %v4366, %v3555
      %v4415 = vsel %vm2006, %v4367, %v3557
      %v4416 = vsel %vm2006, %v4368, %v3559
      %v4417 = vsel %vm2006, %v4369, %v3561
      %v4418 = vsel %vm2006, %v4370, %v3563
      %v4419 = vsel %vm2006, %v4371, %v3565
      %v4420 = vsel %vm2006, %v4372, %v3567
      %v4421 = vsel %vm2006, %v4373, %v3569
      %v4422 = vsel %vm2006, %v4374, %v3571
      %v4423 = vsel %vm2006, %v4375, %v3573
      %v4424 = vsel %vm2006, %v4376, %v3575
      %v4425 = vsel %vm2006, %v4377, %v3577
      %v4426 = vsel %vm2006, %v4378, %v3579
      %v4427 = vsel %vm2006, %v4379, %v3581
      %v4428 = vsel %vm2006, %v4380, %v3583
      %v4429 = vsel %vm2006, %v4381, %v3585
      %v4430 = vsel %vm2006, %v4382, %v3587
      %v4431 = vsel %vm2006, %v4383, %v3589
      %v4432 = vsel %vm2006, %v4384, %v3591
      %v4433 = vsel %vm2006, %v4385, %v3593
      %v4434 = vsel %vm2006, %v4386, %v3595
      %v4435 = vsel %vm2006, %v4387, %v3597
      %v4436 = vsel %vm2006, %v4388, %v3599
      %v4437 = vsel %vm2055, %v4389, %v3655
      %v4438 = vsel %vm2055, %v4390, %v3657
      %v4439 = vsel %vm2055, %v4391, %v3659
      %v4440 = vsel %vm2055, %v4392, %v3661
      %v4441 = vsel %vm2055, %v4393, %v3663
      %v4442 = vsel %vm2055, %v4394, %v3665
      %v4443 = vsel %vm2055, %v4395, %v3667
      %v4444 = vsel %vm2055, %v4396, %v3669
      %v4445 = vsel %vm2055, %v4397, %v3671
      %v4446 = vsel %vm2055, %v4398, %v3673
      %v4447 = vsel %vm2055, %v4399, %v3675
      %v4448 = vsel %vm2055, %v4400, %v3677
      %v4449 = vsel %vm2055, %v4401, %v3679
      %v4450 = vsel %vm2055, %v4402, %v3681
      %v4451 = vsel %vm2055, %v4403, %v3683
      %v4452 = vsel %vm2055, %v4404, %v3685
      %v4453 = vsel %vm2055, %v4405, %v3687
      %v4454 = vsel %vm2055, %v4406, %v3689
      %v4455 = vsel %vm2055, %v4407, %v3691
      %v4456 = vsel %vm2055, %v4408, %v3693
      %v4457 = vsel %vm2055, %v4409, %v3695
      %v4458 = vsel %vm2055, %v4410, %v3697
      %v4459 = vsel %vm2055, %v4411, %v3699
      %v4460 = vsel %vm2055, %v4412, %v3701
      %v4461 = vsel %vm2055, %v4413, %v3703
      %v4462 = vsel %vm2055, %v4414, %v3705
      %v4463 = vsel %vm2055, %v4415, %v3707
      %v4464 = vsel %vm2055, %v4416, %v3709
      %v4465 = vsel %vm2055, %v4417, %v3711
      %v4466 = vsel %vm2055, %v4418, %v3713
      %v4467 = vsel %vm2055, %v4419, %v3715
      %v4468 = vsel %vm2055, %v4420, %v3717
      %v4469 = vsel %vm2055, %v4421, %v3719
      %v4470 = vsel %vm2055, %v4422, %v3721
      %v4471 = vsel %vm2055, %v4423, %v3723
      %v4472 = vsel %vm2055, %v4424, %v3725
      %v4473 = vsel %vm2055, %v4425, %v3727
      %v4474 = vsel %vm2055, %v4426, %v3729
      %v4475 = vsel %vm2055, %v4427, %v3731
      %v4476 = vsel %vm2055, %v4428, %v3733
      %v4477 = vsel %vm2055, %v4429, %v3735
      %v4478 = vsel %vm2055, %v4430, %v3737
      %v4479 = vsel %vm2055, %v4431, %v3739
      %v4480 = vsel %vm2055, %v4432, %v3741
      %v4481 = vsel %vm2055, %v4433, %v3743
      %v4482 = vsel %vm2055, %v4434, %v3745
      %v4483 = vsel %vm2055, %v4435, %v3747
      %v4484 = vsel %vm2055, %v4436, %v3749
      %v4485 = vsel %vm2104, %v4437, %v3801
      %v4486 = vsel %vm2104, %v4438, %v3803
      %v4487 = vsel %vm2104, %v4439, %v3805
      %v4488 = vsel %vm2104, %v4440, %v3807
      %v4489 = vsel %vm2104, %v4441, %v3809
      %v4490 = vsel %vm2104, %v4442, %v3811
      %v4491 = vsel %vm2104, %v4443, %v3813
      %v4492 = vsel %vm2104, %v4444, %v3815
      %v4493 = vsel %vm2104, %v4445, %v3817
      %v4494 = vsel %vm2104, %v4446, %v3819
      %v4495 = vsel %vm2104, %v4447, %v3821
      %v4496 = vsel %vm2104, %v4448, %v3823
      %v4497 = vsel %vm2104, %v4449, %v3825
      %v4498 = vsel %vm2104, %v4450, %v3827
      %v4499 = vsel %vm2104, %v4451, %v3829
      %v4500 = vsel %vm2104, %v4452, %v3831
      %v4501 = vsel %vm2104, %v4453, %v3833
      %v4502 = vsel %vm2104, %v4454, %v3835
      %v4503 = vsel %vm2104, %v4455, %v3837
      %v4504 = vsel %vm2104, %v4456, %v3839
      %v4505 = vsel %vm2104, %v4457, %v3841
      %v4506 = vsel %vm2104, %v4458, %v3843
      %v4507 = vsel %vm2104, %v4459, %v3845
      %v4508 = vsel %vm2104, %v4460, %v3847
      %v4509 = vsel %vm2104, %v4461, %v3849
      %v4510 = vsel %vm2104, %v4462, %v3851
      %v4511 = vsel %vm2104, %v4463, %v3853
      %v4512 = vsel %vm2104, %v4464, %v3855
      %v4513 = vsel %vm2104, %v4465, %v3857
      %v4514 = vsel %vm2104, %v4466, %v3859
      %v4515 = vsel %vm2104, %v4467, %v3861
      %v4516 = vsel %vm2104, %v4468, %v3863
      %v4517 = vsel %vm2104, %v4469, %v3865
      %v4518 = vsel %vm2104, %v4470, %v3867
      %v4519 = vsel %vm2104, %v4471, %v3869
      %v4520 = vsel %vm2104, %v4472, %v3871
      %v4521 = vsel %vm2104, %v4473, %v3873
      %v4522 = vsel %vm2104, %v4474, %v3875
      %v4523 = vsel %vm2104, %v4475, %v3877
      %v4524 = vsel %vm2104, %v4476, %v3879
      %v4525 = vsel %vm2104, %v4477, %v3881
      %v4526 = vsel %vm2104, %v4478, %v3883
      %v4527 = vsel %vm2104, %v4479, %v3885
      %v4528 = vsel %vm2104, %v4480, %v3887
      %v4529 = vsel %vm2104, %v4481, %v3889
      %v4530 = vsel %vm2104, %v4482, %v3891
      %v4531 = vsel %vm2104, %v4483, %v3893
      %v4532 = vsel %vm2104, %v4484, %v3895
      %v4533 = vsel %vm2153, %v4485, %v3952
      %v4534 = vsel %vm2153, %v4486, %v3954
      %v4535 = vsel %vm2153, %v4487, %v3956
      %v4536 = vsel %vm2153, %v4488, %v3958
      %v4537 = vsel %vm2153, %v4489, %v3960
      %v4538 = vsel %vm2153, %v4490, %v3962
      %v4539 = vsel %vm2153, %v4491, %v3964
      %v4540 = vsel %vm2153, %v4492, %v3966
      %v4541 = vsel %vm2153, %v4493, %v3968
      %v4542 = vsel %vm2153, %v4494, %v3970
      %v4543 = vsel %vm2153, %v4495, %v3972
      %v4544 = vsel %vm2153, %v4496, %v3974
      %v4545 = vsel %vm2153, %v4497, %v3976
      %v4546 = vsel %vm2153, %v4498, %v3978
      %v4547 = vsel %vm2153, %v4499, %v3980
      %v4548 = vsel %vm2153, %v4500, %v3982
      %v4549 = vsel %vm2153, %v4501, %v3984
      %v4550 = vsel %vm2153, %v4502, %v3986
      %v4551 = vsel %vm2153, %v4503, %v3988
      %v4552 = vsel %vm2153, %v4504, %v3990
      %v4553 = vsel %vm2153, %v4505, %v3992
      %v4554 = vsel %vm2153, %v4506, %v3994
      %v4555 = vsel %vm2153, %v4507, %v3996
      %v4556 = vsel %vm2153, %v4508, %v3998
      %v4557 = vsel %vm2153, %v4509, %v4000
      %v4558 = vsel %vm2153, %v4510, %v4002
      %v4559 = vsel %vm2153, %v4511, %v4004
      %v4560 = vsel %vm2153, %v4512, %v4006
      %v4561 = vsel %vm2153, %v4513, %v4008
      %v4562 = vsel %vm2153, %v4514, %v4010
      %v4563 = vsel %vm2153, %v4515, %v4012
      %v4564 = vsel %vm2153, %v4516, %v4014
      %v4565 = vsel %vm2153, %v4517, %v4016
      %v4566 = vsel %vm2153, %v4518, %v4018
      %v4567 = vsel %vm2153, %v4519, %v4020
      %v4568 = vsel %vm2153, %v4520, %v4022
      %v4569 = vsel %vm2153, %v4521, %v4024
      %v4570 = vsel %vm2153, %v4522, %v4026
      %v4571 = vsel %vm2153, %v4523, %v4028
      %v4572 = vsel %vm2153, %v4524, %v4030
      %v4573 = vsel %vm2153, %v4525, %v4032
      %v4574 = vsel %vm2153, %v4526, %v4034
      %v4575 = vsel %vm2153, %v4527, %v4036
      %v4576 = vsel %vm2153, %v4528, %v4038
      %v4577 = vsel %vm2153, %v4529, %v4040
      %v4578 = vsel %vm2153, %v4530, %v4042
      %v4579 = vsel %vm2153, %v4531, %v4044
      %v4580 = vsel %vm2153, %v4532, %v4046
      %v4581 = vsel %vm2202, %v4533, %v4102
      %v4582 = vsel %vm2202, %v4534, %v4104
      %v4583 = vsel %vm2202, %v4535, %v4106
      %v4584 = vsel %vm2202, %v4536, %v4108
      %v4585 = vsel %vm2202, %v4537, %v4110
      %v4586 = vsel %vm2202, %v4538, %v4112
      %v4587 = vsel %vm2202, %v4539, %v4114
      %v4588 = vsel %vm2202, %v4540, %v4116
      %v4589 = vsel %vm2202, %v4541, %v4118
      %v4590 = vsel %vm2202, %v4542, %v4120
      %v4591 = vsel %vm2202, %v4543, %v4122
      %v4592 = vsel %vm2202, %v4544, %v4124
      %v4593 = vsel %vm2202, %v4545, %v4126
      %v4594 = vsel %vm2202, %v4546, %v4128
      %v4595 = vsel %vm2202, %v4547, %v4130
      %v4596 = vsel %vm2202, %v4548, %v4132
      %v4597 = vsel %vm2202, %v4549, %v4134
      %v4598 = vsel %vm2202, %v4550, %v4136
      %v4599 = vsel %vm2202, %v4551, %v4138
      %v4600 = vsel %vm2202, %v4552, %v4140
      %v4601 = vsel %vm2202, %v4553, %v4142
      %v4602 = vsel %vm2202, %v4554, %v4144
      %v4603 = vsel %vm2202, %v4555, %v4146
      %v4604 = vsel %vm2202, %v4556, %v4148
      %v4605 = vsel %vm2202, %v4557, %v4150
      %v4606 = vsel %vm2202, %v4558, %v4152
      %v4607 = vsel %vm2202, %v4559, %v4154
      %v4608 = vsel %vm2202, %v4560, %v4156
      %v4609 = vsel %vm2202, %v4561, %v4158
      %v4610 = vsel %vm2202, %v4562, %v4160
      %v4611 = vsel %vm2202, %v4563, %v4162
      %v4612 = vsel %vm2202, %v4564, %v4164
      %v4613 = vsel %vm2202, %v4565, %v4166
      %v4614 = vsel %vm2202, %v4566, %v4168
      %v4615 = vsel %vm2202, %v4567, %v4170
      %v4616 = vsel %vm2202, %v4568, %v4172
      %v4617 = vsel %vm2202, %v4569, %v4174
      %v4618 = vsel %vm2202, %v4570, %v4176
      %v4619 = vsel %vm2202, %v4571, %v4178
      %v4620 = vsel %vm2202, %v4572, %v4180
      %v4621 = vsel %vm2202, %v4573, %v4182
      %v4622 = vsel %vm2202, %v4574, %v4184
      %v4623 = vsel %vm2202, %v4575, %v4186
      %v4624 = vsel %vm2202, %v4576, %v4188
      %v4625 = vsel %vm2202, %v4577, %v4190
      %v4626 = vsel %vm2202, %v4578, %v4192
      %v4627 = vsel %vm2202, %v4579, %v4194
      %v4628 = vsel %vm2202, %v4580, %v4196
      %v4629 = vld [vmem:[%s3] sm:$0xff]
      %v4630 = vld [vmem:[%s3 + $0x8] sm:$0xff]
      %v4631 = vld [vmem:[%s3 + $0x10] sm:$0xff]
      %v4632 = vld [vmem:[%s3 + $0x18] sm:$0xff]
      %v4633 = vld [vmem:[%s3 + $0x20] sm:$0xf]
      %v4634 = vld [vmem:[%s4] sm:$0x1]
      %v4636 = vlaneseq
      %v4637 = vshrl.u32 %v4636, 7
      %v4638 = vsub.s32 0, %v4637
      %v4639 = vrot.slane %v4634, %v4638
      %v4642 = vsel %vm2263, %v4581, 0
      %v4645 = vsel %vm2263, %v4582, 0
      %v4648 = vsel %vm2263, %v4583, 0
      %v4651 = vsel %vm2263, %v4584, 0
      %v4654 = vsel %vm2263, %v4585, 0
      %v4657 = vsel %vm2263, %v4586, 0
      %v4660 = vsel %vm2263, %v4587, 0
      %v4663 = vsel %vm2263, %v4588, 0
      %v4666 = vsel %vm2263, %v4589, 0
      %v4669 = vsel %vm2263, %v4590, 0
      %v4672 = vsel %vm2263, %v4591, 0
      %v4675 = vsel %vm2263, %v4592, 0
      %v4678 = vsel %vm2263, %v4593, 0
      %v4681 = vsel %vm2263, %v4594, 0
      %v4684 = vsel %vm2263, %v4595, 0
      %v4687 = vsel %vm2263, %v4596, 0
      %v4690 = vsel %vm2263, %v4597, 0
      %v4693 = vsel %vm2263, %v4598, 0
      %v4696 = vsel %vm2263, %v4599, 0
      %v4699 = vsel %vm2263, %v4600, 0
      %v4702 = vsel %vm2263, %v4601, 0
      %v4705 = vsel %vm2263, %v4602, 0
      %v4708 = vsel %vm2263, %v4603, 0
      %v4711 = vsel %vm2263, %v4604, 0
      %v4714 = vsel %vm2263, %v4605, 0
      %v4717 = vsel %vm2263, %v4606, 0
      %v4720 = vsel %vm2263, %v4607, 0
      %v4723 = vsel %vm2263, %v4608, 0
      %v4726 = vsel %vm2263, %v4609, 0
      %v4729 = vsel %vm2263, %v4610, 0
      %v4732 = vsel %vm2263, %v4611, 0
      %v4735 = vsel %vm2263, %v4612, 0
      %v4738 = vsel %vm2263, %v4613, 0
      %v4741 = vsel %vm2263, %v4614, 0
      %v4744 = vsel %vm2263, %v4615, 0
      %v4747 = vsel %vm2263, %v4616, 0
      %v4750 = vsel %vm2263, %v4617, 0
      %v4753 = vsel %vm2263, %v4618, 0
      %v4756 = vsel %vm2263, %v4619, 0
      %v4759 = vsel %vm2263, %v4620, 0
      %v4762 = vsel %vm2263, %v4621, 0
      %v4765 = vsel %vm2263, %v4622, 0
      %v4768 = vsel %vm2263, %v4623, 0
      %v4771 = vsel %vm2263, %v4624, 0
      %v4774 = vsel %vm2263, %v4625, 0
      %v4777 = vsel %vm2263, %v4626, 0
      %v4780 = vsel %vm2263, %v4627, 0
      %v4783 = vsel %vm2263, %v4628, 0
      %v4786 = vsel %vm2408, %v4633, 0
      %4788 = vmatprep.subr.mxu0 0.0
      %4789 = vmatpush1.msra.mxu0 %v4629
      %4790 = vmatprep.subr.mxu0 0.0
      %4791 = vmatpush1.msra.mxu0 %v4630
      %4792 = vmatprep.subr.mxu0 0.0
      %4793 = vmatpush1.msra.mxu0 %v4631
      %4794 = vmatprep.subr.mxu0 0.0
      %4795 = vmatpush1.msra.mxu0 %v4632
      %4796 = vmatprep.subr.mxu0 0.0
      %4797 = vmatpush1.msra.mxu0 %v4786
      %4798 = vmatprep.subr.mxu0 0.0
      %4799 = vmatpush1.msra.mxu0 0.0
      %4800 = vmatprep.subr.mxu0 0.0
      %4801 = vmatpush1.msra.mxu0 0.0
      %4802 = vmatprep.subr.mxu0 0.0
      %4803 = vmatpush1.msra.mxu0 0.0
      %4804 = vmatprep.subr.mxu0 0.0
      %4805 = vmatpush1.msra.mxu0 0.0
      %4806 = vmatprep.subr.mxu0 0.0
      %4807 = vmatpush1.msra.mxu0 0.0
      %4808 = vmatprep.subr.mxu0 0.0
      %4809 = vmatpush1.msra.mxu0 0.0
      %4810 = vmatprep.subr.mxu0 0.0
      %4811 = vmatpush1.msra.mxu0 0.0
      %4812 = vmatprep.subr.mxu0 0.0
      %4813 = vmatpush1.msra.mxu0 0.0
      %4814 = vmatprep.subr.mxu0 0.0
      %4815 = vmatpush1.msra.mxu0 0.0
      %4816 = vmatprep.subr.mxu0 0.0
      %4817 = vmatpush1.msra.mxu0 0.0
      %4818 = vmatprep.subr.mxu0 0.0
      %4819 = vmatpush1.msra.mxu0 0.0
      %4820 = vmatprep.subr.mxu0 0.0
      %4821 = vmatpush1.msra.mxu0 0.0
      %4822 = vmatprep.subr.mxu0 0.0
      %4823 = vmatpush1.msra.mxu0 0.0
      %4824 = vmatprep.subr.mxu0 0.0
      %4825 = vmatpush1.msra.mxu0 0.0
      %4826 = vmatprep.subr.mxu0 0.0
      %4827 = vmatpush1.msra.mxu0 0.0
      %4828 = vmatprep.subr.mxu0 0.0
      %4829 = vmatpush1.msra.mxu0 0.0
      %4830 = vmatprep.subr.mxu0 0.0
      %4831 = vmatpush1.msra.mxu0 0.0
      %4832 = vmatprep.subr.mxu0 0.0
      %4833 = vmatpush1.msra.mxu0 0.0
      %4834 = vmatprep.subr.mxu0 0.0
      %4835 = vmatpush1.msra.mxu0 0.0
      %4836 = vmatprep.subr.mxu0 0.0
      %4837 = vmatpush1.msra.mxu0 0.0
      %4838 = vmatprep.subr.mxu0 0.0
      %4839 = vmatpush1.msra.mxu0 0.0
      %4840 = vmatprep.subr.mxu0 0.0
      %4841 = vmatpush1.msra.mxu0 0.0
      %4842 = vmatprep.subr.mxu0 0.0
      %4843 = vmatpush1.msra.mxu0 0.0
      %4844 = vmatprep.subr.mxu0 0.0
      %4845 = vmatpush1.msra.mxu0 0.0
      %4846 = vmatprep.subr.mxu0 0.0
      %4847 = vmatpush1.msra.mxu0 0.0
      %4848 = vmatprep.subr.mxu0 0.0
      %4849 = vmatpush1.msra.mxu0 0.0
      %4850 = vmatprep.subr.mxu0 0.0
      %4851 = vmatpush1.msra.mxu0 0.0
      %4852 = vmatprep.mubr.f32.mxu0 0.0
      %4853 = vmatmul.mubr.f32.gmra.mrb[0].mxu0 %v4642
      %v4854 = vpop.f32.mrb[0].mxu0
      %v4855 = vadd.f32 %v4639, %v4854
      %v4856 = vpop.f32.mrb[0].mxu0
      %4857 = vmatprep.mubr.f32.mxu0 0.0
      %4858 = vmatmul.mubr.f32.gmra.mrb[0].mxu0 %v4645
      %v4859 = vpop.f32.mrb[0].mxu0
      %v4860 = vadd.f32 %v4639, %v4859
      %v4861 = vpop.f32.mrb[0].mxu0
      %4862 = vmatprep.mubr.f32.mxu0 0.0
      %4863 = vmatmul.mubr.f32.gmra.mrb[0].mxu0 %v4648
      %v4864 = vpop.f32.mrb[0].mxu0
      %v4865 = vpop.f32.mrb[0].mxu0
      %4866 = vmatprep.mubr.f32.mxu0 0.0
      %4867 = vmatmul.mubr.f32.gmra.mrb[0].mxu0 %v4651
      %v4868 = vpop.f32.mrb[0].mxu0
      %v4869 = vadd.f32 %v4639, %v4868
      %v4870 = vpop.f32.mrb[0].mxu0
      %4871 = vmatprep.mubr.f32.mxu0 0.0
      %4872 = vmatmul.mubr.f32.gmra.mrb[0].mxu0 %v4654
      %v4873 = vpop.f32.mrb[0].mxu0
      %v4874 = vadd.f32 %v4639, %v4873
      %v4875 = vpop.f32.mrb[0].mxu0
      %4876 = vmatprep.mubr.f32.mxu0 0.0
      %4877 = vmatmul.mubr.f32.gmra.mrb[0].mxu0 %v4657
      %v4878 = vpop.f32.mrb[0].mxu0
      %v4879 = vpop.f32.mrb[0].mxu0
      %4880 = vmatprep.mubr.f32.mxu0 0.0
      %4881 = vmatmul.mubr.f32.gmra.mrb[0].mxu0 %v4660
      %v4882 = vpop.f32.mrb[0].mxu0
      %v4883 = vadd.f32 %v4639, %v4882
      %v4884 = vpop.f32.mrb[0].mxu0
      %4885 = vmatprep.mubr.f32.mxu0 0.0
      %4886 = vmatmul.mubr.f32.gmra.mrb[0].mxu0 %v4663
      %v4887 = vpop.f32.mrb[0].mxu0
      %v4888 = vadd.f32 %v4639, %v4887
      %v4889 = vpop.f32.mrb[0].mxu0
      %4890 = vmatprep.mubr.f32.mxu0 0.0
      %4891 = vmatmul.mubr.f32.gmra.mrb[0].mxu0 %v4666
      %v4892 = vpop.f32.mrb[0].mxu0
      %v4893 = vpop.f32.mrb[0].mxu0
      %4894 = vmatprep.mubr.f32.mxu0 0.0
      %4895 = vmatmul.mubr.f32.gmra.mrb[0].mxu0 %v4669
      %v4896 = vpop.f32.mrb[0].mxu0
      %v4897 = vadd.f32 %v4639, %v4896
      %v4898 = vpop.f32.mrb[0].mxu0
      %4899 = vmatprep.mubr.f32.mxu0 0.0
      %4900 = vmatmul.mubr.f32.gmra.mrb[0].mxu0 %v4672
      %v4901 = vpop.f32.mrb[0].mxu0
      %v4902 = vadd.f32 %v4639, %v4901
      %v4903 = vpop.f32.mrb[0].mxu0
      %4904 = vmatprep.mubr.f32.mxu0 0.0
      %4905 = vmatmul.mubr.f32.gmra.mrb[0].mxu0 %v4675
      %v4906 = vpop.f32.mrb[0].mxu0
      %v4907 = vpop.f32.mrb[0].mxu0
      %4908 = vmatprep.mubr.f32.mxu0 0.0
      %4909 = vmatmul.mubr.f32.gmra.mrb[0].mxu0 %v4678
      %v4910 = vpop.f32.mrb[0].mxu0
      %v4911 = vadd.f32 %v4639, %v4910
      %v4912 = vpop.f32.mrb[0].mxu0
      %4913 = vmatprep.mubr.f32.mxu0 0.0
      %4914 = vmatmul.mubr.f32.gmra.mrb[0].mxu0 %v4681
      %v4915 = vpop.f32.mrb[0].mxu0
      %v4916 = vadd.f32 %v4639, %v4915
      %v4917 = vpop.f32.mrb[0].mxu0
      %4918 = vmatprep.mubr.f32.mxu0 0.0
      %4919 = vmatmul.mubr.f32.gmra.mrb[0].mxu0 %v4684
      %v4920 = vpop.f32.mrb[0].mxu0
      %v4921 = vpop.f32.mrb[0].mxu0
      %4922 = vmatprep.mubr.f32.mxu0 0.0
      %4923 = vmatmul.mubr.f32.gmra.mrb[0].mxu0 %v4687
      %v4924 = vpop.f32.mrb[0].mxu0
      %v4925 = vadd.f32 %v4639, %v4924
      %v4926 = vpop.f32.mrb[0].mxu0
      %4927 = vmatprep.mubr.f32.mxu0 0.0
      %4928 = vmatmul.mubr.f32.gmra.mrb[0].mxu0 %v4690
      %v4929 = vpop.f32.mrb[0].mxu0
      %v4930 = vadd.f32 %v4639, %v4929
      %v4931 = vpop.f32.mrb[0].mxu0
      %4932 = vmatprep.mubr.f32.mxu0 0.0
      %4933 = vmatmul.mubr.f32.gmra.mrb[0].mxu0 %v4693
      %v4934 = vpop.f32.mrb[0].mxu0
      %v4935 = vpop.f32.mrb[0].mxu0
      %4936 = vmatprep.mubr.f32.mxu0 0.0
      %4937 = vmatmul.mubr.f32.gmra.mrb[0].mxu0 %v4696
      %v4938 = vpop.f32.mrb[0].mxu0
      %v4939 = vadd.f32 %v4639, %v4938
      %v4940 = vpop.f32.mrb[0].mxu0
      %4941 = vmatprep.mubr.f32.mxu0 0.0
      %4942 = vmatmul.mubr.f32.gmra.mrb[0].mxu0 %v4699
      %v4943 = vpop.f32.mrb[0].mxu0
      %v4944 = vadd.f32 %v4639, %v4943
      %v4945 = vpop.f32.mrb[0].mxu0
      %4946 = vmatprep.mubr.f32.mxu0 0.0
      %4947 = vmatmul.mubr.f32.gmra.mrb[0].mxu0 %v4702
      %v4948 = vpop.f32.mrb[0].mxu0
      %v4949 = vpop.f32.mrb[0].mxu0
      %4950 = vmatprep.mubr.f32.mxu0 0.0
      %4951 = vmatmul.mubr.f32.gmra.mrb[0].mxu0 %v4705
      %v4952 = vpop.f32.mrb[0].mxu0
      %v4953 = vadd.f32 %v4639, %v4952
      %v4954 = vpop.f32.mrb[0].mxu0
      %4955 = vmatprep.mubr.f32.mxu0 0.0
      %4956 = vmatmul.mubr.f32.gmra.mrb[0].mxu0 %v4708
      %v4957 = vpop.f32.mrb[0].mxu0
      %v4958 = vadd.f32 %v4639, %v4957
      %v4959 = vpop.f32.mrb[0].mxu0
      %4960 = vmatprep.mubr.f32.mxu0 0.0
      %4961 = vmatmul.mubr.f32.gmra.mrb[0].mxu0 %v4711
      %v4962 = vpop.f32.mrb[0].mxu0
      %v4963 = vpop.f32.mrb[0].mxu0
      %4964 = vmatprep.mubr.f32.mxu0 0.0
      %4965 = vmatmul.mubr.f32.gmra.mrb[0].mxu0 %v4714
      %v4966 = vpop.f32.mrb[0].mxu0
      %v4967 = vadd.f32 %v4639, %v4966
      %v4968 = vpop.f32.mrb[0].mxu0
      %4969 = vmatprep.mubr.f32.mxu0 0.0
      %4970 = vmatmul.mubr.f32.gmra.mrb[0].mxu0 %v4717
      %v4971 = vpop.f32.mrb[0].mxu0
      %v4972 = vadd.f32 %v4639, %v4971
      %v4973 = vpop.f32.mrb[0].mxu0
      %4974 = vmatprep.mubr.f32.mxu0 0.0
      %4975 = vmatmul.mubr.f32.gmra.mrb[0].mxu0 %v4720
      %v4976 = vpop.f32.mrb[0].mxu0
      %v4977 = vpop.f32.mrb[0].mxu0
      %4978 = vmatprep.mubr.f32.mxu0 0.0
      %4979 = vmatmul.mubr.f32.gmra.mrb[0].mxu0 %v4723
      %v4980 = vpop.f32.mrb[0].mxu0
      %v4981 = vadd.f32 %v4639, %v4980
      %v4982 = vpop.f32.mrb[0].mxu0
      %4983 = vmatprep.mubr.f32.mxu0 0.0
      %4984 = vmatmul.mubr.f32.gmra.mrb[0].mxu0 %v4726
      %v4985 = vpop.f32.mrb[0].mxu0
      %v4986 = vadd.f32 %v4639, %v4985
      %v4987 = vpop.f32.mrb[0].mxu0
      %4988 = vmatprep.mubr.f32.mxu0 0.0
      %4989 = vmatmul.mubr.f32.gmra.mrb[0].mxu0 %v4729
      %v4990 = vpop.f32.mrb[0].mxu0
      %v4991 = vpop.f32.mrb[0].mxu0
      %4992 = vmatprep.mubr.f32.mxu0 0.0
      %4993 = vmatmul.mubr.f32.gmra.mrb[0].mxu0 %v4732
      %v4994 = vpop.f32.mrb[0].mxu0
      %v4995 = vadd.f32 %v4639, %v4994
      %v4996 = vpop.f32.mrb[0].mxu0
      %4997 = vmatprep.mubr.f32.mxu0 0.0
      %4998 = vmatmul.mubr.f32.gmra.mrb[0].mxu0 %v4735
      %v4999 = vpop.f32.mrb[0].mxu0
      %v5000 = vadd.f32 %v4639, %v4999
      %v5001 = vpop.f32.mrb[0].mxu0
      %5002 = vmatprep.mubr.f32.mxu0 0.0
      %5003 = vmatmul.mubr.f32.gmra.mrb[0].mxu0 %v4738
      %v5004 = vpop.f32.mrb[0].mxu0
      %v5005 = vpop.f32.mrb[0].mxu0
      %5006 = vmatprep.mubr.f32.mxu0 0.0
      %5007 = vmatmul.mubr.f32.gmra.mrb[0].mxu0 %v4741
      %v5008 = vpop.f32.mrb[0].mxu0
      %v5009 = vadd.f32 %v4639, %v5008
      %v5010 = vpop.f32.mrb[0].mxu0
      %5011 = vmatprep.mubr.f32.mxu0 0.0
      %5012 = vmatmul.mubr.f32.gmra.mrb[0].mxu0 %v4744
      %v5013 = vpop.f32.mrb[0].mxu0
      %v5014 = vadd.f32 %v4639, %v5013
      %v5015 = vpop.f32.mrb[0].mxu0
      %5016 = vmatprep.mubr.f32.mxu0 0.0
      %5017 = vmatmul.mubr.f32.gmra.mrb[0].mxu0 %v4747
      %v5018 = vpop.f32.mrb[0].mxu0
      %v5019 = vpop.f32.mrb[0].mxu0
      %5020 = vmatprep.mubr.f32.mxu0 0.0
      %5021 = vmatmul.mubr.f32.gmra.mrb[0].mxu0 %v4750
      %v5022 = vpop.f32.mrb[0].mxu0
      %v5023 = vadd.f32 %v4639, %v5022
      %v5024 = vpop.f32.mrb[0].mxu0
      %5025 = vmatprep.mubr.f32.mxu0 0.0
      %5026 = vmatmul.mubr.f32.gmra.mrb[0].mxu0 %v4753
      %v5027 = vpop.f32.mrb[0].mxu0
      %v5028 = vadd.f32 %v4639, %v5027
      %v5029 = vpop.f32.mrb[0].mxu0
      %5030 = vmatprep.mubr.f32.mxu0 0.0
      %5031 = vmatmul.mubr.f32.gmra.mrb[0].mxu0 %v4756
      %v5032 = vpop.f32.mrb[0].mxu0
      %v5033 = vpop.f32.mrb[0].mxu0
      %5034 = vmatprep.mubr.f32.mxu0 0.0
      %5035 = vmatmul.mubr.f32.gmra.mrb[0].mxu0 %v4759
      %v5036 = vpop.f32.mrb[0].mxu0
      %v5037 = vadd.f32 %v4639, %v5036
      %v5038 = vpop.f32.mrb[0].mxu0
      %5039 = vmatprep.mubr.f32.mxu0 0.0
      %5040 = vmatmul.mubr.f32.gmra.mrb[0].mxu0 %v4762
      %v5041 = vpop.f32.mrb[0].mxu0
      %v5042 = vadd.f32 %v4639, %v5041
      %v5043 = vpop.f32.mrb[0].mxu0
      %5044 = vmatprep.mubr.f32.mxu0 0.0
      %5045 = vmatmul.mubr.f32.gmra.mrb[0].mxu0 %v4765
      %v5046 = vpop.f32.mrb[0].mxu0
      %v5047 = vpop.f32.mrb[0].mxu0
      %5048 = vmatprep.mubr.f32.mxu0 0.0
      %5049 = vmatmul.mubr.f32.gmra.mrb[0].mxu0 %v4768
      %v5050 = vpop.f32.mrb[0].mxu0
      %v5051 = vadd.f32 %v4639, %v5050
      %v5052 = vpop.f32.mrb[0].mxu0
      %5053 = vmatprep.mubr.f32.mxu0 0.0
      %5054 = vmatmul.mubr.f32.gmra.mrb[0].mxu0 %v4771
      %v5055 = vpop.f32.mrb[0].mxu0
      %v5056 = vadd.f32 %v4639, %v5055
      %v5057 = vpop.f32.mrb[0].mxu0
      %5058 = vmatprep.mubr.f32.mxu0 0.0
      %5059 = vmatmul.mubr.f32.gmra.mrb[0].mxu0 %v4774
      %v5060 = vpop.f32.mrb[0].mxu0
      %v5061 = vpop.f32.mrb[0].mxu0
      %5062 = vmatprep.mubr.f32.mxu0 0.0
      %5063 = vmatmul.mubr.f32.gmra.mrb[0].mxu0 %v4777
      %v5064 = vpop.f32.mrb[0].mxu0
      %v5065 = vadd.f32 %v4639, %v5064
      %v5066 = vpop.f32.mrb[0].mxu0
      %5067 = vmatprep.mubr.f32.mxu0 0.0
      %5068 = vmatmul.mubr.f32.gmra.mrb[0].mxu0 %v4780
      %v5069 = vpop.f32.mrb[0].mxu0
      %v5070 = vadd.f32 %v4639, %v5069
      %v5071 = vpop.f32.mrb[0].mxu0
      %5072 = vmatprep.mubr.f32.mxu0 0.0
      %5073 = vmatmul.mubr.f32.gmra.mrb[0].mxu0 %v4783
      %v5074 = vpop.f32.mrb[0].mxu0
      %v5075 = vpop.f32.mrb[0].mxu0
      %5076 = vdwg.mxu0
      %v5077 = vadd.f32 %v4855, %v225
      %v5078 = vadd.f32 %v4860, %v226
      %v5079 = vadd.f32 %v4869, %v227
      %v5080 = vadd.f32 %v4874, %v228
      %v5081 = vadd.f32 %v4883, %v229
      %v5082 = vadd.f32 %v4888, %v230
      %v5083 = vadd.f32 %v4897, %v231
      %v5084 = vadd.f32 %v4902, %v232
      %v5085 = vadd.f32 %v4911, %v233
      %v5086 = vadd.f32 %v4916, %v234
      %v5087 = vadd.f32 %v4925, %v235
      %v5088 = vadd.f32 %v4930, %v236
      %v5089 = vadd.f32 %v4939, %v237
      %v5090 = vadd.f32 %v4944, %v238
      %v5091 = vadd.f32 %v4953, %v239
      %v5092 = vadd.f32 %v4958, %v240
      %v5093 = vadd.f32 %v4967, %v241
      %v5094 = vadd.f32 %v4972, %v242
      %v5095 = vadd.f32 %v4981, %v243
      %v5096 = vadd.f32 %v4986, %v244
      %v5097 = vadd.f32 %v4995, %v245
      %v5098 = vadd.f32 %v5000, %v246
      %v5099 = vadd.f32 %v5009, %v247
      %v5100 = vadd.f32 %v5014, %v248
      %v5101 = vadd.f32 %v5023, %v249
      %v5102 = vadd.f32 %v5028, %v250
      %v5103 = vadd.f32 %v5037, %v251
      %v5104 = vadd.f32 %v5042, %v252
      %v5105 = vadd.f32 %v5051, %v253
      %v5106 = vadd.f32 %v5056, %v254
      %v5107 = vadd.f32 %v5065, %v255
      %v5108 = vadd.f32 %v5070, %v256
      %v5109 = vmax.f32 %v5077, 0.0
      %v5110 = vmax.f32 %v5078, 0.0
      %v5111 = vmax.f32 %v5079, 0.0
      %v5112 = vmax.f32 %v5080, 0.0
      %v5113 = vmax.f32 %v5081, 0.0
      %v5114 = vmax.f32 %v5082, 0.0
      %v5115 = vmax.f32 %v5083, 0.0
      %v5116 = vmax.f32 %v5084, 0.0
      %v5117 = vmax.f32 %v5085, 0.0
      %v5118 = vmax.f32 %v5086, 0.0
      %v5119 = vmax.f32 %v5087, 0.0
      %v5120 = vmax.f32 %v5088, 0.0
      %v5121 = vmax.f32 %v5089, 0.0
      %v5122 = vmax.f32 %v5090, 0.0
      %v5123 = vmax.f32 %v5091, 0.0
      %v5124 = vmax.f32 %v5092, 0.0
      %v5125 = vmax.f32 %v5093, 0.0
      %v5126 = vmax.f32 %v5094, 0.0
      %v5127 = vmax.f32 %v5095, 0.0
      %v5128 = vmax.f32 %v5096, 0.0
      %v5129 = vmax.f32 %v5097, 0.0
      %v5130 = vmax.f32 %v5098, 0.0
      %v5131 = vmax.f32 %v5099, 0.0
      %v5132 = vmax.f32 %v5100, 0.0
      %v5133 = vmax.f32 %v5101, 0.0
      %v5134 = vmax.f32 %v5102, 0.0
      %v5135 = vmax.f32 %v5103, 0.0
      %v5136 = vmax.f32 %v5104, 0.0
      %v5137 = vmax.f32 %v5105, 0.0
      %v5138 = vmax.f32 %v5106, 0.0
      %v5139 = vmax.f32 %v5107, 0.0
      %v5140 = vmax.f32 %v5108, 0.0
      %5141 = vst.msk [vmem:[%s224] sm:$0xff] %vm257, %v5109
      %5142 = vst.msk [vmem:[%s224 + $0x8] sm:$0xff] %vm257, %v5110
      %5143 = vst.msk [vmem:[%s224 + $0x10] sm:$0xff] %vm257, %v5111
      %5144 = vst.msk [vmem:[%s224 + $0x18] sm:$0xff] %vm257, %v5112
      %5145 = vst.msk [vmem:[%s224 + $0x20] sm:$0xff] %vm257, %v5113
      %5146 = vst.msk [vmem:[%s224 + $0x28] sm:$0xff] %vm257, %v5114
      %5147 = vst.msk [vmem:[%s224 + $0x30] sm:$0xff] %vm257, %v5115
      %5148 = vst.msk [vmem:[%s224 + $0x38] sm:$0xff] %vm257, %v5116
      %5149 = vst.msk [vmem:[%s224 + $0x40] sm:$0xff] %vm257, %v5117
      %5150 = vst.msk [vmem:[%s224 + $0x48] sm:$0xff] %vm257, %v5118
      %5151 = vst.msk [vmem:[%s224 + $0x50] sm:$0xff] %vm257, %v5119
      %5152 = vst.msk [vmem:[%s224 + $0x58] sm:$0xff] %vm257, %v5120
      %5153 = vst.msk [vmem:[%s224 + $0x60] sm:$0xff] %vm257, %v5121
      %5154 = vst.msk [vmem:[%s224 + $0x68] sm:$0xff] %vm257, %v5122
      %5155 = vst.msk [vmem:[%s224 + $0x70] sm:$0xff] %vm257, %v5123
      %5156 = vst.msk [vmem:[%s224 + $0x78] sm:$0xff] %vm257, %v5124
      %5157 = vst.msk [vmem:[%s224 + $0x80] sm:$0xff] %vm257, %v5125
      %5158 = vst.msk [vmem:[%s224 + $0x88] sm:$0xff] %vm257, %v5126
      %5159 = vst.msk [vmem:[%s224 + $0x90] sm:$0xff] %vm257, %v5127
      %5160 = vst.msk [vmem:[%s224 + $0x98] sm:$0xff] %vm257, %v5128
      %5161 = vst.msk [vmem:[%s224 + $0xa0] sm:$0xff] %vm257, %v5129
      %5162 = vst.msk [vmem:[%s224 + $0xa8] sm:$0xff] %vm257, %v5130
      %5163 = vst.msk [vmem:[%s224 + $0xb0] sm:$0xff] %vm257, %v5131
      %5164 = vst.msk [vmem:[%s224 + $0xb8] sm:$0xff] %vm257, %v5132
      %5165 = vst.msk [vmem:[%s224 + $0xc0] sm:$0xff] %vm257, %v5133
      %5166 = vst.msk [vmem:[%s224 + $0xc8] sm:$0xff] %vm257, %v5134
      %5167 = vst.msk [vmem:[%s224 + $0xd0] sm:$0xff] %vm257, %v5135
      %5168 = vst.msk [vmem:[%s224 + $0xd8] sm:$0xff] %vm257, %v5136
      %5169 = vst.msk [vmem:[%s224 + $0xe0] sm:$0xff] %vm257, %v5137
      %5170 = vst.msk [vmem:[%s224 + $0xe8] sm:$0xff] %vm257, %v5138
      %5171 = vst.msk [vmem:[%s224 + $0xf0] sm:$0xff] %vm257, %v5139
      %5172 = vst.msk [vmem:[%s224 + $0xf8] sm:$0xff] %vm257, %v5140
      %p5173 = scmp.lt.s32.totalorder %s16, 1
      %s5174 = scalar_select %p5173, %s16, 1
      %s5175 = smul.addr %s5174, 32
      %s5176 = smul.addr %s5175, 8
      %s5177 = scalar_lea.vmem %s5, %s5176
      // Predicated region
      $region41: #{basic_block_forward.1} parent=39 // pred_check
        %p5178 = pneg %p144
      $region42: #{basic_block_forward.1} parent=39 // pred_check_branch
        %5180 = sbr.rel (%p5178) target = $region44
      $region43: #{basic_block_forward.1} parent=39 // pred_region
        _
      $region44: #{basic_block_forward.1} parent=39 // pred_fallthru
        _
    $region40: #{basic_block_forward.1} parent=5 // pred_fallthru
      _
    %p5181 = scmp.le.s32.totalorder 2, %s11
    // Predicated region
    $region45: #{basic_block_forward.1} parent=5 // pred_check
      %p5182 = pneg %p5181
    $region46: #{basic_block_forward.1} parent=5 // pred_check_branch
      %5184 = sbr.rel (%p5182) target = $region48
    $region47: #{basic_block_forward.1} parent=5 // pred_region
      %s5185 = ssub.s32 %s11, 2
      // Predicated region
      $region49: #{basic_block_forward.1} parent=47 // pred_check
        %p5186 = pneg %p150
      $region50: #{basic_block_forward.1} parent=47 // pred_check_branch
        %5188 = sbr.rel (%p5186) target = $region52
      $region51: #{basic_block_forward.1} parent=47 // pred_region
        %p5189 = scmp.lt.s32.totalorder %s17, 1
        %s5190 = scalar_select %p5189, %s17, 1
        %s5191 = smul.addr %s5190, 32
        %s5192 = smul.addr %s5191, 8
        %s5193 = scalar_lea.vmem %s5, %s5192
      $region52: #{basic_block_forward.1} parent=47 // pred_fallthru
        _
    $region48: #{basic_block_forward.1} parent=5 // pred_fallthru
      _
  $region6: #{basic_block_forward.1} parent=0 // loop_footer
    %s15 = sadd.s32 1, %s11
  $region7: #{basic_block_forward.1} parent=0 // loop_footer_branch
    %10 = sbr.rel target = $region3
  $region8: #{basic_block_forward.1} parent=0 // loop_exit
    _

</llo_original>
